<compile_context>
chip_gen: v5e
topology: v5e:2x2
jax: 0.10.0
libtpu: 0.0.40
codegen_flags: <defaults>
</compile_context>

<pallas_src>
import functools

import jax
import jax.numpy as jnp
from jax import lax
from jax.experimental import pallas as pl
from jax.experimental.pallas import tpu as pltpu


def _mha_kernel(x_ref, wqkv_ref, woT_ref, bo_ref, o_ref,
                *, num_heads: int, head_dim: int):
    # x_ref block: (Bt, T, d_in); o_ref block: (Bt, T, d_out)
    Bt, T, d_in = x_ref.shape
    d_out = num_heads * head_dim
    M = Bt * T

    # Fold batch into the matmul M dimension: one wide QKV projection with
    # M = Bt*T rows (single MXU pass, 3x N width).
    x = x_ref[...].reshape(M, d_in).astype(jnp.bfloat16)
    qkv = jnp.dot(x, wqkv_ref[...],
                  preferred_element_type=jnp.float32)            # (M, 3*d_out) f32

    # 1/sqrt(head_dim) is already folded into the Wq columns of wqkv.
    qb = qkv[:, :d_out].astype(jnp.bfloat16)
    kb = qkv[:, d_out:2 * d_out].astype(jnp.bfloat16)
    vb = qkv[:, 2 * d_out:].astype(jnp.bfloat16)

    # Causal mask, built once and shared across (batch, head).
    row = lax.broadcasted_iota(jnp.int32, (T, T), 0)
    col = lax.broadcasted_iota(jnp.int32, (T, T), 1)
    keep = col <= row
    neg_big = jnp.float32(-1e30)   # finite: diagonal always kept -> no NaN risk

    # Per-(batch, head) attention; head outputs are assembled in registers
    # ("natural concat"), not via a VMEM scratch with masked partial stores.
    ctx_rows = []
    for b in range(Bt):                         # small static unroll
        r0 = b * T
        head_outs = []
        for h in range(num_heads):
            lo = h * head_dim
            qh = qb[r0:r0 + T, lo:lo + head_dim]   # (T, hd) bf16
            kh = kb[r0:r0 + T, lo:lo + head_dim]
            vh = vb[r0:r0 + T, lo:lo + head_dim]

            # Q @ K^T without materializing K^T: contract dim 1 of both.
            s = lax.dot_general(qh, kh, (((1,), (1,)), ((), ())),
                                preferred_element_type=jnp.float32)   # (T, T) f32
            s = jnp.where(keep, s, neg_big)

            # Softmax in f32; normalization deferred to the (T, hd) context.
            m = jnp.max(s, axis=-1, keepdims=True)
            p = jnp.exp(s - m)
            inv_l = pl.reciprocal(jnp.sum(p, axis=-1, keepdims=True), approx=True)

            oh = jnp.dot(p.astype(jnp.bfloat16), vh,
                         preferred_element_type=jnp.float32) * inv_l  # (T, hd) f32
            head_outs.append(oh.astype(jnp.bfloat16))
        ctx_rows.append(jnp.concatenate(head_outs, axis=-1))          # (T, d_out) bf16
    ctx = jnp.concatenate(ctx_rows, axis=0)                           # (M, d_out) bf16

    # Single full-width output projection over all M = Bt*T rows.
    out = jnp.dot(ctx, woT_ref[...],
                  preferred_element_type=jnp.float32) + bo_ref[...]
    o_ref[...] = out.reshape(Bt, T, d_out).astype(o_ref.dtype)


def prepare_mha_weights(wq, wk, wv, woT, bo, *, num_heads: int):
    """One-time setup, hoisted OUT of the per-call path.

    Fuses QKV into one (d_in, 3*d_out) matrix, folds the 1/sqrt(head_dim)
    scale into the Wq columns, and pre-casts MXU weight operands to bf16.
    """
    d_in, d_out = wq.shape
    assert d_out % num_heads == 0, "d_out must be divisible by num_heads"
    head_dim = d_out // num_heads
    scale = 1.0 / (float(head_dim) ** 0.5)
    wqkv = jnp.concatenate([wq * scale, wk, wv], axis=1).astype(jnp.bfloat16)
    woT_b = woT.astype(jnp.bfloat16)
    bo2 = bo.reshape(1, d_out).astype(jnp.float32)
    return wqkv, woT_b, bo2


def multi_head_attention(x, wqkv, woT_b, bo2, *, num_heads: int, block_b=None):
    """x: (B, T, d_in) float32; wqkv/woT_b/bo2 from prepare_mha_weights.

    Returns (B, T, d_out) float32.
    """
    B, T, d_in = x.shape
    d_out = woT_b.shape[1]
    assert d_out % num_heads == 0
    head_dim = d_out // num_heads

    if block_b is None:
        # Fold enough batch into each grid step that the projection matmuls
        # see M = block_b*T >= ~128 rows (when B allows), while dividing B
        # evenly so every block is full.
        block_b = min(B, max(1, pl.cdiv(128, T)))
        while B % block_b != 0:
            block_b -= 1
    assert B % block_b == 0
    grid = (B // block_b,)

    kernel = functools.partial(_mha_kernel, num_heads=num_heads,
                               head_dim=head_dim)

    return pl.pallas_call(
        kernel,
        out_shape=jax.ShapeDtypeStruct((B, T, d_out), x.dtype),
        grid_spec=pltpu.PrefetchScalarGridSpec(
            num_scalar_prefetch=0,
            grid=grid,
            in_specs=[
                pl.BlockSpec((block_b, T, d_in), lambda b: (b, 0, 0)),
                # Grid-invariant weight blocks (constant index_map -> fetched
                # once, no re-DMA across grid steps).
                pl.BlockSpec((d_in, 3 * d_out), lambda b: (0, 0)),
                pl.BlockSpec((d_out, d_out), lambda b: (0, 0)),
                pl.BlockSpec((1, d_out), lambda b: (0, 0)),
            ],
            out_specs=pl.BlockSpec((block_b, T, d_out), lambda b: (b, 0, 0)),
        ),
        compiler_params=pltpu.CompilerParams(
            dimension_semantics=("parallel",),
            vmem_limit_bytes=48 * 1024 * 1024),   # <= 48 MiB: headroom on v7x
    )(x, wqkv, woT_b, bo2)


def _reference(x, wq, wk, wv, woT, bo, *, num_heads: int):
    """Pure-JAX f32 reference mirroring the PyTorch forward (eval mode)."""
    B, T, d_in = x.shape
    d_out = wq.shape[1]
    hd = d_out // num_heads
    q = x @ wq
    k = x @ wk
    v = x @ wv
    q = q.reshape(B, T, num_heads, hd).transpose(0, 2, 1, 3)
    k = k.reshape(B, T, num_heads, hd).transpose(0, 2, 1, 3)
    v = v.reshape(B, T, num_heads, hd).transpose(0, 2, 1, 3)
    s = jnp.einsum("bhqd,bhkd->bhqk", q, k) / (hd ** 0.5)
    mask = jnp.triu(jnp.ones((T, T), dtype=bool), k=1)
    s = jnp.where(mask, -jnp.inf, s)
    w = jax.nn.softmax(s, axis=-1)
    o = jnp.einsum("bhqk,bhkd->bhqd", w, v)
    o = o.transpose(0, 2, 1, 3).reshape(B, T, d_out)
    return o @ woT + bo


if __name__ == "__main__":
    # Small, lane-dense config: d_out multiple of 128, T multiple of 16.
    # B=16, T=16 -> block_b=8, grid=(2,), M=128 rows per projection matmul.
    B, T = 16, 16
    d_in = d_out = 128
    num_heads = 4
    dropout = 0.0  # eval-mode / p=0 -> identity

    key = jax.random.PRNGKey(0)
    kx, kq, kk, kv, ko, kb = jax.random.split(key, 6)

    x = jax.random.normal(kx, (B, T, d_in), dtype=jnp.float32)
    wq = 0.1 * jax.random.normal(kq, (d_in, d_out), dtype=jnp.float32)
    wk = 0.1 * jax.random.normal(kk, (d_in, d_out), dtype=jnp.float32)
    wv = 0.1 * jax.random.normal(kv, (d_in, d_out), dtype=jnp.float32)
    woT = 0.1 * jax.random.normal(ko, (d_out, d_out), dtype=jnp.float32)
    bo = 0.1 * jax.random.normal(kb, (d_out,), dtype=jnp.float32)

    # One-time weight prep (hoisted out of the call path).
    wqkv, woT_b, bo2 = prepare_mha_weights(wq, wk, wv, woT, bo,
                                           num_heads=num_heads)

    out = multi_head_attention(x, wqkv, woT_b, bo2, num_heads=num_heads)
    out = jax.block_until_ready(out)

    ref = _reference(x, wq, wk, wv, woT, bo, num_heads=num_heads)
    assert out.shape == (B, T, d_out)
    # bf16 MXU operands + approx reciprocal -> compare with a loose-but-
    # structure-catching tolerance against the f32 reference.
    max_err = float(jnp.max(jnp.abs(out - ref)))
    assert jnp.allclose(out, ref, atol=5e-2, rtol=5e-2), (
        f"mismatch vs reference (max abs err {max_err})")

    print("KERNEL_OK")
</pallas_src>

<mosaic_0001>
module attributes {stable_mosaic.version = 11 : i64} {
  func.func @_mha_kernel(%arg0: i32, %arg1: memref<8x16x128xf32, #tpu.memory_space<vmem>>, %arg2: memref<128x384xbf16, #tpu.memory_space<vmem>>, %arg3: memref<128x128xbf16, #tpu.memory_space<vmem>>, %arg4: memref<1x128xf32, #tpu.memory_space<vmem>>, %arg5: memref<8x16x128xf32, #tpu.memory_space<vmem>>) attributes {dimension_semantics = [#tpu.dimension_semantics<parallel>], iteration_bounds = array<i64: 2>, scalar_prefetch = 0 : i64, scratch_operands = 0 : i64, tpu.core_type = #tpu.core_type<tc>, window_params = [{transform_indices = @transform_0, window_bounds = array<i64: 8, 16, 128>}, {pipeline_mode = #tpu.pipeline_mode<synchronous>, transform_indices = @transform_1, window_bounds = array<i64: 128, 384>}, {pipeline_mode = #tpu.pipeline_mode<synchronous>, transform_indices = @transform_2, window_bounds = array<i64: 128, 128>}, {pipeline_mode = #tpu.pipeline_mode<synchronous>, transform_indices = @transform_3, window_bounds = array<i64: 1, 128>}, {transform_indices = @transform_4, window_bounds = array<i64: 8, 16, 128>}]} {
    %c0 = arith.constant 0 : index
    %c0_0 = arith.constant 0 : index
    %c0_1 = arith.constant 0 : index
    %0 = vector.load %arg1[%c0, %c0_0, %c0_1] : memref<8x16x128xf32, #tpu.memory_space<vmem>>, vector<8x16x128xf32>
    %1 = vector.shape_cast %0 : vector<8x16x128xf32> to vector<128x128xf32>
    %2 = arith.truncf %1 : vector<128x128xf32> to vector<128x128xbf16>
    %c0_2 = arith.constant 0 : index
    %c0_3 = arith.constant 0 : index
    %3 = vector.load %arg2[%c0_2, %c0_3] : memref<128x384xbf16, #tpu.memory_space<vmem>>, vector<128x384xbf16>
    %cst = arith.constant dense<0.000000e+00> : vector<128x384xf32>
    %4 = tpu.matmul %2, %3, %cst {dimension_numbers = #tpu.dot_dimension_numbers<[1], [0], [0], [1], [0, 0, 1, 1], [], []>} : vector<128x128xbf16>, vector<128x384xbf16>, vector<128x384xf32> -> vector<128x384xf32>
    %5 = vector.extract_strided_slice %4 {offsets = [0, 0], sizes = [128, 128], strides = [1, 1]} : vector<128x384xf32> to vector<128x128xf32>
    %6 = arith.truncf %5 : vector<128x128xf32> to vector<128x128xbf16>
    %7 = vector.extract_strided_slice %4 {offsets = [0, 128], sizes = [128, 128], strides = [1, 1]} : vector<128x384xf32> to vector<128x128xf32>
    %8 = arith.truncf %7 : vector<128x128xf32> to vector<128x128xbf16>
    %9 = vector.extract_strided_slice %4 {offsets = [0, 256], sizes = [128, 128], strides = [1, 1]} : vector<128x384xf32> to vector<128x128xf32>
    %10 = arith.truncf %9 : vector<128x128xf32> to vector<128x128xbf16>
    %11 = tpu.iota {dimensions = array<i32: 0>} : vector<16x16xi32>
    %12 = tpu.iota {dimensions = array<i32: 1>} : vector<16x16xi32>
    %13 = arith.cmpi sle, %12, %11 : vector<16x16xi32>
    %14 = vector.extract_strided_slice %6 {offsets = [0, 0], sizes = [16, 32], strides = [1, 1]} : vector<128x128xbf16> to vector<16x32xbf16>
    %15 = vector.extract_strided_slice %8 {offsets = [0, 0], sizes = [16, 32], strides = [1, 1]} : vector<128x128xbf16> to vector<16x32xbf16>
    %16 = vector.extract_strided_slice %10 {offsets = [0, 0], sizes = [16, 32], strides = [1, 1]} : vector<128x128xbf16> to vector<16x32xbf16>
    %cst_4 = arith.constant dense<0.000000e+00> : vector<16x16xf32>
    %17 = tpu.matmul %14, %15, %cst_4 {dimension_numbers = #tpu.dot_dimension_numbers<[1], [1], [0], [0], [0, 0, 1, 0], [], []>} : vector<16x32xbf16>, vector<16x32xbf16>, vector<16x16xf32> -> vector<16x16xf32>
    %cst_5 = arith.constant -1.000000e+30 : f32
    %18 = vector.broadcast %cst_5 : f32 to vector<16x16xf32>
    %19 = arith.select %13, %17, %18 : vector<16x16xi1>, vector<16x16xf32>
    %cst_6 = arith.constant dense<0xFF800000> : vector<16xf32>
    %20 = vector.multi_reduction <maximumf>, %19, %cst_6 [1] : vector<16x16xf32> to vector<16xf32>
    %21 = vector.shape_cast %20 : vector<16xf32> to vector<16x1xf32>
    %22 = vector.broadcast %21 : vector<16x1xf32> to vector<16x16xf32>
    %23 = arith.subf %19, %22 : vector<16x16xf32>
    %24 = math.exp %23 : vector<16x16xf32>
    %cst_7 = arith.constant dense<0.000000e+00> : vector<16xf32>
    %25 = vector.multi_reduction <add>, %24, %cst_7 [1] : vector<16x16xf32> to vector<16xf32>
    %26 = vector.shape_cast %25 : vector<16xf32> to vector<16x1xf32>
    %27 = tpu.reciprocal %26 {approx = true} : vector<16x1xf32> -> vector<16x1xf32>
    %28 = arith.truncf %24 : vector<16x16xf32> to vector<16x16xbf16>
    %cst_8 = arith.constant dense<0.000000e+00> : vector<16x32xf32>
    %29 = tpu.matmul %28, %16, %cst_8 {dimension_numbers = #tpu.dot_dimension_numbers<[1], [0], [0], [1], [0, 0, 1, 1], [], []>} : vector<16x16xbf16>, vector<16x32xbf16>, vector<16x32xf32> -> vector<16x32xf32>
    %30 = vector.broadcast %27 : vector<16x1xf32> to vector<16x32xf32>
    %31 = arith.mulf %29, %30 : vector<16x32xf32>
    %32 = arith.truncf %31 : vector<16x32xf32> to vector<16x32xbf16>
    %33 = vector.extract_strided_slice %6 {offsets = [0, 32], sizes = [16, 32], strides = [1, 1]} : vector<128x128xbf16> to vector<16x32xbf16>
    %34 = vector.extract_strided_slice %8 {offsets = [0, 32], sizes = [16, 32], strides = [1, 1]} : vector<128x128xbf16> to vector<16x32xbf16>
    %35 = vector.extract_strided_slice %10 {offsets = [0, 32], sizes = [16, 32], strides = [1, 1]} : vector<128x128xbf16> to vector<16x32xbf16>
    %cst_9 = arith.constant dense<0.000000e+00> : vector<16x16xf32>
    %36 = tpu.matmul %33, %34, %cst_9 {dimension_numbers = #tpu.dot_dimension_numbers<[1], [1], [0], [0], [0, 0, 1, 0], [], []>} : vector<16x32xbf16>, vector<16x32xbf16>, vector<16x16xf32> -> vector<16x16xf32>
    %cst_10 = arith.constant -1.000000e+30 : f32
    %37 = vector.broadcast %cst_10 : f32 to vector<16x16xf32>
    %38 = arith.select %13, %36, %37 : vector<16x16xi1>, vector<16x16xf32>
    %cst_11 = arith.constant dense<0xFF800000> : vector<16xf32>
    %39 = vector.multi_reduction <maximumf>, %38, %cst_11 [1] : vector<16x16xf32> to vector<16xf32>
    %40 = vector.shape_cast %39 : vector<16xf32> to vector<16x1xf32>
    %41 = vector.broadcast %40 : vector<16x1xf32> to vector<16x16xf32>
    %42 = arith.subf %38, %41 : vector<16x16xf32>
    %43 = math.exp %42 : vector<16x16xf32>
    %cst_12 = arith.constant dense<0.000000e+00> : vector<16xf32>
    %44 = vector.multi_reduction <add>, %43, %cst_12 [1] : vector<16x16xf32> to vector<16xf32>
    %45 = vector.shape_cast %44 : vector<16xf32> to vector<16x1xf32>
    %46 = tpu.reciprocal %45 {approx = true} : vector<16x1xf32> -> vector<16x1xf32>
    %47 = arith.truncf %43 : vector<16x16xf32> to vector<16x16xbf16>
    %cst_13 = arith.constant dense<0.000000e+00> : vector<16x32xf32>
    %48 = tpu.matmul %47, %35, %cst_13 {dimension_numbers = #tpu.dot_dimension_numbers<[1], [0], [0], [1], [0, 0, 1, 1], [], []>} : vector<16x16xbf16>, vector<16x32xbf16>, vector<16x32xf32> -> vector<16x32xf32>
    %49 = vector.broadcast %46 : vector<16x1xf32> to vector<16x32xf32>
    %50 = arith.mulf %48, %49 : vector<16x32xf32>
    %51 = arith.truncf %50 : vector<16x32xf32> to vector<16x32xbf16>
    %52 = vector.extract_strided_slice %6 {offsets = [0, 64], sizes = [16, 32], strides = [1, 1]} : vector<128x128xbf16> to vector<16x32xbf16>
    %53 = vector.extract_strided_slice %8 {offsets = [0, 64], sizes = [16, 32], strides = [1, 1]} : vector<128x128xbf16> to vector<16x32xbf16>
    %54 = vector.extract_strided_slice %10 {offsets = [0, 64], sizes = [16, 32], strides = [1, 1]} : vector<128x128xbf16> to vector<16x32xbf16>
    %cst_14 = arith.constant dense<0.000000e+00> : vector<16x16xf32>
    %55 = tpu.matmul %52, %53, %cst_14 {dimension_numbers = #tpu.dot_dimension_numbers<[1], [1], [0], [0], [0, 0, 1, 0], [], []>} : vector<16x32xbf16>, vector<16x32xbf16>, vector<16x16xf32> -> vector<16x16xf32>
    %cst_15 = arith.constant -1.000000e+30 : f32
    %56 = vector.broadcast %cst_15 : f32 to vector<16x16xf32>
    %57 = arith.select %13, %55, %56 : vector<16x16xi1>, vector<16x16xf32>
    %cst_16 = arith.constant dense<0xFF800000> : vector<16xf32>
    %58 = vector.multi_reduction <maximumf>, %57, %cst_16 [1] : vector<16x16xf32> to vector<16xf32>
    %59 = vector.shape_cast %58 : vector<16xf32> to vector<16x1xf32>
    %60 = vector.broadcast %59 : vector<16x1xf32> to vector<16x16xf32>
    %61 = arith.subf %57, %60 : vector<16x16xf32>
    %62 = math.exp %61 : vector<16x16xf32>
    %cst_17 = arith.constant dense<0.000000e+00> : vector<16xf32>
    %63 = vector.multi_reduction <add>, %62, %cst_17 [1] : vector<16x16xf32> to vector<16xf32>
    %64 = vector.shape_cast %63 : vector<16xf32> to vector<16x1xf32>
    %65 = tpu.reciprocal %64 {approx = true} : vector<16x1xf32> -> vector<16x1xf32>
    %66 = arith.truncf %62 : vector<16x16xf32> to vector<16x16xbf16>
    %cst_18 = arith.constant dense<0.000000e+00> : vector<16x32xf32>
    %67 = tpu.matmul %66, %54, %cst_18 {dimension_numbers = #tpu.dot_dimension_numbers<[1], [0], [0], [1], [0, 0, 1, 1], [], []>} : vector<16x16xbf16>, vector<16x32xbf16>, vector<16x32xf32> -> vector<16x32xf32>
    %68 = vector.broadcast %65 : vector<16x1xf32> to vector<16x32xf32>
    %69 = arith.mulf %67, %68 : vector<16x32xf32>
    %70 = arith.truncf %69 : vector<16x32xf32> to vector<16x32xbf16>
    %71 = vector.extract_strided_slice %6 {offsets = [0, 96], sizes = [16, 32], strides = [1, 1]} : vector<128x128xbf16> to vector<16x32xbf16>
    %72 = vector.extract_strided_slice %8 {offsets = [0, 96], sizes = [16, 32], strides = [1, 1]} : vector<128x128xbf16> to vector<16x32xbf16>
    %73 = vector.extract_strided_slice %10 {offsets = [0, 96], sizes = [16, 32], strides = [1, 1]} : vector<128x128xbf16> to vector<16x32xbf16>
    %cst_19 = arith.constant dense<0.000000e+00> : vector<16x16xf32>
    %74 = tpu.matmul %71, %72, %cst_19 {dimension_numbers = #tpu.dot_dimension_numbers<[1], [1], [0], [0], [0, 0, 1, 0], [], []>} : vector<16x32xbf16>, vector<16x32xbf16>, vector<16x16xf32> -> vector<16x16xf32>
    %cst_20 = arith.constant -1.000000e+30 : f32
    %75 = vector.broadcast %cst_20 : f32 to vector<16x16xf32>
    %76 = arith.select %13, %74, %75 : vector<16x16xi1>, vector<16x16xf32>
    %cst_21 = arith.constant dense<0xFF800000> : vector<16xf32>
    %77 = vector.multi_reduction <maximumf>, %76, %cst_21 [1] : vector<16x16xf32> to vector<16xf32>
    %78 = vector.shape_cast %77 : vector<16xf32> to vector<16x1xf32>
    %79 = vector.broadcast %78 : vector<16x1xf32> to vector<16x16xf32>
    %80 = arith.subf %76, %79 : vector<16x16xf32>
    %81 = math.exp %80 : vector<16x16xf32>
    %cst_22 = arith.constant dense<0.000000e+00> : vector<16xf32>
    %82 = vector.multi_reduction <add>, %81, %cst_22 [1] : vector<16x16xf32> to vector<16xf32>
    %83 = vector.shape_cast %82 : vector<16xf32> to vector<16x1xf32>
    %84 = tpu.reciprocal %83 {approx = true} : vector<16x1xf32> -> vector<16x1xf32>
    %85 = arith.truncf %81 : vector<16x16xf32> to vector<16x16xbf16>
    %cst_23 = arith.constant dense<0.000000e+00> : vector<16x32xf32>
    %86 = tpu.matmul %85, %73, %cst_23 {dimension_numbers = #tpu.dot_dimension_numbers<[1], [0], [0], [1], [0, 0, 1, 1], [], []>} : vector<16x16xbf16>, vector<16x32xbf16>, vector<16x32xf32> -> vector<16x32xf32>
    %87 = vector.broadcast %84 : vector<16x1xf32> to vector<16x32xf32>
    %88 = arith.mulf %86, %87 : vector<16x32xf32>
    %89 = arith.truncf %88 : vector<16x32xf32> to vector<16x32xbf16>
    %90 = tpu.concatenate %32, %51, %70, %89 in 1 : vector<16x32xbf16>, vector<16x32xbf16>, vector<16x32xbf16>, vector<16x32xbf16> -> vector<16x128xbf16>
    %91 = vector.extract_strided_slice %6 {offsets = [16, 0], sizes = [16, 32], strides = [1, 1]} : vector<128x128xbf16> to vector<16x32xbf16>
    %92 = vector.extract_strided_slice %8 {offsets = [16, 0], sizes = [16, 32], strides = [1, 1]} : vector<128x128xbf16> to vector<16x32xbf16>
    %93 = vector.extract_strided_slice %10 {offsets = [16, 0], sizes = [16, 32], strides = [1, 1]} : vector<128x128xbf16> to vector<16x32xbf16>
    %cst_24 = arith.constant dense<0.000000e+00> : vector<16x16xf32>
    %94 = tpu.matmul %91, %92, %cst_24 {dimension_numbers = #tpu.dot_dimension_numbers<[1], [1], [0], [0], [0, 0, 1, 0], [], []>} : vector<16x32xbf16>, vector<16x32xbf16>, vector<16x16xf32> -> vector<16x16xf32>
    %cst_25 = arith.constant -1.000000e+30 : f32
    %95 = vector.broadcast %cst_25 : f32 to vector<16x16xf32>
    %96 = arith.select %13, %94, %95 : vector<16x16xi1>, vector<16x16xf32>
    %cst_26 = arith.constant dense<0xFF800000> : vector<16xf32>
    %97 = vector.multi_reduction <maximumf>, %96, %cst_26 [1] : vector<16x16xf32> to vector<16xf32>
    %98 = vector.shape_cast %97 : vector<16xf32> to vector<16x1xf32>
    %99 = vector.broadcast %98 : vector<16x1xf32> to vector<16x16xf32>
    %100 = arith.subf %96, %99 : vector<16x16xf32>
    %101 = math.exp %100 : vector<16x16xf32>
    %cst_27 = arith.constant dense<0.000000e+00> : vector<16xf32>
    %102 = vector.multi_reduction <add>, %101, %cst_27 [1] : vector<16x16xf32> to vector<16xf32>
    %103 = vector.shape_cast %102 : vector<16xf32> to vector<16x1xf32>
    %104 = tpu.reciprocal %103 {approx = true} : vector<16x1xf32> -> vector<16x1xf32>
    %105 = arith.truncf %101 : vector<16x16xf32> to vector<16x16xbf16>
    %cst_28 = arith.constant dense<0.000000e+00> : vector<16x32xf32>
    %106 = tpu.matmul %105, %93, %cst_28 {dimension_numbers = #tpu.dot_dimension_numbers<[1], [0], [0], [1], [0, 0, 1, 1], [], []>} : vector<16x16xbf16>, vector<16x32xbf16>, vector<16x32xf32> -> vector<16x32xf32>
    %107 = vector.broadcast %104 : vector<16x1xf32> to vector<16x32xf32>
    %108 = arith.mulf %106, %107 : vector<16x32xf32>
    %109 = arith.truncf %108 : vector<16x32xf32> to vector<16x32xbf16>
    %110 = vector.extract_strided_slice %6 {offsets = [16, 32], sizes = [16, 32], strides = [1, 1]} : vector<128x128xbf16> to vector<16x32xbf16>
    %111 = vector.extract_strided_slice %8 {offsets = [16, 32], sizes = [16, 32], strides = [1, 1]} : vector<128x128xbf16> to vector<16x32xbf16>
    %112 = vector.extract_strided_slice %10 {offsets = [16, 32], sizes = [16, 32], strides = [1, 1]} : vector<128x128xbf16> to vector<16x32xbf16>
    %cst_29 = arith.constant dense<0.000000e+00> : vector<16x16xf32>
    %113 = tpu.matmul %110, %111, %cst_29 {dimension_numbers = #tpu.dot_dimension_numbers<[1], [1], [0], [0], [0, 0, 1, 0], [], []>} : vector<16x32xbf16>, vector<16x32xbf16>, vector<16x16xf32> -> vector<16x16xf32>
    %cst_30 = arith.constant -1.000000e+30 : f32
    %114 = vector.broadcast %cst_30 : f32 to vector<16x16xf32>
    %115 = arith.select %13, %113, %114 : vector<16x16xi1>, vector<16x16xf32>
    %cst_31 = arith.constant dense<0xFF800000> : vector<16xf32>
    %116 = vector.multi_reduction <maximumf>, %115, %cst_31 [1] : vector<16x16xf32> to vector<16xf32>
    %117 = vector.shape_cast %116 : vector<16xf32> to vector<16x1xf32>
    %118 = vector.broadcast %117 : vector<16x1xf32> to vector<16x16xf32>
    %119 = arith.subf %115, %118 : vector<16x16xf32>
    %120 = math.exp %119 : vector<16x16xf32>
    %cst_32 = arith.constant dense<0.000000e+00> : vector<16xf32>
    %121 = vector.multi_reduction <add>, %120, %cst_32 [1] : vector<16x16xf32> to vector<16xf32>
    %122 = vector.shape_cast %121 : vector<16xf32> to vector<16x1xf32>
    %123 = tpu.reciprocal %122 {approx = true} : vector<16x1xf32> -> vector<16x1xf32>
    %124 = arith.truncf %120 : vector<16x16xf32> to vector<16x16xbf16>
    %cst_33 = arith.constant dense<0.000000e+00> : vector<16x32xf32>
    %125 = tpu.matmul %124, %112, %cst_33 {dimension_numbers = #tpu.dot_dimension_numbers<[1], [0], [0], [1], [0, 0, 1, 1], [], []>} : vector<16x16xbf16>, vector<16x32xbf16>, vector<16x32xf32> -> vector<16x32xf32>
    %126 = vector.broadcast %123 : vector<16x1xf32> to vector<16x32xf32>
    %127 = arith.mulf %125, %126 : vector<16x32xf32>
    %128 = arith.truncf %127 : vector<16x32xf32> to vector<16x32xbf16>
    %129 = vector.extract_strided_slice %6 {offsets = [16, 64], sizes = [16, 32], strides = [1, 1]} : vector<128x128xbf16> to vector<16x32xbf16>
    %130 = vector.extract_strided_slice %8 {offsets = [16, 64], sizes = [16, 32], strides = [1, 1]} : vector<128x128xbf16> to vector<16x32xbf16>
    %131 = vector.extract_strided_slice %10 {offsets = [16, 64], sizes = [16, 32], strides = [1, 1]} : vector<128x128xbf16> to vector<16x32xbf16>
    %cst_34 = arith.constant dense<0.000000e+00> : vector<16x16xf32>
    %132 = tpu.matmul %129, %130, %cst_34 {dimension_numbers = #tpu.dot_dimension_numbers<[1], [1], [0], [0], [0, 0, 1, 0], [], []>} : vector<16x32xbf16>, vector<16x32xbf16>, vector<16x16xf32> -> vector<16x16xf32>
    %cst_35 = arith.constant -1.000000e+30 : f32
    %133 = vector.broadcast %cst_35 : f32 to vector<16x16xf32>
    %134 = arith.select %13, %132, %133 : vector<16x16xi1>, vector<16x16xf32>
    %cst_36 = arith.constant dense<0xFF800000> : vector<16xf32>
    %135 = vector.multi_reduction <maximumf>, %134, %cst_36 [1] : vector<16x16xf32> to vector<16xf32>
    %136 = vector.shape_cast %135 : vector<16xf32> to vector<16x1xf32>
    %137 = vector.broadcast %136 : vector<16x1xf32> to vector<16x16xf32>
    %138 = arith.subf %134, %137 : vector<16x16xf32>
    %139 = math.exp %138 : vector<16x16xf32>
    %cst_37 = arith.constant dense<0.000000e+00> : vector<16xf32>
    %140 = vector.multi_reduction <add>, %139, %cst_37 [1] : vector<16x16xf32> to vector<16xf32>
    %141 = vector.shape_cast %140 : vector<16xf32> to vector<16x1xf32>
    %142 = tpu.reciprocal %141 {approx = true} : vector<16x1xf32> -> vector<16x1xf32>
    %143 = arith.truncf %139 : vector<16x16xf32> to vector<16x16xbf16>
    %cst_38 = arith.constant dense<0.000000e+00> : vector<16x32xf32>
    %144 = tpu.matmul %143, %131, %cst_38 {dimension_numbers = #tpu.dot_dimension_numbers<[1], [0], [0], [1], [0, 0, 1, 1], [], []>} : vector<16x16xbf16>, vector<16x32xbf16>, vector<16x32xf32> -> vector<16x32xf32>
    %145 = vector.broadcast %142 : vector<16x1xf32> to vector<16x32xf32>
    %146 = arith.mulf %144, %145 : vector<16x32xf32>
    %147 = arith.truncf %146 : vector<16x32xf32> to vector<16x32xbf16>
    %148 = vector.extract_strided_slice %6 {offsets = [16, 96], sizes = [16, 32], strides = [1, 1]} : vector<128x128xbf16> to vector<16x32xbf16>
    %149 = vector.extract_strided_slice %8 {offsets = [16, 96], sizes = [16, 32], strides = [1, 1]} : vector<128x128xbf16> to vector<16x32xbf16>
    %150 = vector.extract_strided_slice %10 {offsets = [16, 96], sizes = [16, 32], strides = [1, 1]} : vector<128x128xbf16> to vector<16x32xbf16>
    %cst_39 = arith.constant dense<0.000000e+00> : vector<16x16xf32>
    %151 = tpu.matmul %148, %149, %cst_39 {dimension_numbers = #tpu.dot_dimension_numbers<[1], [1], [0], [0], [0, 0, 1, 0], [], []>} : vector<16x32xbf16>, vector<16x32xbf16>, vector<16x16xf32> -> vector<16x16xf32>
    %cst_40 = arith.constant -1.000000e+30 : f32
    %152 = vector.broadcast %cst_40 : f32 to vector<16x16xf32>
    %153 = arith.select %13, %151, %152 : vector<16x16xi1>, vector<16x16xf32>
    %cst_41 = arith.constant dense<0xFF800000> : vector<16xf32>
    %154 = vector.multi_reduction <maximumf>, %153, %cst_41 [1] : vector<16x16xf32> to vector<16xf32>
    %155 = vector.shape_cast %154 : vector<16xf32> to vector<16x1xf32>
    %156 = vector.broadcast %155 : vector<16x1xf32> to vector<16x16xf32>
    %157 = arith.subf %153, %156 : vector<16x16xf32>
    %158 = math.exp %157 : vector<16x16xf32>
    %cst_42 = arith.constant dense<0.000000e+00> : vector<16xf32>
    %159 = vector.multi_reduction <add>, %158, %cst_42 [1] : vector<16x16xf32> to vector<16xf32>
    %160 = vector.shape_cast %159 : vector<16xf32> to vector<16x1xf32>
    %161 = tpu.reciprocal %160 {approx = true} : vector<16x1xf32> -> vector<16x1xf32>
    %162 = arith.truncf %158 : vector<16x16xf32> to vector<16x16xbf16>
    %cst_43 = arith.constant dense<0.000000e+00> : vector<16x32xf32>
    %163 = tpu.matmul %162, %150, %cst_43 {dimension_numbers = #tpu.dot_dimension_numbers<[1], [0], [0], [1], [0, 0, 1, 1], [], []>} : vector<16x16xbf16>, vector<16x32xbf16>, vector<16x32xf32> -> vector<16x32xf32>
    %164 = vector.broadcast %161 : vector<16x1xf32> to vector<16x32xf32>
    %165 = arith.mulf %163, %164 : vector<16x32xf32>
    %166 = arith.truncf %165 : vector<16x32xf32> to vector<16x32xbf16>
    %167 = tpu.concatenate %109, %128, %147, %166 in 1 : vector<16x32xbf16>, vector<16x32xbf16>, vector<16x32xbf16>, vector<16x32xbf16> -> vector<16x128xbf16>
    %168 = vector.extract_strided_slice %6 {offsets = [32, 0], sizes = [16, 32], strides = [1, 1]} : vector<128x128xbf16> to vector<16x32xbf16>
    %169 = vector.extract_strided_slice %8 {offsets = [32, 0], sizes = [16, 32], strides = [1, 1]} : vector<128x128xbf16> to vector<16x32xbf16>
    %170 = vector.extract_strided_slice %10 {offsets = [32, 0], sizes = [16, 32], strides = [1, 1]} : vector<128x128xbf16> to vector<16x32xbf16>
    %cst_44 = arith.constant dense<0.000000e+00> : vector<16x16xf32>
    %171 = tpu.matmul %168, %169, %cst_44 {dimension_numbers = #tpu.dot_dimension_numbers<[1], [1], [0], [0], [0, 0, 1, 0], [], []>} : vector<16x32xbf16>, vector<16x32xbf16>, vector<16x16xf32> -> vector<16x16xf32>
    %cst_45 = arith.constant -1.000000e+30 : f32
    %172 = vector.broadcast %cst_45 : f32 to vector<16x16xf32>
    %173 = arith.select %13, %171, %172 : vector<16x16xi1>, vector<16x16xf32>
    %cst_46 = arith.constant dense<0xFF800000> : vector<16xf32>
    %174 = vector.multi_reduction <maximumf>, %173, %cst_46 [1] : vector<16x16xf32> to vector<16xf32>
    %175 = vector.shape_cast %174 : vector<16xf32> to vector<16x1xf32>
    %176 = vector.broadcast %175 : vector<16x1xf32> to vector<16x16xf32>
    %177 = arith.subf %173, %176 : vector<16x16xf32>
    %178 = math.exp %177 : vector<16x16xf32>
    %cst_47 = arith.constant dense<0.000000e+00> : vector<16xf32>
    %179 = vector.multi_reduction <add>, %178, %cst_47 [1] : vector<16x16xf32> to vector<16xf32>
    %180 = vector.shape_cast %179 : vector<16xf32> to vector<16x1xf32>
    %181 = tpu.reciprocal %180 {approx = true} : vector<16x1xf32> -> vector<16x1xf32>
    %182 = arith.truncf %178 : vector<16x16xf32> to vector<16x16xbf16>
    %cst_48 = arith.constant dense<0.000000e+00> : vector<16x32xf32>
    %183 = tpu.matmul %182, %170, %cst_48 {dimension_numbers = #tpu.dot_dimension_numbers<[1], [0], [0], [1], [0, 0, 1, 1], [], []>} : vector<16x16xbf16>, vector<16x32xbf16>, vector<16x32xf32> -> vector<16x32xf32>
    %184 = vector.broadcast %181 : vector<16x1xf32> to vector<16x32xf32>
    %185 = arith.mulf %183, %184 : vector<16x32xf32>
    %186 = arith.truncf %185 : vector<16x32xf32> to vector<16x32xbf16>
    %187 = vector.extract_strided_slice %6 {offsets = [32, 32], sizes = [16, 32], strides = [1, 1]} : vector<128x128xbf16> to vector<16x32xbf16>
    %188 = vector.extract_strided_slice %8 {offsets = [32, 32], sizes = [16, 32], strides = [1, 1]} : vector<128x128xbf16> to vector<16x32xbf16>
    %189 = vector.extract_strided_slice %10 {offsets = [32, 32], sizes = [16, 32], strides = [1, 1]} : vector<128x128xbf16> to vector<16x32xbf16>
    %cst_49 = arith.constant dense<0.000000e+00> : vector<16x16xf32>
    %190 = tpu.matmul %187, %188, %cst_49 {dimension_numbers = #tpu.dot_dimension_numbers<[1], [1], [0], [0], [0, 0, 1, 0], [], []>} : vector<16x32xbf16>, vector<16x32xbf16>, vector<16x16xf32> -> vector<16x16xf32>
    %cst_50 = arith.constant -1.000000e+30 : f32
    %191 = vector.broadcast %cst_50 : f32 to vector<16x16xf32>
    %192 = arith.select %13, %190, %191 : vector<16x16xi1>, vector<16x16xf32>
    %cst_51 = arith.constant dense<0xFF800000> : vector<16xf32>
    %193 = vector.multi_reduction <maximumf>, %192, %cst_51 [1] : vector<16x16xf32> to vector<16xf32>
    %194 = vector.shape_cast %193 : vector<16xf32> to vector<16x1xf32>
    %195 = vector.broadcast %194 : vector<16x1xf32> to vector<16x16xf32>
    %196 = arith.subf %192, %195 : vector<16x16xf32>
    %197 = math.exp %196 : vector<16x16xf32>
    %cst_52 = arith.constant dense<0.000000e+00> : vector<16xf32>
    %198 = vector.multi_reduction <add>, %197, %cst_52 [1] : vector<16x16xf32> to vector<16xf32>
    %199 = vector.shape_cast %198 : vector<16xf32> to vector<16x1xf32>
    %200 = tpu.reciprocal %199 {approx = true} : vector<16x1xf32> -> vector<16x1xf32>
    %201 = arith.truncf %197 : vector<16x16xf32> to vector<16x16xbf16>
    %cst_53 = arith.constant dense<0.000000e+00> : vector<16x32xf32>
    %202 = tpu.matmul %201, %189, %cst_53 {dimension_numbers = #tpu.dot_dimension_numbers<[1], [0], [0], [1], [0, 0, 1, 1], [], []>} : vector<16x16xbf16>, vector<16x32xbf16>, vector<16x32xf32> -> vector<16x32xf32>
    %203 = vector.broadcast %200 : vector<16x1xf32> to vector<16x32xf32>
    %204 = arith.mulf %202, %203 : vector<16x32xf32>
    %205 = arith.truncf %204 : vector<16x32xf32> to vector<16x32xbf16>
    %206 = vector.extract_strided_slice %6 {offsets = [32, 64], sizes = [16, 32], strides = [1, 1]} : vector<128x128xbf16> to vector<16x32xbf16>
    %207 = vector.extract_strided_slice %8 {offsets = [32, 64], sizes = [16, 32], strides = [1, 1]} : vector<128x128xbf16> to vector<16x32xbf16>
    %208 = vector.extract_strided_slice %10 {offsets = [32, 64], sizes = [16, 32], strides = [1, 1]} : vector<128x128xbf16> to vector<16x32xbf16>
    %cst_54 = arith.constant dense<0.000000e+00> : vector<16x16xf32>
    %209 = tpu.matmul %206, %207, %cst_54 {dimension_numbers = #tpu.dot_dimension_numbers<[1], [1], [0], [0], [0, 0, 1, 0], [], []>} : vector<16x32xbf16>, vector<16x32xbf16>, vector<16x16xf32> -> vector<16x16xf32>
    %cst_55 = arith.constant -1.000000e+30 : f32
    %210 = vector.broadcast %cst_55 : f32 to vector<16x16xf32>
    %211 = arith.select %13, %209, %210 : vector<16x16xi1>, vector<16x16xf32>
    %cst_56 = arith.constant dense<0xFF800000> : vector<16xf32>
    %212 = vector.multi_reduction <maximumf>, %211, %cst_56 [1] : vector<16x16xf32> to vector<16xf32>
    %213 = vector.shape_cast %212 : vector<16xf32> to vector<16x1xf32>
    %214 = vector.broadcast %213 : vector<16x1xf32> to vector<16x16xf32>
    %215 = arith.subf %211, %214 : vector<16x16xf32>
    %216 = math.exp %215 : vector<16x16xf32>
    %cst_57 = arith.constant dense<0.000000e+00> : vector<16xf32>
    %217 = vector.multi_reduction <add>, %216, %cst_57 [1] : vector<16x16xf32> to vector<16xf32>
    %218 = vector.shape_cast %217 : vector<16xf32> to vector<16x1xf32>
    %219 = tpu.reciprocal %218 {approx = true} : vector<16x1xf32> -> vector<16x1xf32>
    %220 = arith.truncf %216 : vector<16x16xf32> to vector<16x16xbf16>
    %cst_58 = arith.constant dense<0.000000e+00> : vector<16x32xf32>
    %221 = tpu.matmul %220, %208, %cst_58 {dimension_numbers = #tpu.dot_dimension_numbers<[1], [0], [0], [1], [0, 0, 1, 1], [], []>} : vector<16x16xbf16>, vector<16x32xbf16>, vector<16x32xf32> -> vector<16x32xf32>
    %222 = vector.broadcast %219 : vector<16x1xf32> to vector<16x32xf32>
    %223 = arith.mulf %221, %222 : vector<16x32xf32>
    %224 = arith.truncf %223 : vector<16x32xf32> to vector<16x32xbf16>
    %225 = vector.extract_strided_slice %6 {offsets = [32, 96], sizes = [16, 32], strides = [1, 1]} : vector<128x128xbf16> to vector<16x32xbf16>
    %226 = vector.extract_strided_slice %8 {offsets = [32, 96], sizes = [16, 32], strides = [1, 1]} : vector<128x128xbf16> to vector<16x32xbf16>
    %227 = vector.extract_strided_slice %10 {offsets = [32, 96], sizes = [16, 32], strides = [1, 1]} : vector<128x128xbf16> to vector<16x32xbf16>
    %cst_59 = arith.constant dense<0.000000e+00> : vector<16x16xf32>
    %228 = tpu.matmul %225, %226, %cst_59 {dimension_numbers = #tpu.dot_dimension_numbers<[1], [1], [0], [0], [0, 0, 1, 0], [], []>} : vector<16x32xbf16>, vector<16x32xbf16>, vector<16x16xf32> -> vector<16x16xf32>
    %cst_60 = arith.constant -1.000000e+30 : f32
    %229 = vector.broadcast %cst_60 : f32 to vector<16x16xf32>
    %230 = arith.select %13, %228, %229 : vector<16x16xi1>, vector<16x16xf32>
    %cst_61 = arith.constant dense<0xFF800000> : vector<16xf32>
    %231 = vector.multi_reduction <maximumf>, %230, %cst_61 [1] : vector<16x16xf32> to vector<16xf32>
    %232 = vector.shape_cast %231 : vector<16xf32> to vector<16x1xf32>
    %233 = vector.broadcast %232 : vector<16x1xf32> to vector<16x16xf32>
    %234 = arith.subf %230, %233 : vector<16x16xf32>
    %235 = math.exp %234 : vector<16x16xf32>
    %cst_62 = arith.constant dense<0.000000e+00> : vector<16xf32>
    %236 = vector.multi_reduction <add>, %235, %cst_62 [1] : vector<16x16xf32> to vector<16xf32>
    %237 = vector.shape_cast %236 : vector<16xf32> to vector<16x1xf32>
    %238 = tpu.reciprocal %237 {approx = true} : vector<16x1xf32> -> vector<16x1xf32>
    %239 = arith.truncf %235 : vector<16x16xf32> to vector<16x16xbf16>
    %cst_63 = arith.constant dense<0.000000e+00> : vector<16x32xf32>
    %240 = tpu.matmul %239, %227, %cst_63 {dimension_numbers = #tpu.dot_dimension_numbers<[1], [0], [0], [1], [0, 0, 1, 1], [], []>} : vector<16x16xbf16>, vector<16x32xbf16>, vector<16x32xf32> -> vector<16x32xf32>
    %241 = vector.broadcast %238 : vector<16x1xf32> to vector<16x32xf32>
    %242 = arith.mulf %240, %241 : vector<16x32xf32>
    %243 = arith.truncf %242 : vector<16x32xf32> to vector<16x32xbf16>
    %244 = tpu.concatenate %186, %205, %224, %243 in 1 : vector<16x32xbf16>, vector<16x32xbf16>, vector<16x32xbf16>, vector<16x32xbf16> -> vector<16x128xbf16>
    %245 = vector.extract_strided_slice %6 {offsets = [48, 0], sizes = [16, 32], strides = [1, 1]} : vector<128x128xbf16> to vector<16x32xbf16>
    %246 = vector.extract_strided_slice %8 {offsets = [48, 0], sizes = [16, 32], strides = [1, 1]} : vector<128x128xbf16> to vector<16x32xbf16>
    %247 = vector.extract_strided_slice %10 {offsets = [48, 0], sizes = [16, 32], strides = [1, 1]} : vector<128x128xbf16> to vector<16x32xbf16>
    %cst_64 = arith.constant dense<0.000000e+00> : vector<16x16xf32>
    %248 = tpu.matmul %245, %246, %cst_64 {dimension_numbers = #tpu.dot_dimension_numbers<[1], [1], [0], [0], [0, 0, 1, 0], [], []>} : vector<16x32xbf16>, vector<16x32xbf16>, vector<16x16xf32> -> vector<16x16xf32>
    %cst_65 = arith.constant -1.000000e+30 : f32
    %249 = vector.broadcast %cst_65 : f32 to vector<16x16xf32>
    %250 = arith.select %13, %248, %249 : vector<16x16xi1>, vector<16x16xf32>
    %cst_66 = arith.constant dense<0xFF800000> : vector<16xf32>
    %251 = vector.multi_reduction <maximumf>, %250, %cst_66 [1] : vector<16x16xf32> to vector<16xf32>
    %252 = vector.shape_cast %251 : vector<16xf32> to vector<16x1xf32>
    %253 = vector.broadcast %252 : vector<16x1xf32> to vector<16x16xf32>
    %254 = arith.subf %250, %253 : vector<16x16xf32>
    %255 = math.exp %254 : vector<16x16xf32>
    %cst_67 = arith.constant dense<0.000000e+00> : vector<16xf32>
    %256 = vector.multi_reduction <add>, %255, %cst_67 [1] : vector<16x16xf32> to vector<16xf32>
    %257 = vector.shape_cast %256 : vector<16xf32> to vector<16x1xf32>
    %258 = tpu.reciprocal %257 {approx = true} : vector<16x1xf32> -> vector<16x1xf32>
    %259 = arith.truncf %255 : vector<16x16xf32> to vector<16x16xbf16>
    %cst_68 = arith.constant dense<0.000000e+00> : vector<16x32xf32>
    %260 = tpu.matmul %259, %247, %cst_68 {dimension_numbers = #tpu.dot_dimension_numbers<[1], [0], [0], [1], [0, 0, 1, 1], [], []>} : vector<16x16xbf16>, vector<16x32xbf16>, vector<16x32xf32> -> vector<16x32xf32>
    %261 = vector.broadcast %258 : vector<16x1xf32> to vector<16x32xf32>
    %262 = arith.mulf %260, %261 : vector<16x32xf32>
    %263 = arith.truncf %262 : vector<16x32xf32> to vector<16x32xbf16>
    %264 = vector.extract_strided_slice %6 {offsets = [48, 32], sizes = [16, 32], strides = [1, 1]} : vector<128x128xbf16> to vector<16x32xbf16>
    %265 = vector.extract_strided_slice %8 {offsets = [48, 32], sizes = [16, 32], strides = [1, 1]} : vector<128x128xbf16> to vector<16x32xbf16>
    %266 = vector.extract_strided_slice %10 {offsets = [48, 32], sizes = [16, 32], strides = [1, 1]} : vector<128x128xbf16> to vector<16x32xbf16>
    %cst_69 = arith.constant dense<0.000000e+00> : vector<16x16xf32>
    %267 = tpu.matmul %264, %265, %cst_69 {dimension_numbers = #tpu.dot_dimension_numbers<[1], [1], [0], [0], [0, 0, 1, 0], [], []>} : vector<16x32xbf16>, vector<16x32xbf16>, vector<16x16xf32> -> vector<16x16xf32>
    %cst_70 = arith.constant -1.000000e+30 : f32
    %268 = vector.broadcast %cst_70 : f32 to vector<16x16xf32>
    %269 = arith.select %13, %267, %268 : vector<16x16xi1>, vector<16x16xf32>
    %cst_71 = arith.constant dense<0xFF800000> : vector<16xf32>
    %270 = vector.multi_reduction <maximumf>, %269, %cst_71 [1] : vector<16x16xf32> to vector<16xf32>
    %271 = vector.shape_cast %270 : vector<16xf32> to vector<16x1xf32>
    %272 = vector.broadcast %271 : vector<16x1xf32> to vector<16x16xf32>
    %273 = arith.subf %269, %272 : vector<16x16xf32>
    %274 = math.exp %273 : vector<16x16xf32>
    %cst_72 = arith.constant dense<0.000000e+00> : vector<16xf32>
    %275 = vector.multi_reduction <add>, %274, %cst_72 [1] : vector<16x16xf32> to vector<16xf32>
    %276 = vector.shape_cast %275 : vector<16xf32> to vector<16x1xf32>
    %277 = tpu.reciprocal %276 {approx = true} : vector<16x1xf32> -> vector<16x1xf32>
    %278 = arith.truncf %274 : vector<16x16xf32> to vector<16x16xbf16>
    %cst_73 = arith.constant dense<0.000000e+00> : vector<16x32xf32>
    %279 = tpu.matmul %278, %266, %cst_73 {dimension_numbers = #tpu.dot_dimension_numbers<[1], [0], [0], [1], [0, 0, 1, 1], [], []>} : vector<16x16xbf16>, vector<16x32xbf16>, vector<16x32xf32> -> vector<16x32xf32>
    %280 = vector.broadcast %277 : vector<16x1xf32> to vector<16x32xf32>
    %281 = arith.mulf %279, %280 : vector<16x32xf32>
    %282 = arith.truncf %281 : vector<16x32xf32> to vector<16x32xbf16>
    %283 = vector.extract_strided_slice %6 {offsets = [48, 64], sizes = [16, 32], strides = [1, 1]} : vector<128x128xbf16> to vector<16x32xbf16>
    %284 = vector.extract_strided_slice %8 {offsets = [48, 64], sizes = [16, 32], strides = [1, 1]} : vector<128x128xbf16> to vector<16x32xbf16>
    %285 = vector.extract_strided_slice %10 {offsets = [48, 64], sizes = [16, 32], strides = [1, 1]} : vector<128x128xbf16> to vector<16x32xbf16>
    %cst_74 = arith.constant dense<0.000000e+00> : vector<16x16xf32>
    %286 = tpu.matmul %283, %284, %cst_74 {dimension_numbers = #tpu.dot_dimension_numbers<[1], [1], [0], [0], [0, 0, 1, 0], [], []>} : vector<16x32xbf16>, vector<16x32xbf16>, vector<16x16xf32> -> vector<16x16xf32>
    %cst_75 = arith.constant -1.000000e+30 : f32
    %287 = vector.broadcast %cst_75 : f32 to vector<16x16xf32>
    %288 = arith.select %13, %286, %287 : vector<16x16xi1>, vector<16x16xf32>
    %cst_76 = arith.constant dense<0xFF800000> : vector<16xf32>
    %289 = vector.multi_reduction <maximumf>, %288, %cst_76 [1] : vector<16x16xf32> to vector<16xf32>
    %290 = vector.shape_cast %289 : vector<16xf32> to vector<16x1xf32>
    %291 = vector.broadcast %290 : vector<16x1xf32> to vector<16x16xf32>
    %292 = arith.subf %288, %291 : vector<16x16xf32>
    %293 = math.exp %292 : vector<16x16xf32>
    %cst_77 = arith.constant dense<0.000000e+00> : vector<16xf32>
    %294 = vector.multi_reduction <add>, %293, %cst_77 [1] : vector<16x16xf32> to vector<16xf32>
    %295 = vector.shape_cast %294 : vector<16xf32> to vector<16x1xf32>
    %296 = tpu.reciprocal %295 {approx = true} : vector<16x1xf32> -> vector<16x1xf32>
    %297 = arith.truncf %293 : vector<16x16xf32> to vector<16x16xbf16>
    %cst_78 = arith.constant dense<0.000000e+00> : vector<16x32xf32>
    %298 = tpu.matmul %297, %285, %cst_78 {dimension_numbers = #tpu.dot_dimension_numbers<[1], [0], [0], [1], [0, 0, 1, 1], [], []>} : vector<16x16xbf16>, vector<16x32xbf16>, vector<16x32xf32> -> vector<16x32xf32>
    %299 = vector.broadcast %296 : vector<16x1xf32> to vector<16x32xf32>
    %300 = arith.mulf %298, %299 : vector<16x32xf32>
    %301 = arith.truncf %300 : vector<16x32xf32> to vector<16x32xbf16>
    %302 = vector.extract_strided_slice %6 {offsets = [48, 96], sizes = [16, 32], strides = [1, 1]} : vector<128x128xbf16> to vector<16x32xbf16>
    %303 = vector.extract_strided_slice %8 {offsets = [48, 96], sizes = [16, 32], strides = [1, 1]} : vector<128x128xbf16> to vector<16x32xbf16>
    %304 = vector.extract_strided_slice %10 {offsets = [48, 96], sizes = [16, 32], strides = [1, 1]} : vector<128x128xbf16> to vector<16x32xbf16>
    %cst_79 = arith.constant dense<0.000000e+00> : vector<16x16xf32>
    %305 = tpu.matmul %302, %303, %cst_79 {dimension_numbers = #tpu.dot_dimension_numbers<[1], [1], [0], [0], [0, 0, 1, 0], [], []>} : vector<16x32xbf16>, vector<16x32xbf16>, vector<16x16xf32> -> vector<16x16xf32>
    %cst_80 = arith.constant -1.000000e+30 : f32
    %306 = vector.broadcast %cst_80 : f32 to vector<16x16xf32>
    %307 = arith.select %13, %305, %306 : vector<16x16xi1>, vector<16x16xf32>
    %cst_81 = arith.constant dense<0xFF800000> : vector<16xf32>
    %308 = vector.multi_reduction <maximumf>, %307, %cst_81 [1] : vector<16x16xf32> to vector<16xf32>
    %309 = vector.shape_cast %308 : vector<16xf32> to vector<16x1xf32>
    %310 = vector.broadcast %309 : vector<16x1xf32> to vector<16x16xf32>
    %311 = arith.subf %307, %310 : vector<16x16xf32>
    %312 = math.exp %311 : vector<16x16xf32>
    %cst_82 = arith.constant dense<0.000000e+00> : vector<16xf32>
    %313 = vector.multi_reduction <add>, %312, %cst_82 [1] : vector<16x16xf32> to vector<16xf32>
    %314 = vector.shape_cast %313 : vector<16xf32> to vector<16x1xf32>
    %315 = tpu.reciprocal %314 {approx = true} : vector<16x1xf32> -> vector<16x1xf32>
    %316 = arith.truncf %312 : vector<16x16xf32> to vector<16x16xbf16>
    %cst_83 = arith.constant dense<0.000000e+00> : vector<16x32xf32>
    %317 = tpu.matmul %316, %304, %cst_83 {dimension_numbers = #tpu.dot_dimension_numbers<[1], [0], [0], [1], [0, 0, 1, 1], [], []>} : vector<16x16xbf16>, vector<16x32xbf16>, vector<16x32xf32> -> vector<16x32xf32>
    %318 = vector.broadcast %315 : vector<16x1xf32> to vector<16x32xf32>
    %319 = arith.mulf %317, %318 : vector<16x32xf32>
    %320 = arith.truncf %319 : vector<16x32xf32> to vector<16x32xbf16>
    %321 = tpu.concatenate %263, %282, %301, %320 in 1 : vector<16x32xbf16>, vector<16x32xbf16>, vector<16x32xbf16>, vector<16x32xbf16> -> vector<16x128xbf16>
    %322 = vector.extract_strided_slice %6 {offsets = [64, 0], sizes = [16, 32], strides = [1, 1]} : vector<128x128xbf16> to vector<16x32xbf16>
    %323 = vector.extract_strided_slice %8 {offsets = [64, 0], sizes = [16, 32], strides = [1, 1]} : vector<128x128xbf16> to vector<16x32xbf16>
    %324 = vector.extract_strided_slice %10 {offsets = [64, 0], sizes = [16, 32], strides = [1, 1]} : vector<128x128xbf16> to vector<16x32xbf16>
    %cst_84 = arith.constant dense<0.000000e+00> : vector<16x16xf32>
    %325 = tpu.matmul %322, %323, %cst_84 {dimension_numbers = #tpu.dot_dimension_numbers<[1], [1], [0], [0], [0, 0, 1, 0], [], []>} : vector<16x32xbf16>, vector<16x32xbf16>, vector<16x16xf32> -> vector<16x16xf32>
    %cst_85 = arith.constant -1.000000e+30 : f32
    %326 = vector.broadcast %cst_85 : f32 to vector<16x16xf32>
    %327 = arith.select %13, %325, %326 : vector<16x16xi1>, vector<16x16xf32>
    %cst_86 = arith.constant dense<0xFF800000> : vector<16xf32>
    %328 = vector.multi_reduction <maximumf>, %327, %cst_86 [1] : vector<16x16xf32> to vector<16xf32>
    %329 = vector.shape_cast %328 : vector<16xf32> to vector<16x1xf32>
    %330 = vector.broadcast %329 : vector<16x1xf32> to vector<16x16xf32>
    %331 = arith.subf %327, %330 : vector<16x16xf32>
    %332 = math.exp %331 : vector<16x16xf32>
    %cst_87 = arith.constant dense<0.000000e+00> : vector<16xf32>
    %333 = vector.multi_reduction <add>, %332, %cst_87 [1] : vector<16x16xf32> to vector<16xf32>
    %334 = vector.shape_cast %333 : vector<16xf32> to vector<16x1xf32>
    %335 = tpu.reciprocal %334 {approx = true} : vector<16x1xf32> -> vector<16x1xf32>
    %336 = arith.truncf %332 : vector<16x16xf32> to vector<16x16xbf16>
    %cst_88 = arith.constant dense<0.000000e+00> : vector<16x32xf32>
    %337 = tpu.matmul %336, %324, %cst_88 {dimension_numbers = #tpu.dot_dimension_numbers<[1], [0], [0], [1], [0, 0, 1, 1], [], []>} : vector<16x16xbf16>, vector<16x32xbf16>, vector<16x32xf32> -> vector<16x32xf32>
    %338 = vector.broadcast %335 : vector<16x1xf32> to vector<16x32xf32>
    %339 = arith.mulf %337, %338 : vector<16x32xf32>
    %340 = arith.truncf %339 : vector<16x32xf32> to vector<16x32xbf16>
    %341 = vector.extract_strided_slice %6 {offsets = [64, 32], sizes = [16, 32], strides = [1, 1]} : vector<128x128xbf16> to vector<16x32xbf16>
    %342 = vector.extract_strided_slice %8 {offsets = [64, 32], sizes = [16, 32], strides = [1, 1]} : vector<128x128xbf16> to vector<16x32xbf16>
    %343 = vector.extract_strided_slice %10 {offsets = [64, 32], sizes = [16, 32], strides = [1, 1]} : vector<128x128xbf16> to vector<16x32xbf16>
    %cst_89 = arith.constant dense<0.000000e+00> : vector<16x16xf32>
    %344 = tpu.matmul %341, %342, %cst_89 {dimension_numbers = #tpu.dot_dimension_numbers<[1], [1], [0], [0], [0, 0, 1, 0], [], []>} : vector<16x32xbf16>, vector<16x32xbf16>, vector<16x16xf32> -> vector<16x16xf32>
    %cst_90 = arith.constant -1.000000e+30 : f32
    %345 = vector.broadcast %cst_90 : f32 to vector<16x16xf32>
    %346 = arith.select %13, %344, %345 : vector<16x16xi1>, vector<16x16xf32>
    %cst_91 = arith.constant dense<0xFF800000> : vector<16xf32>
    %347 = vector.multi_reduction <maximumf>, %346, %cst_91 [1] : vector<16x16xf32> to vector<16xf32>
    %348 = vector.shape_cast %347 : vector<16xf32> to vector<16x1xf32>
    %349 = vector.broadcast %348 : vector<16x1xf32> to vector<16x16xf32>
    %350 = arith.subf %346, %349 : vector<16x16xf32>
    %351 = math.exp %350 : vector<16x16xf32>
    %cst_92 = arith.constant dense<0.000000e+00> : vector<16xf32>
    %352 = vector.multi_reduction <add>, %351, %cst_92 [1] : vector<16x16xf32> to vector<16xf32>
    %353 = vector.shape_cast %352 : vector<16xf32> to vector<16x1xf32>
    %354 = tpu.reciprocal %353 {approx = true} : vector<16x1xf32> -> vector<16x1xf32>
    %355 = arith.truncf %351 : vector<16x16xf32> to vector<16x16xbf16>
    %cst_93 = arith.constant dense<0.000000e+00> : vector<16x32xf32>
    %356 = tpu.matmul %355, %343, %cst_93 {dimension_numbers = #tpu.dot_dimension_numbers<[1], [0], [0], [1], [0, 0, 1, 1], [], []>} : vector<16x16xbf16>, vector<16x32xbf16>, vector<16x32xf32> -> vector<16x32xf32>
    %357 = vector.broadcast %354 : vector<16x1xf32> to vector<16x32xf32>
    %358 = arith.mulf %356, %357 : vector<16x32xf32>
    %359 = arith.truncf %358 : vector<16x32xf32> to vector<16x32xbf16>
    %360 = vector.extract_strided_slice %6 {offsets = [64, 64], sizes = [16, 32], strides = [1, 1]} : vector<128x128xbf16> to vector<16x32xbf16>
    %361 = vector.extract_strided_slice %8 {offsets = [64, 64], sizes = [16, 32], strides = [1, 1]} : vector<128x128xbf16> to vector<16x32xbf16>
    %362 = vector.extract_strided_slice %10 {offsets = [64, 64], sizes = [16, 32], strides = [1, 1]} : vector<128x128xbf16> to vector<16x32xbf16>
    %cst_94 = arith.constant dense<0.000000e+00> : vector<16x16xf32>
    %363 = tpu.matmul %360, %361, %cst_94 {dimension_numbers = #tpu.dot_dimension_numbers<[1], [1], [0], [0], [0, 0, 1, 0], [], []>} : vector<16x32xbf16>, vector<16x32xbf16>, vector<16x16xf32> -> vector<16x16xf32>
    %cst_95 = arith.constant -1.000000e+30 : f32
    %364 = vector.broadcast %cst_95 : f32 to vector<16x16xf32>
    %365 = arith.select %13, %363, %364 : vector<16x16xi1>, vector<16x16xf32>
    %cst_96 = arith.constant dense<0xFF800000> : vector<16xf32>
    %366 = vector.multi_reduction <maximumf>, %365, %cst_96 [1] : vector<16x16xf32> to vector<16xf32>
    %367 = vector.shape_cast %366 : vector<16xf32> to vector<16x1xf32>
    %368 = vector.broadcast %367 : vector<16x1xf32> to vector<16x16xf32>
    %369 = arith.subf %365, %368 : vector<16x16xf32>
    %370 = math.exp %369 : vector<16x16xf32>
    %cst_97 = arith.constant dense<0.000000e+00> : vector<16xf32>
    %371 = vector.multi_reduction <add>, %370, %cst_97 [1] : vector<16x16xf32> to vector<16xf32>
    %372 = vector.shape_cast %371 : vector<16xf32> to vector<16x1xf32>
    %373 = tpu.reciprocal %372 {approx = true} : vector<16x1xf32> -> vector<16x1xf32>
    %374 = arith.truncf %370 : vector<16x16xf32> to vector<16x16xbf16>
    %cst_98 = arith.constant dense<0.000000e+00> : vector<16x32xf32>
    %375 = tpu.matmul %374, %362, %cst_98 {dimension_numbers = #tpu.dot_dimension_numbers<[1], [0], [0], [1], [0, 0, 1, 1], [], []>} : vector<16x16xbf16>, vector<16x32xbf16>, vector<16x32xf32> -> vector<16x32xf32>
    %376 = vector.broadcast %373 : vector<16x1xf32> to vector<16x32xf32>
    %377 = arith.mulf %375, %376 : vector<16x32xf32>
    %378 = arith.truncf %377 : vector<16x32xf32> to vector<16x32xbf16>
    %379 = vector.extract_strided_slice %6 {offsets = [64, 96], sizes = [16, 32], strides = [1, 1]} : vector<128x128xbf16> to vector<16x32xbf16>
    %380 = vector.extract_strided_slice %8 {offsets = [64, 96], sizes = [16, 32], strides = [1, 1]} : vector<128x128xbf16> to vector<16x32xbf16>
    %381 = vector.extract_strided_slice %10 {offsets = [64, 96], sizes = [16, 32], strides = [1, 1]} : vector<128x128xbf16> to vector<16x32xbf16>
    %cst_99 = arith.constant dense<0.000000e+00> : vector<16x16xf32>
    %382 = tpu.matmul %379, %380, %cst_99 {dimension_numbers = #tpu.dot_dimension_numbers<[1], [1], [0], [0], [0, 0, 1, 0], [], []>} : vector<16x32xbf16>, vector<16x32xbf16>, vector<16x16xf32> -> vector<16x16xf32>
    %cst_100 = arith.constant -1.000000e+30 : f32
    %383 = vector.broadcast %cst_100 : f32 to vector<16x16xf32>
    %384 = arith.select %13, %382, %383 : vector<16x16xi1>, vector<16x16xf32>
    %cst_101 = arith.constant dense<0xFF800000> : vector<16xf32>
    %385 = vector.multi_reduction <maximumf>, %384, %cst_101 [1] : vector<16x16xf32> to vector<16xf32>
    %386 = vector.shape_cast %385 : vector<16xf32> to vector<16x1xf32>
    %387 = vector.broadcast %386 : vector<16x1xf32> to vector<16x16xf32>
    %388 = arith.subf %384, %387 : vector<16x16xf32>
    %389 = math.exp %388 : vector<16x16xf32>
    %cst_102 = arith.constant dense<0.000000e+00> : vector<16xf32>
    %390 = vector.multi_reduction <add>, %389, %cst_102 [1] : vector<16x16xf32> to vector<16xf32>
    %391 = vector.shape_cast %390 : vector<16xf32> to vector<16x1xf32>
    %392 = tpu.reciprocal %391 {approx = true} : vector<16x1xf32> -> vector<16x1xf32>
    %393 = arith.truncf %389 : vector<16x16xf32> to vector<16x16xbf16>
    %cst_103 = arith.constant dense<0.000000e+00> : vector<16x32xf32>
    %394 = tpu.matmul %393, %381, %cst_103 {dimension_numbers = #tpu.dot_dimension_numbers<[1], [0], [0], [1], [0, 0, 1, 1], [], []>} : vector<16x16xbf16>, vector<16x32xbf16>, vector<16x32xf32> -> vector<16x32xf32>
    %395 = vector.broadcast %392 : vector<16x1xf32> to vector<16x32xf32>
    %396 = arith.mulf %394, %395 : vector<16x32xf32>
    %397 = arith.truncf %396 : vector<16x32xf32> to vector<16x32xbf16>
    %398 = tpu.concatenate %340, %359, %378, %397 in 1 : vector<16x32xbf16>, vector<16x32xbf16>, vector<16x32xbf16>, vector<16x32xbf16> -> vector<16x128xbf16>
    %399 = vector.extract_strided_slice %6 {offsets = [80, 0], sizes = [16, 32], strides = [1, 1]} : vector<128x128xbf16> to vector<16x32xbf16>
    %400 = vector.extract_strided_slice %8 {offsets = [80, 0], sizes = [16, 32], strides = [1, 1]} : vector<128x128xbf16> to vector<16x32xbf16>
    %401 = vector.extract_strided_slice %10 {offsets = [80, 0], sizes = [16, 32], strides = [1, 1]} : vector<128x128xbf16> to vector<16x32xbf16>
    %cst_104 = arith.constant dense<0.000000e+00> : vector<16x16xf32>
    %402 = tpu.matmul %399, %400, %cst_104 {dimension_numbers = #tpu.dot_dimension_numbers<[1], [1], [0], [0], [0, 0, 1, 0], [], []>} : vector<16x32xbf16>, vector<16x32xbf16>, vector<16x16xf32> -> vector<16x16xf32>
    %cst_105 = arith.constant -1.000000e+30 : f32
    %403 = vector.broadcast %cst_105 : f32 to vector<16x16xf32>
    %404 = arith.select %13, %402, %403 : vector<16x16xi1>, vector<16x16xf32>
    %cst_106 = arith.constant dense<0xFF800000> : vector<16xf32>
    %405 = vector.multi_reduction <maximumf>, %404, %cst_106 [1] : vector<16x16xf32> to vector<16xf32>
    %406 = vector.shape_cast %405 : vector<16xf32> to vector<16x1xf32>
    %407 = vector.broadcast %406 : vector<16x1xf32> to vector<16x16xf32>
    %408 = arith.subf %404, %407 : vector<16x16xf32>
    %409 = math.exp %408 : vector<16x16xf32>
    %cst_107 = arith.constant dense<0.000000e+00> : vector<16xf32>
    %410 = vector.multi_reduction <add>, %409, %cst_107 [1] : vector<16x16xf32> to vector<16xf32>
    %411 = vector.shape_cast %410 : vector<16xf32> to vector<16x1xf32>
    %412 = tpu.reciprocal %411 {approx = true} : vector<16x1xf32> -> vector<16x1xf32>
    %413 = arith.truncf %409 : vector<16x16xf32> to vector<16x16xbf16>
    %cst_108 = arith.constant dense<0.000000e+00> : vector<16x32xf32>
    %414 = tpu.matmul %413, %401, %cst_108 {dimension_numbers = #tpu.dot_dimension_numbers<[1], [0], [0], [1], [0, 0, 1, 1], [], []>} : vector<16x16xbf16>, vector<16x32xbf16>, vector<16x32xf32> -> vector<16x32xf32>
    %415 = vector.broadcast %412 : vector<16x1xf32> to vector<16x32xf32>
    %416 = arith.mulf %414, %415 : vector<16x32xf32>
    %417 = arith.truncf %416 : vector<16x32xf32> to vector<16x32xbf16>
    %418 = vector.extract_strided_slice %6 {offsets = [80, 32], sizes = [16, 32], strides = [1, 1]} : vector<128x128xbf16> to vector<16x32xbf16>
    %419 = vector.extract_strided_slice %8 {offsets = [80, 32], sizes = [16, 32], strides = [1, 1]} : vector<128x128xbf16> to vector<16x32xbf16>
    %420 = vector.extract_strided_slice %10 {offsets = [80, 32], sizes = [16, 32], strides = [1, 1]} : vector<128x128xbf16> to vector<16x32xbf16>
    %cst_109 = arith.constant dense<0.000000e+00> : vector<16x16xf32>
    %421 = tpu.matmul %418, %419, %cst_109 {dimension_numbers = #tpu.dot_dimension_numbers<[1], [1], [0], [0], [0, 0, 1, 0], [], []>} : vector<16x32xbf16>, vector<16x32xbf16>, vector<16x16xf32> -> vector<16x16xf32>
    %cst_110 = arith.constant -1.000000e+30 : f32
    %422 = vector.broadcast %cst_110 : f32 to vector<16x16xf32>
    %423 = arith.select %13, %421, %422 : vector<16x16xi1>, vector<16x16xf32>
    %cst_111 = arith.constant dense<0xFF800000> : vector<16xf32>
    %424 = vector.multi_reduction <maximumf>, %423, %cst_111 [1] : vector<16x16xf32> to vector<16xf32>
    %425 = vector.shape_cast %424 : vector<16xf32> to vector<16x1xf32>
    %426 = vector.broadcast %425 : vector<16x1xf32> to vector<16x16xf32>
    %427 = arith.subf %423, %426 : vector<16x16xf32>
    %428 = math.exp %427 : vector<16x16xf32>
    %cst_112 = arith.constant dense<0.000000e+00> : vector<16xf32>
    %429 = vector.multi_reduction <add>, %428, %cst_112 [1] : vector<16x16xf32> to vector<16xf32>
    %430 = vector.shape_cast %429 : vector<16xf32> to vector<16x1xf32>
    %431 = tpu.reciprocal %430 {approx = true} : vector<16x1xf32> -> vector<16x1xf32>
    %432 = arith.truncf %428 : vector<16x16xf32> to vector<16x16xbf16>
    %cst_113 = arith.constant dense<0.000000e+00> : vector<16x32xf32>
    %433 = tpu.matmul %432, %420, %cst_113 {dimension_numbers = #tpu.dot_dimension_numbers<[1], [0], [0], [1], [0, 0, 1, 1], [], []>} : vector<16x16xbf16>, vector<16x32xbf16>, vector<16x32xf32> -> vector<16x32xf32>
    %434 = vector.broadcast %431 : vector<16x1xf32> to vector<16x32xf32>
    %435 = arith.mulf %433, %434 : vector<16x32xf32>
    %436 = arith.truncf %435 : vector<16x32xf32> to vector<16x32xbf16>
    %437 = vector.extract_strided_slice %6 {offsets = [80, 64], sizes = [16, 32], strides = [1, 1]} : vector<128x128xbf16> to vector<16x32xbf16>
    %438 = vector.extract_strided_slice %8 {offsets = [80, 64], sizes = [16, 32], strides = [1, 1]} : vector<128x128xbf16> to vector<16x32xbf16>
    %439 = vector.extract_strided_slice %10 {offsets = [80, 64], sizes = [16, 32], strides = [1, 1]} : vector<128x128xbf16> to vector<16x32xbf16>
    %cst_114 = arith.constant dense<0.000000e+00> : vector<16x16xf32>
    %440 = tpu.matmul %437, %438, %cst_114 {dimension_numbers = #tpu.dot_dimension_numbers<[1], [1], [0], [0], [0, 0, 1, 0], [], []>} : vector<16x32xbf16>, vector<16x32xbf16>, vector<16x16xf32> -> vector<16x16xf32>
    %cst_115 = arith.constant -1.000000e+30 : f32
    %441 = vector.broadcast %cst_115 : f32 to vector<16x16xf32>
    %442 = arith.select %13, %440, %441 : vector<16x16xi1>, vector<16x16xf32>
    %cst_116 = arith.constant dense<0xFF800000> : vector<16xf32>
    %443 = vector.multi_reduction <maximumf>, %442, %cst_116 [1] : vector<16x16xf32> to vector<16xf32>
    %444 = vector.shape_cast %443 : vector<16xf32> to vector<16x1xf32>
    %445 = vector.broadcast %444 : vector<16x1xf32> to vector<16x16xf32>
    %446 = arith.subf %442, %445 : vector<16x16xf32>
    %447 = math.exp %446 : vector<16x16xf32>
    %cst_117 = arith.constant dense<0.000000e+00> : vector<16xf32>
    %448 = vector.multi_reduction <add>, %447, %cst_117 [1] : vector<16x16xf32> to vector<16xf32>
    %449 = vector.shape_cast %448 : vector<16xf32> to vector<16x1xf32>
    %450 = tpu.reciprocal %449 {approx = true} : vector<16x1xf32> -> vector<16x1xf32>
    %451 = arith.truncf %447 : vector<16x16xf32> to vector<16x16xbf16>
    %cst_118 = arith.constant dense<0.000000e+00> : vector<16x32xf32>
    %452 = tpu.matmul %451, %439, %cst_118 {dimension_numbers = #tpu.dot_dimension_numbers<[1], [0], [0], [1], [0, 0, 1, 1], [], []>} : vector<16x16xbf16>, vector<16x32xbf16>, vector<16x32xf32> -> vector<16x32xf32>
    %453 = vector.broadcast %450 : vector<16x1xf32> to vector<16x32xf32>
    %454 = arith.mulf %452, %453 : vector<16x32xf32>
    %455 = arith.truncf %454 : vector<16x32xf32> to vector<16x32xbf16>
    %456 = vector.extract_strided_slice %6 {offsets = [80, 96], sizes = [16, 32], strides = [1, 1]} : vector<128x128xbf16> to vector<16x32xbf16>
    %457 = vector.extract_strided_slice %8 {offsets = [80, 96], sizes = [16, 32], strides = [1, 1]} : vector<128x128xbf16> to vector<16x32xbf16>
    %458 = vector.extract_strided_slice %10 {offsets = [80, 96], sizes = [16, 32], strides = [1, 1]} : vector<128x128xbf16> to vector<16x32xbf16>
    %cst_119 = arith.constant dense<0.000000e+00> : vector<16x16xf32>
    %459 = tpu.matmul %456, %457, %cst_119 {dimension_numbers = #tpu.dot_dimension_numbers<[1], [1], [0], [0], [0, 0, 1, 0], [], []>} : vector<16x32xbf16>, vector<16x32xbf16>, vector<16x16xf32> -> vector<16x16xf32>
    %cst_120 = arith.constant -1.000000e+30 : f32
    %460 = vector.broadcast %cst_120 : f32 to vector<16x16xf32>
    %461 = arith.select %13, %459, %460 : vector<16x16xi1>, vector<16x16xf32>
    %cst_121 = arith.constant dense<0xFF800000> : vector<16xf32>
    %462 = vector.multi_reduction <maximumf>, %461, %cst_121 [1] : vector<16x16xf32> to vector<16xf32>
    %463 = vector.shape_cast %462 : vector<16xf32> to vector<16x1xf32>
    %464 = vector.broadcast %463 : vector<16x1xf32> to vector<16x16xf32>
    %465 = arith.subf %461, %464 : vector<16x16xf32>
    %466 = math.exp %465 : vector<16x16xf32>
    %cst_122 = arith.constant dense<0.000000e+00> : vector<16xf32>
    %467 = vector.multi_reduction <add>, %466, %cst_122 [1] : vector<16x16xf32> to vector<16xf32>
    %468 = vector.shape_cast %467 : vector<16xf32> to vector<16x1xf32>
    %469 = tpu.reciprocal %468 {approx = true} : vector<16x1xf32> -> vector<16x1xf32>
    %470 = arith.truncf %466 : vector<16x16xf32> to vector<16x16xbf16>
    %cst_123 = arith.constant dense<0.000000e+00> : vector<16x32xf32>
    %471 = tpu.matmul %470, %458, %cst_123 {dimension_numbers = #tpu.dot_dimension_numbers<[1], [0], [0], [1], [0, 0, 1, 1], [], []>} : vector<16x16xbf16>, vector<16x32xbf16>, vector<16x32xf32> -> vector<16x32xf32>
    %472 = vector.broadcast %469 : vector<16x1xf32> to vector<16x32xf32>
    %473 = arith.mulf %471, %472 : vector<16x32xf32>
    %474 = arith.truncf %473 : vector<16x32xf32> to vector<16x32xbf16>
    %475 = tpu.concatenate %417, %436, %455, %474 in 1 : vector<16x32xbf16>, vector<16x32xbf16>, vector<16x32xbf16>, vector<16x32xbf16> -> vector<16x128xbf16>
    %476 = vector.extract_strided_slice %6 {offsets = [96, 0], sizes = [16, 32], strides = [1, 1]} : vector<128x128xbf16> to vector<16x32xbf16>
    %477 = vector.extract_strided_slice %8 {offsets = [96, 0], sizes = [16, 32], strides = [1, 1]} : vector<128x128xbf16> to vector<16x32xbf16>
    %478 = vector.extract_strided_slice %10 {offsets = [96, 0], sizes = [16, 32], strides = [1, 1]} : vector<128x128xbf16> to vector<16x32xbf16>
    %cst_124 = arith.constant dense<0.000000e+00> : vector<16x16xf32>
    %479 = tpu.matmul %476, %477, %cst_124 {dimension_numbers = #tpu.dot_dimension_numbers<[1], [1], [0], [0], [0, 0, 1, 0], [], []>} : vector<16x32xbf16>, vector<16x32xbf16>, vector<16x16xf32> -> vector<16x16xf32>
    %cst_125 = arith.constant -1.000000e+30 : f32
    %480 = vector.broadcast %cst_125 : f32 to vector<16x16xf32>
    %481 = arith.select %13, %479, %480 : vector<16x16xi1>, vector<16x16xf32>
    %cst_126 = arith.constant dense<0xFF800000> : vector<16xf32>
    %482 = vector.multi_reduction <maximumf>, %481, %cst_126 [1] : vector<16x16xf32> to vector<16xf32>
    %483 = vector.shape_cast %482 : vector<16xf32> to vector<16x1xf32>
    %484 = vector.broadcast %483 : vector<16x1xf32> to vector<16x16xf32>
    %485 = arith.subf %481, %484 : vector<16x16xf32>
    %486 = math.exp %485 : vector<16x16xf32>
    %cst_127 = arith.constant dense<0.000000e+00> : vector<16xf32>
    %487 = vector.multi_reduction <add>, %486, %cst_127 [1] : vector<16x16xf32> to vector<16xf32>
    %488 = vector.shape_cast %487 : vector<16xf32> to vector<16x1xf32>
    %489 = tpu.reciprocal %488 {approx = true} : vector<16x1xf32> -> vector<16x1xf32>
    %490 = arith.truncf %486 : vector<16x16xf32> to vector<16x16xbf16>
    %cst_128 = arith.constant dense<0.000000e+00> : vector<16x32xf32>
    %491 = tpu.matmul %490, %478, %cst_128 {dimension_numbers = #tpu.dot_dimension_numbers<[1], [0], [0], [1], [0, 0, 1, 1], [], []>} : vector<16x16xbf16>, vector<16x32xbf16>, vector<16x32xf32> -> vector<16x32xf32>
    %492 = vector.broadcast %489 : vector<16x1xf32> to vector<16x32xf32>
    %493 = arith.mulf %491, %492 : vector<16x32xf32>
    %494 = arith.truncf %493 : vector<16x32xf32> to vector<16x32xbf16>
    %495 = vector.extract_strided_slice %6 {offsets = [96, 32], sizes = [16, 32], strides = [1, 1]} : vector<128x128xbf16> to vector<16x32xbf16>
    %496 = vector.extract_strided_slice %8 {offsets = [96, 32], sizes = [16, 32], strides = [1, 1]} : vector<128x128xbf16> to vector<16x32xbf16>
    %497 = vector.extract_strided_slice %10 {offsets = [96, 32], sizes = [16, 32], strides = [1, 1]} : vector<128x128xbf16> to vector<16x32xbf16>
    %cst_129 = arith.constant dense<0.000000e+00> : vector<16x16xf32>
    %498 = tpu.matmul %495, %496, %cst_129 {dimension_numbers = #tpu.dot_dimension_numbers<[1], [1], [0], [0], [0, 0, 1, 0], [], []>} : vector<16x32xbf16>, vector<16x32xbf16>, vector<16x16xf32> -> vector<16x16xf32>
    %cst_130 = arith.constant -1.000000e+30 : f32
    %499 = vector.broadcast %cst_130 : f32 to vector<16x16xf32>
    %500 = arith.select %13, %498, %499 : vector<16x16xi1>, vector<16x16xf32>
    %cst_131 = arith.constant dense<0xFF800000> : vector<16xf32>
    %501 = vector.multi_reduction <maximumf>, %500, %cst_131 [1] : vector<16x16xf32> to vector<16xf32>
    %502 = vector.shape_cast %501 : vector<16xf32> to vector<16x1xf32>
    %503 = vector.broadcast %502 : vector<16x1xf32> to vector<16x16xf32>
    %504 = arith.subf %500, %503 : vector<16x16xf32>
    %505 = math.exp %504 : vector<16x16xf32>
    %cst_132 = arith.constant dense<0.000000e+00> : vector<16xf32>
    %506 = vector.multi_reduction <add>, %505, %cst_132 [1] : vector<16x16xf32> to vector<16xf32>
    %507 = vector.shape_cast %506 : vector<16xf32> to vector<16x1xf32>
    %508 = tpu.reciprocal %507 {approx = true} : vector<16x1xf32> -> vector<16x1xf32>
    %509 = arith.truncf %505 : vector<16x16xf32> to vector<16x16xbf16>
    %cst_133 = arith.constant dense<0.000000e+00> : vector<16x32xf32>
    %510 = tpu.matmul %509, %497, %cst_133 {dimension_numbers = #tpu.dot_dimension_numbers<[1], [0], [0], [1], [0, 0, 1, 1], [], []>} : vector<16x16xbf16>, vector<16x32xbf16>, vector<16x32xf32> -> vector<16x32xf32>
    %511 = vector.broadcast %508 : vector<16x1xf32> to vector<16x32xf32>
    %512 = arith.mulf %510, %511 : vector<16x32xf32>
    %513 = arith.truncf %512 : vector<16x32xf32> to vector<16x32xbf16>
    %514 = vector.extract_strided_slice %6 {offsets = [96, 64], sizes = [16, 32], strides = [1, 1]} : vector<128x128xbf16> to vector<16x32xbf16>
    %515 = vector.extract_strided_slice %8 {offsets = [96, 64], sizes = [16, 32], strides = [1, 1]} : vector<128x128xbf16> to vector<16x32xbf16>
    %516 = vector.extract_strided_slice %10 {offsets = [96, 64], sizes = [16, 32], strides = [1, 1]} : vector<128x128xbf16> to vector<16x32xbf16>
    %cst_134 = arith.constant dense<0.000000e+00> : vector<16x16xf32>
    %517 = tpu.matmul %514, %515, %cst_134 {dimension_numbers = #tpu.dot_dimension_numbers<[1], [1], [0], [0], [0, 0, 1, 0], [], []>} : vector<16x32xbf16>, vector<16x32xbf16>, vector<16x16xf32> -> vector<16x16xf32>
    %cst_135 = arith.constant -1.000000e+30 : f32
    %518 = vector.broadcast %cst_135 : f32 to vector<16x16xf32>
    %519 = arith.select %13, %517, %518 : vector<16x16xi1>, vector<16x16xf32>
    %cst_136 = arith.constant dense<0xFF800000> : vector<16xf32>
    %520 = vector.multi_reduction <maximumf>, %519, %cst_136 [1] : vector<16x16xf32> to vector<16xf32>
    %521 = vector.shape_cast %520 : vector<16xf32> to vector<16x1xf32>
    %522 = vector.broadcast %521 : vector<16x1xf32> to vector<16x16xf32>
    %523 = arith.subf %519, %522 : vector<16x16xf32>
    %524 = math.exp %523 : vector<16x16xf32>
    %cst_137 = arith.constant dense<0.000000e+00> : vector<16xf32>
    %525 = vector.multi_reduction <add>, %524, %cst_137 [1] : vector<16x16xf32> to vector<16xf32>
    %526 = vector.shape_cast %525 : vector<16xf32> to vector<16x1xf32>
    %527 = tpu.reciprocal %526 {approx = true} : vector<16x1xf32> -> vector<16x1xf32>
    %528 = arith.truncf %524 : vector<16x16xf32> to vector<16x16xbf16>
    %cst_138 = arith.constant dense<0.000000e+00> : vector<16x32xf32>
    %529 = tpu.matmul %528, %516, %cst_138 {dimension_numbers = #tpu.dot_dimension_numbers<[1], [0], [0], [1], [0, 0, 1, 1], [], []>} : vector<16x16xbf16>, vector<16x32xbf16>, vector<16x32xf32> -> vector<16x32xf32>
    %530 = vector.broadcast %527 : vector<16x1xf32> to vector<16x32xf32>
    %531 = arith.mulf %529, %530 : vector<16x32xf32>
    %532 = arith.truncf %531 : vector<16x32xf32> to vector<16x32xbf16>
    %533 = vector.extract_strided_slice %6 {offsets = [96, 96], sizes = [16, 32], strides = [1, 1]} : vector<128x128xbf16> to vector<16x32xbf16>
    %534 = vector.extract_strided_slice %8 {offsets = [96, 96], sizes = [16, 32], strides = [1, 1]} : vector<128x128xbf16> to vector<16x32xbf16>
    %535 = vector.extract_strided_slice %10 {offsets = [96, 96], sizes = [16, 32], strides = [1, 1]} : vector<128x128xbf16> to vector<16x32xbf16>
    %cst_139 = arith.constant dense<0.000000e+00> : vector<16x16xf32>
    %536 = tpu.matmul %533, %534, %cst_139 {dimension_numbers = #tpu.dot_dimension_numbers<[1], [1], [0], [0], [0, 0, 1, 0], [], []>} : vector<16x32xbf16>, vector<16x32xbf16>, vector<16x16xf32> -> vector<16x16xf32>
    %cst_140 = arith.constant -1.000000e+30 : f32
    %537 = vector.broadcast %cst_140 : f32 to vector<16x16xf32>
    %538 = arith.select %13, %536, %537 : vector<16x16xi1>, vector<16x16xf32>
    %cst_141 = arith.constant dense<0xFF800000> : vector<16xf32>
    %539 = vector.multi_reduction <maximumf>, %538, %cst_141 [1] : vector<16x16xf32> to vector<16xf32>
    %540 = vector.shape_cast %539 : vector<16xf32> to vector<16x1xf32>
    %541 = vector.broadcast %540 : vector<16x1xf32> to vector<16x16xf32>
    %542 = arith.subf %538, %541 : vector<16x16xf32>
    %543 = math.exp %542 : vector<16x16xf32>
    %cst_142 = arith.constant dense<0.000000e+00> : vector<16xf32>
    %544 = vector.multi_reduction <add>, %543, %cst_142 [1] : vector<16x16xf32> to vector<16xf32>
    %545 = vector.shape_cast %544 : vector<16xf32> to vector<16x1xf32>
    %546 = tpu.reciprocal %545 {approx = true} : vector<16x1xf32> -> vector<16x1xf32>
    %547 = arith.truncf %543 : vector<16x16xf32> to vector<16x16xbf16>
    %cst_143 = arith.constant dense<0.000000e+00> : vector<16x32xf32>
    %548 = tpu.matmul %547, %535, %cst_143 {dimension_numbers = #tpu.dot_dimension_numbers<[1], [0], [0], [1], [0, 0, 1, 1], [], []>} : vector<16x16xbf16>, vector<16x32xbf16>, vector<16x32xf32> -> vector<16x32xf32>
    %549 = vector.broadcast %546 : vector<16x1xf32> to vector<16x32xf32>
    %550 = arith.mulf %548, %549 : vector<16x32xf32>
    %551 = arith.truncf %550 : vector<16x32xf32> to vector<16x32xbf16>
    %552 = tpu.concatenate %494, %513, %532, %551 in 1 : vector<16x32xbf16>, vector<16x32xbf16>, vector<16x32xbf16>, vector<16x32xbf16> -> vector<16x128xbf16>
    %553 = vector.extract_strided_slice %6 {offsets = [112, 0], sizes = [16, 32], strides = [1, 1]} : vector<128x128xbf16> to vector<16x32xbf16>
    %554 = vector.extract_strided_slice %8 {offsets = [112, 0], sizes = [16, 32], strides = [1, 1]} : vector<128x128xbf16> to vector<16x32xbf16>
    %555 = vector.extract_strided_slice %10 {offsets = [112, 0], sizes = [16, 32], strides = [1, 1]} : vector<128x128xbf16> to vector<16x32xbf16>
    %cst_144 = arith.constant dense<0.000000e+00> : vector<16x16xf32>
    %556 = tpu.matmul %553, %554, %cst_144 {dimension_numbers = #tpu.dot_dimension_numbers<[1], [1], [0], [0], [0, 0, 1, 0], [], []>} : vector<16x32xbf16>, vector<16x32xbf16>, vector<16x16xf32> -> vector<16x16xf32>
    %cst_145 = arith.constant -1.000000e+30 : f32
    %557 = vector.broadcast %cst_145 : f32 to vector<16x16xf32>
    %558 = arith.select %13, %556, %557 : vector<16x16xi1>, vector<16x16xf32>
    %cst_146 = arith.constant dense<0xFF800000> : vector<16xf32>
    %559 = vector.multi_reduction <maximumf>, %558, %cst_146 [1] : vector<16x16xf32> to vector<16xf32>
    %560 = vector.shape_cast %559 : vector<16xf32> to vector<16x1xf32>
    %561 = vector.broadcast %560 : vector<16x1xf32> to vector<16x16xf32>
    %562 = arith.subf %558, %561 : vector<16x16xf32>
    %563 = math.exp %562 : vector<16x16xf32>
    %cst_147 = arith.constant dense<0.000000e+00> : vector<16xf32>
    %564 = vector.multi_reduction <add>, %563, %cst_147 [1] : vector<16x16xf32> to vector<16xf32>
    %565 = vector.shape_cast %564 : vector<16xf32> to vector<16x1xf32>
    %566 = tpu.reciprocal %565 {approx = true} : vector<16x1xf32> -> vector<16x1xf32>
    %567 = arith.truncf %563 : vector<16x16xf32> to vector<16x16xbf16>
    %cst_148 = arith.constant dense<0.000000e+00> : vector<16x32xf32>
    %568 = tpu.matmul %567, %555, %cst_148 {dimension_numbers = #tpu.dot_dimension_numbers<[1], [0], [0], [1], [0, 0, 1, 1], [], []>} : vector<16x16xbf16>, vector<16x32xbf16>, vector<16x32xf32> -> vector<16x32xf32>
    %569 = vector.broadcast %566 : vector<16x1xf32> to vector<16x32xf32>
    %570 = arith.mulf %568, %569 : vector<16x32xf32>
    %571 = arith.truncf %570 : vector<16x32xf32> to vector<16x32xbf16>
    %572 = vector.extract_strided_slice %6 {offsets = [112, 32], sizes = [16, 32], strides = [1, 1]} : vector<128x128xbf16> to vector<16x32xbf16>
    %573 = vector.extract_strided_slice %8 {offsets = [112, 32], sizes = [16, 32], strides = [1, 1]} : vector<128x128xbf16> to vector<16x32xbf16>
    %574 = vector.extract_strided_slice %10 {offsets = [112, 32], sizes = [16, 32], strides = [1, 1]} : vector<128x128xbf16> to vector<16x32xbf16>
    %cst_149 = arith.constant dense<0.000000e+00> : vector<16x16xf32>
    %575 = tpu.matmul %572, %573, %cst_149 {dimension_numbers = #tpu.dot_dimension_numbers<[1], [1], [0], [0], [0, 0, 1, 0], [], []>} : vector<16x32xbf16>, vector<16x32xbf16>, vector<16x16xf32> -> vector<16x16xf32>
    %cst_150 = arith.constant -1.000000e+30 : f32
    %576 = vector.broadcast %cst_150 : f32 to vector<16x16xf32>
    %577 = arith.select %13, %575, %576 : vector<16x16xi1>, vector<16x16xf32>
    %cst_151 = arith.constant dense<0xFF800000> : vector<16xf32>
    %578 = vector.multi_reduction <maximumf>, %577, %cst_151 [1] : vector<16x16xf32> to vector<16xf32>
    %579 = vector.shape_cast %578 : vector<16xf32> to vector<16x1xf32>
    %580 = vector.broadcast %579 : vector<16x1xf32> to vector<16x16xf32>
    %581 = arith.subf %577, %580 : vector<16x16xf32>
    %582 = math.exp %581 : vector<16x16xf32>
    %cst_152 = arith.constant dense<0.000000e+00> : vector<16xf32>
    %583 = vector.multi_reduction <add>, %582, %cst_152 [1] : vector<16x16xf32> to vector<16xf32>
    %584 = vector.shape_cast %583 : vector<16xf32> to vector<16x1xf32>
    %585 = tpu.reciprocal %584 {approx = true} : vector<16x1xf32> -> vector<16x1xf32>
    %586 = arith.truncf %582 : vector<16x16xf32> to vector<16x16xbf16>
    %cst_153 = arith.constant dense<0.000000e+00> : vector<16x32xf32>
    %587 = tpu.matmul %586, %574, %cst_153 {dimension_numbers = #tpu.dot_dimension_numbers<[1], [0], [0], [1], [0, 0, 1, 1], [], []>} : vector<16x16xbf16>, vector<16x32xbf16>, vector<16x32xf32> -> vector<16x32xf32>
    %588 = vector.broadcast %585 : vector<16x1xf32> to vector<16x32xf32>
    %589 = arith.mulf %587, %588 : vector<16x32xf32>
    %590 = arith.truncf %589 : vector<16x32xf32> to vector<16x32xbf16>
    %591 = vector.extract_strided_slice %6 {offsets = [112, 64], sizes = [16, 32], strides = [1, 1]} : vector<128x128xbf16> to vector<16x32xbf16>
    %592 = vector.extract_strided_slice %8 {offsets = [112, 64], sizes = [16, 32], strides = [1, 1]} : vector<128x128xbf16> to vector<16x32xbf16>
    %593 = vector.extract_strided_slice %10 {offsets = [112, 64], sizes = [16, 32], strides = [1, 1]} : vector<128x128xbf16> to vector<16x32xbf16>
    %cst_154 = arith.constant dense<0.000000e+00> : vector<16x16xf32>
    %594 = tpu.matmul %591, %592, %cst_154 {dimension_numbers = #tpu.dot_dimension_numbers<[1], [1], [0], [0], [0, 0, 1, 0], [], []>} : vector<16x32xbf16>, vector<16x32xbf16>, vector<16x16xf32> -> vector<16x16xf32>
    %cst_155 = arith.constant -1.000000e+30 : f32
    %595 = vector.broadcast %cst_155 : f32 to vector<16x16xf32>
    %596 = arith.select %13, %594, %595 : vector<16x16xi1>, vector<16x16xf32>
    %cst_156 = arith.constant dense<0xFF800000> : vector<16xf32>
    %597 = vector.multi_reduction <maximumf>, %596, %cst_156 [1] : vector<16x16xf32> to vector<16xf32>
    %598 = vector.shape_cast %597 : vector<16xf32> to vector<16x1xf32>
    %599 = vector.broadcast %598 : vector<16x1xf32> to vector<16x16xf32>
    %600 = arith.subf %596, %599 : vector<16x16xf32>
    %601 = math.exp %600 : vector<16x16xf32>
    %cst_157 = arith.constant dense<0.000000e+00> : vector<16xf32>
    %602 = vector.multi_reduction <add>, %601, %cst_157 [1] : vector<16x16xf32> to vector<16xf32>
    %603 = vector.shape_cast %602 : vector<16xf32> to vector<16x1xf32>
    %604 = tpu.reciprocal %603 {approx = true} : vector<16x1xf32> -> vector<16x1xf32>
    %605 = arith.truncf %601 : vector<16x16xf32> to vector<16x16xbf16>
    %cst_158 = arith.constant dense<0.000000e+00> : vector<16x32xf32>
    %606 = tpu.matmul %605, %593, %cst_158 {dimension_numbers = #tpu.dot_dimension_numbers<[1], [0], [0], [1], [0, 0, 1, 1], [], []>} : vector<16x16xbf16>, vector<16x32xbf16>, vector<16x32xf32> -> vector<16x32xf32>
    %607 = vector.broadcast %604 : vector<16x1xf32> to vector<16x32xf32>
    %608 = arith.mulf %606, %607 : vector<16x32xf32>
    %609 = arith.truncf %608 : vector<16x32xf32> to vector<16x32xbf16>
    %610 = vector.extract_strided_slice %6 {offsets = [112, 96], sizes = [16, 32], strides = [1, 1]} : vector<128x128xbf16> to vector<16x32xbf16>
    %611 = vector.extract_strided_slice %8 {offsets = [112, 96], sizes = [16, 32], strides = [1, 1]} : vector<128x128xbf16> to vector<16x32xbf16>
    %612 = vector.extract_strided_slice %10 {offsets = [112, 96], sizes = [16, 32], strides = [1, 1]} : vector<128x128xbf16> to vector<16x32xbf16>
    %cst_159 = arith.constant dense<0.000000e+00> : vector<16x16xf32>
    %613 = tpu.matmul %610, %611, %cst_159 {dimension_numbers = #tpu.dot_dimension_numbers<[1], [1], [0], [0], [0, 0, 1, 0], [], []>} : vector<16x32xbf16>, vector<16x32xbf16>, vector<16x16xf32> -> vector<16x16xf32>
    %cst_160 = arith.constant -1.000000e+30 : f32
    %614 = vector.broadcast %cst_160 : f32 to vector<16x16xf32>
    %615 = arith.select %13, %613, %614 : vector<16x16xi1>, vector<16x16xf32>
    %cst_161 = arith.constant dense<0xFF800000> : vector<16xf32>
    %616 = vector.multi_reduction <maximumf>, %615, %cst_161 [1] : vector<16x16xf32> to vector<16xf32>
    %617 = vector.shape_cast %616 : vector<16xf32> to vector<16x1xf32>
    %618 = vector.broadcast %617 : vector<16x1xf32> to vector<16x16xf32>
    %619 = arith.subf %615, %618 : vector<16x16xf32>
    %620 = math.exp %619 : vector<16x16xf32>
    %cst_162 = arith.constant dense<0.000000e+00> : vector<16xf32>
    %621 = vector.multi_reduction <add>, %620, %cst_162 [1] : vector<16x16xf32> to vector<16xf32>
    %622 = vector.shape_cast %621 : vector<16xf32> to vector<16x1xf32>
    %623 = tpu.reciprocal %622 {approx = true} : vector<16x1xf32> -> vector<16x1xf32>
    %624 = arith.truncf %620 : vector<16x16xf32> to vector<16x16xbf16>
    %cst_163 = arith.constant dense<0.000000e+00> : vector<16x32xf32>
    %625 = tpu.matmul %624, %612, %cst_163 {dimension_numbers = #tpu.dot_dimension_numbers<[1], [0], [0], [1], [0, 0, 1, 1], [], []>} : vector<16x16xbf16>, vector<16x32xbf16>, vector<16x32xf32> -> vector<16x32xf32>
    %626 = vector.broadcast %623 : vector<16x1xf32> to vector<16x32xf32>
    %627 = arith.mulf %625, %626 : vector<16x32xf32>
    %628 = arith.truncf %627 : vector<16x32xf32> to vector<16x32xbf16>
    %629 = tpu.concatenate %571, %590, %609, %628 in 1 : vector<16x32xbf16>, vector<16x32xbf16>, vector<16x32xbf16>, vector<16x32xbf16> -> vector<16x128xbf16>
    %630 = tpu.concatenate %90, %167, %244, %321, %398, %475, %552, %629 in 0 : vector<16x128xbf16>, vector<16x128xbf16>, vector<16x128xbf16>, vector<16x128xbf16>, vector<16x128xbf16>, vector<16x128xbf16>, vector<16x128xbf16>, vector<16x128xbf16> -> vector<128x128xbf16>
    %c0_164 = arith.constant 0 : index
    %c0_165 = arith.constant 0 : index
    %631 = vector.load %arg3[%c0_164, %c0_165] : memref<128x128xbf16, #tpu.memory_space<vmem>>, vector<128x128xbf16>
    %cst_166 = arith.constant dense<0.000000e+00> : vector<128x128xf32>
    %632 = tpu.matmul %630, %631, %cst_166 {dimension_numbers = #tpu.dot_dimension_numbers<[1], [0], [0], [1], [0, 0, 1, 1], [], []>} : vector<128x128xbf16>, vector<128x128xbf16>, vector<128x128xf32> -> vector<128x128xf32>
    %c0_167 = arith.constant 0 : index
    %c0_168 = arith.constant 0 : index
    %633 = vector.load %arg4[%c0_167, %c0_168] : memref<1x128xf32, #tpu.memory_space<vmem>>, vector<1x128xf32>
    %634 = vector.broadcast %633 : vector<1x128xf32> to vector<128x128xf32>
    %635 = arith.addf %632, %634 : vector<128x128xf32>
    %636 = vector.shape_cast %635 : vector<128x128xf32> to vector<8x16x128xf32>
    %c0_169 = arith.constant 0 : index
    %c0_170 = arith.constant 0 : index
    %c0_171 = arith.constant 0 : index
    %637 = vector.load %arg5[%c0_169, %c0_170, %c0_171] : memref<8x16x128xf32, #tpu.memory_space<vmem>>, vector<8x16x128xf32>
    tpu.vector_store %arg5[%c0_169, %c0_170, %c0_171], %636 {strides = array<i32>} : memref<8x16x128xf32, #tpu.memory_space<vmem>>, vector<8x16x128xf32>,
    return
  }
  func.func @transform_0(%arg0: i32) -> (i32, i32, i32) {
    %c0_i32 = arith.constant 0 : i32
    %c0_i32_0 = arith.constant 0 : i32
    %c0_i32_1 = arith.constant 0 : i32
    return %arg0, %c0_i32, %c0_i32_0 : i32, i32, i32
  }
  func.func @transform_1(%arg0: i32) -> (i32, i32) {
    %c0_i32 = arith.constant 0 : i32
    %c0_i32_0 = arith.constant 0 : i32
    %c0_i32_1 = arith.constant 0 : i32
    return %c0_i32, %c0_i32_0 : i32, i32
  }
  func.func @transform_2(%arg0: i32) -> (i32, i32) {
    %c0_i32 = arith.constant 0 : i32
    %c0_i32_0 = arith.constant 0 : i32
    %c0_i32_1 = arith.constant 0 : i32
    return %c0_i32, %c0_i32_0 : i32, i32
  }
  func.func @transform_3(%arg0: i32) -> (i32, i32) {
    %c0_i32 = arith.constant 0 : i32
    %c0_i32_0 = arith.constant 0 : i32
    %c0_i32_1 = arith.constant 0 : i32
    return %c0_i32, %c0_i32_0 : i32, i32
  }
  func.func @transform_4(%arg0: i32) -> (i32, i32, i32) {
    %c0_i32 = arith.constant 0 : i32
    %c0_i32_0 = arith.constant 0 : i32
    %c0_i32_1 = arith.constant 0 : i32
    return %arg0, %c0_i32, %c0_i32_0 : i32, i32, i32
  }
}

</mosaic_0001>

<llo_original>
// kernel: tpu_custom_call.1
$region0: #{tpu_custom_call.1}
  #allocation0 [shape = 'u32[]', space=smem, size = 0x4, offset = 0x4, fixed_abs, tag = 'smem constant byte address 0x4 - core index']
  #allocation1 [shape = 'u32[72,128]{1,0:T(1,128)}', space=vmem, size = 0x9000, scoped, tag = 'internal scratch']
  %s0 = inlined_call_operand.hbm [shape: f32[16,16,128], index: 0, kind: input, shape index: {}]
  %s1 = inlined_call_operand.hbm [shape: bf16[128,384], index: 1, kind: input, shape index: {}]
  %s2 = inlined_call_operand.hbm [shape: bf16[128,128], index: 2, kind: input, shape index: {}]
  %s3 = inlined_call_operand.vmem [shape: f32[1,128], index: 3, kind: input, shape index: {}]
  %s4 = inlined_call_operand.hbm [shape: f32[16,16,128], index: 4, kind: output, shape index: {}]
  %s5 = sld [smem:[#allocation0]]
  $region61: #{tpu_custom_call.1} parent=0
    _
  %s7 = ssub.s32 1, %s5
  %s8 = scalar_select 0, %s7, %s5
  $region1: #{tpu_custom_call.1} parent=0
    #allocation2 [shape = 'u8[131072]{0}', space=vmem, size = 0x20000, scoped, tag = 'input window, operand 0']
    #allocation3 [shape = 's32[2]{0}', space=sflag, size = 0x8, scoped, tag = 'scoped memory for tpu_custom_call.1']
    #allocation4 [shape = 's32[2]{0}', space=sflag, size = 0x8, scoped, tag = 'scoped memory for tpu_custom_call.1']
    #allocation5 [shape = 'u8[98304]{0}', space=vmem, size = 0x18000, scoped, tag = 'input window, operand 1, single buffered']
    #allocation6 [shape = 's32[1]{0}', space=sflag, size = 0x4, scoped, tag = 'scoped memory for tpu_custom_call.1']
    #allocation7 [shape = 'u8[32768]{0}', space=vmem, size = 0x8000, scoped, tag = 'input window, operand 2, single buffered']
    #allocation8 [shape = 'u8[131072]{0}', space=vmem, size = 0x20000, scoped, tag = 'output window, operand 0']
    %9 = vsyncpa [#allocation3], 0
    %s10 = scalar_lea.sflag [#allocation3], 1
    %11 = vsyncpa %s10, 0
    %12 = vsyncpa [#allocation6], 0
    %13 = vsyncpa [#allocation4], 0
    %s14 = scalar_lea.sflag [#allocation4], 1
    %15 = vsyncpa %s14, 0
    loop: start=0, step=1, limit=4
    $region2: #{tpu_custom_call.1} parent=1 // loop_pre_header
      _
    $region3: #{tpu_custom_call.1} parent=1 // loop_header
      %s17 = sphi 0, %s21
      %p18 = scmp.ge.s32.totalorder %s17, 4
      %s27 = sphi 0, %s29
      %s30 = sphi 0, %s27
      %s31 = sphi 0, %s30
      %s47 = sphi 0, %s31
      %s51 = sphi 0, %s51
      %s53 = sphi 0, %s51
      %s54 = sphi 0, %s53
      %s68 = sphi 0, %s54
      %s72 = sphi 0, %s72
      %s74 = sphi 0, %s72
      %s75 = sphi 0, %s74
      %s89 = sphi 0, %s75
      %s93 = sphi 0, %s93
      %s95 = sphi 0, %s93
      %s96 = sphi 0, %s95
      %s110 = sphi 0, %s96
      %s116 = sphi 0, %s118
      %s119 = sphi 0, %s116
      %s120 = sphi 0, %s119
      %s136 = sphi 0, %s120
    $region4: #{tpu_custom_call.1} parent=1 // loop_header_branch
      %20 = sbr.rel (%p18) target = $region8
    $region5: #{tpu_custom_call.1} parent=1 // loop_body
      %s22 = ssub.s32 %s17, 1
      %s23 = ssub.s32 %s17, 2
      %s24 = sadd.s32 %s17, 1
      %s25 = ssub.s32 %s17, %s24
      %p26 = scmp.eq.s32.totalorder %s25, 0
      %s28 = sadd.s32 %s27, 1
      %s29 = scalar_select %p26, %s27, %s28
      %p32 = pneg %p26
      %p33 = scmp.eq.s32.totalorder %s17, 1
      %p34 = por %p32, %p33
      %p35 = scmp.ne.s32.totalorder %s27, %s30
      %p36 = scmp.eq.s32.totalorder %s17, 0
      %p37 = por %p35, %p36
      %p38 = scmp.ne.s32.totalorder %s27, %s30
      %p39 = scmp.eq.s32.totalorder %s22, 1
      %p40 = por %p38, %p39
      %p41 = scmp.ne.s32.totalorder %s30, %s31
      %p42 = scmp.eq.s32.totalorder %s22, 0
      %p43 = por %p41, %p42
      %p44 = scmp.ne.s32.totalorder %s30, %s31
      %p45 = scmp.eq.s32.totalorder %s23, 1
      %p46 = por %p44, %p45
      %p48 = scmp.ne.s32.totalorder %s31, %s47
      %p49 = scmp.eq.s32.totalorder %s23, 0
      %p50 = por %p48, %p49
      %s52 = sadd.s32 %s51, 1
      %p55 = scmp.eq.s32.totalorder %s17, 1
      %p56 = scmp.ne.s32.totalorder %s51, %s53
      %p57 = scmp.eq.s32.totalorder %s17, 0
      %p58 = por %p56, %p57
      %p59 = scmp.ne.s32.totalorder %s51, %s53
      %p60 = scmp.eq.s32.totalorder %s22, 1
      %p61 = por %p59, %p60
      %p62 = scmp.ne.s32.totalorder %s53, %s54
      %p63 = scmp.eq.s32.totalorder %s22, 0
      %p64 = por %p62, %p63
      %p65 = scmp.ne.s32.totalorder %s53, %s54
      %p66 = scmp.eq.s32.totalorder %s23, 1
      %p67 = por %p65, %p66
      %p69 = scmp.ne.s32.totalorder %s54, %s68
      %p70 = scmp.eq.s32.totalorder %s23, 0
      %p71 = por %p69, %p70
      %s73 = sadd.s32 %s72, 1
      %p76 = scmp.eq.s32.totalorder %s17, 1
      %p77 = scmp.ne.s32.totalorder %s72, %s74
      %p78 = scmp.eq.s32.totalorder %s17, 0
      %p79 = por %p77, %p78
      %p80 = scmp.ne.s32.totalorder %s72, %s74
      %p81 = scmp.eq.s32.totalorder %s22, 1
      %p82 = por %p80, %p81
      %p83 = scmp.ne.s32.totalorder %s74, %s75
      %p84 = scmp.eq.s32.totalorder %s22, 0
      %p85 = por %p83, %p84
      %p86 = scmp.ne.s32.totalorder %s74, %s75
      %p87 = scmp.eq.s32.totalorder %s23, 1
      %p88 = por %p86, %p87
      %p90 = scmp.ne.s32.totalorder %s75, %s89
      %p91 = scmp.eq.s32.totalorder %s23, 0
      %p92 = por %p90, %p91
      %s94 = sadd.s32 %s93, 1
      %p97 = scmp.eq.s32.totalorder %s17, 1
      %p98 = scmp.ne.s32.totalorder %s93, %s95
      %p99 = scmp.eq.s32.totalorder %s17, 0
      %p100 = por %p98, %p99
      %p101 = scmp.ne.s32.totalorder %s93, %s95
      %p102 = scmp.eq.s32.totalorder %s22, 1
      %p103 = por %p101, %p102
      %p104 = scmp.ne.s32.totalorder %s95, %s96
      %p105 = scmp.eq.s32.totalorder %s22, 0
      %p106 = por %p104, %p105
      %p107 = scmp.ne.s32.totalorder %s95, %s96
      %p108 = scmp.eq.s32.totalorder %s23, 1
      %p109 = por %p107, %p108
      %p111 = scmp.ne.s32.totalorder %s96, %s110
      %p112 = scmp.eq.s32.totalorder %s23, 0
      %p113 = por %p111, %p112
      %s114 = ssub.s32 %s17, %s24
      %p115 = scmp.eq.s32.totalorder %s114, 0
      %s117 = sadd.s32 %s116, 1
      %s118 = scalar_select %p115, %s116, %s117
      %p121 = pneg %p115
      %p122 = scmp.eq.s32.totalorder %s17, 1
      %p123 = por %p121, %p122
      %p124 = scmp.ne.s32.totalorder %s116, %s119
      %p125 = scmp.eq.s32.totalorder %s17, 0
      %p126 = por %p124, %p125
      %p127 = scmp.ne.s32.totalorder %s116, %s119
      %p128 = scmp.eq.s32.totalorder %s22, 1
      %p129 = por %p127, %p128
      %p130 = scmp.ne.s32.totalorder %s119, %s120
      %p131 = scmp.eq.s32.totalorder %s22, 0
      %p132 = por %p130, %p131
      %p133 = scmp.ne.s32.totalorder %s119, %s120
      %p134 = scmp.eq.s32.totalorder %s23, 1
      %p135 = por %p133, %p134
      %p137 = scmp.ne.s32.totalorder %s120, %s136
      %p138 = scmp.eq.s32.totalorder %s23, 0
      %p139 = por %p137, %p138
      %p140 = scmp.le.s32.totalorder 1, %s17
      %p141 = scmp.lt.s32.totalorder %s17, 3
      %p142 = pnand %p140, %p141
      %p143 = pneg %p142
      // Predicated region
      $region9: #{tpu_custom_call.1} parent=5 // pred_check
        _
      $region10: #{tpu_custom_call.1} parent=5 // pred_check_branch
        %145 = sbr.rel (%p142) target = $region12
      $region11: #{tpu_custom_call.1} parent=5 // pred_region
        %s146 = ssub.s32 %s17, 1
        // Predicated region
        $region13: #{tpu_custom_call.1} parent=11 // pred_check
          %p147 = pneg %p64
        $region14: #{tpu_custom_call.1} parent=11 // pred_check_branch
          %149 = sbr.rel (%p147) target = $region16
        $region15: #{tpu_custom_call.1} parent=11 // pred_region
          %151 = vsyncadd [#allocation6], 0
          %s152 = sshll.u32 %s1, 4
          %s153 = int_to_ptr.hbm [resolvable:$true] %s152
          %s154 = sshll.u32 [#allocation5], 4
          %s155 = int_to_ptr.vmem [resolvable:$true] %s154
          %160 = dma.hbm_to_vmem [thread:$0]  %s153, 3072, %s155, [#allocation6], 192, 192, 12
        $region16: #{tpu_custom_call.1} parent=11 // pred_fallthru
          _
        // Predicated region
        $region17: #{tpu_custom_call.1} parent=11 // pred_check
          %p161 = pneg %p85
        $region18: #{tpu_custom_call.1} parent=11 // pred_check_branch
          %163 = sbr.rel (%p161) target = $region20
        $region19: #{tpu_custom_call.1} parent=11 // pred_region
          %165 = vsyncadd [#allocation6], 0
          %s166 = sshll.u32 %s2, 4
          %s167 = int_to_ptr.hbm [resolvable:$true] %s166
          %s168 = sshll.u32 [#allocation7], 4
          %s169 = int_to_ptr.vmem [resolvable:$true] %s168
          %174 = dma.hbm_to_vmem [thread:$0]  %s167, 1024, %s169, [#allocation6], 64, 64, 4
        $region20: #{tpu_custom_call.1} parent=11 // pred_fallthru
          _
        // Predicated region
        $region21: #{tpu_custom_call.1} parent=11 // pred_check
          %p175 = pneg %p106
        $region22: #{tpu_custom_call.1} parent=11 // pred_check_branch
          %177 = sbr.rel (%p175) target = $region24
        $region23: #{tpu_custom_call.1} parent=11 // pred_region
          _
        $region24: #{tpu_custom_call.1} parent=11 // pred_fallthru
          _
      $region12: #{tpu_custom_call.1} parent=5 // pred_fallthru
        _
      %p178 = scmp.lt.s32.totalorder %s17, 2
      // Predicated region
      $region25: #{tpu_custom_call.1} parent=5 // pred_check
        %p179 = pneg %p178
      $region26: #{tpu_custom_call.1} parent=5 // pred_check_branch
        %181 = sbr.rel (%p179) target = $region28
      $region27: #{tpu_custom_call.1} parent=5 // pred_region
        // Predicated region
        $region29: #{tpu_custom_call.1} parent=27 // pred_check
          %p182 = pneg %p37
        $region30: #{tpu_custom_call.1} parent=27 // pred_check_branch
          %184 = sbr.rel (%p182) target = $region32
        $region31: #{tpu_custom_call.1} parent=27 // pred_region
          %s185 = sand.u32 %s27, 1
          %s186 = scalar_lea.sflag [#allocation3], %s185
          %s187 = sand.u32 %s27, 1
          %s188 = smul.addr %s187, 128
          %s189 = scalar_lea.vmem [#allocation2], %s188
          %s190 = smul.u32 8, %s17
          %192 = vsyncadd %s186, 0
          %s193 = smul.addr %s190, 2
          %s194 = smul.addr %s193, 8
          %s195 = scalar_lea.hbm %s0, %s194
          %s196 = sshll.u32 %s195, 4
          %s197 = int_to_ptr.hbm [resolvable:$true] %s196
          %s198 = sshll.u32 %s189, 4
          %s199 = int_to_ptr.vmem [resolvable:$true] %s198
          %204 = dma.hbm_to_vmem [thread:$0]  %s197, 2048, %s199, %s186, 128, 128, 8
        $region32: #{tpu_custom_call.1} parent=27 // pred_fallthru
          _
      $region28: #{tpu_custom_call.1} parent=5 // pred_fallthru
        _
      %p205 = scmp.le.s32.totalorder 1, %s17
      %p206 = scmp.lt.s32.totalorder %s17, 3
      %p207 = pnand %p205, %p206
      %p208 = pneg %p207
      // Predicated region
      $region33: #{tpu_custom_call.1} parent=5 // pred_check
        _
      $region34: #{tpu_custom_call.1} parent=5 // pred_check_branch
        %210 = sbr.rel (%p207) target = $region36
      $region35: #{tpu_custom_call.1} parent=5 // pred_region
        %s211 = ssub.s32 %s17, 1
        %s212 = sand.u32 %s30, 1
        %s213 = scalar_lea.sflag [#allocation3], %s212
        %s214 = sand.u32 %s30, 1
        %s215 = smul.addr %s214, 128
        %s216 = scalar_lea.vmem [#allocation2], %s215
        // Predicated region
        $region37: #{tpu_custom_call.1} parent=35 // pred_check
          %p217 = pneg %p43
        $region38: #{tpu_custom_call.1} parent=35 // pred_check_branch
          %219 = sbr.rel (%p217) target = $region40
        $region39: #{tpu_custom_call.1} parent=35 // pred_region
          %221 = dma.done %s213, 2048
        $region40: #{tpu_custom_call.1} parent=35 // pred_fallthru
          _
        // Predicated region
        $region41: #{tpu_custom_call.1} parent=35 // pred_check
          %p222 = pneg %p64
        $region42: #{tpu_custom_call.1} parent=35 // pred_check_branch
          %224 = sbr.rel (%p222) target = $region44
        $region43: #{tpu_custom_call.1} parent=35 // pred_region
          %226 = dma.done [#allocation6], 3072
        $region44: #{tpu_custom_call.1} parent=35 // pred_fallthru
          _
        // Predicated region
        $region45: #{tpu_custom_call.1} parent=35 // pred_check
          %p227 = pneg %p85
        $region46: #{tpu_custom_call.1} parent=35 // pred_check_branch
          %229 = sbr.rel (%p227) target = $region48
        $region47: #{tpu_custom_call.1} parent=35 // pred_region
          %231 = dma.done [#allocation6], 1024
        $region48: #{tpu_custom_call.1} parent=35 // pred_fallthru
          _
        %s232 = sand.u32 %s30, 1
        %s233 = scalar_lea.sflag [#allocation3], %s232
        %s234 = sand.u32 %s30, 1
        %s235 = smul.addr %s234, 128
        %s236 = scalar_lea.vmem [#allocation2], %s235
        %p237 = pneg %p43
        %p238 = pneg %p40
        %p239 = pneg %p64
        %p240 = pneg %p61
        %p241 = pneg %p85
        %p242 = pneg %p82
        %p243 = pneg %p106
        %p244 = pneg %p103
        %p245 = pneg %p132
        %p246 = pneg %p129
        %s247 = sand.u32 %s119, 1
        %s248 = scalar_lea.sflag [#allocation4], %s247
        %s249 = sand.u32 %s119, 1
        %s250 = smul.addr %s249, 128
        %s251 = scalar_lea.vmem [#allocation8], %s250
        %s252 = smul.u32 8, %s22
        %s253 = smul.u32 8, %s22
        %v255 = vld [vmem:[%s216] sm:$0xff]
        %v256 = vld [vmem:[%s216 + $0x8] sm:$0xff]
        %v257 = vld [vmem:[%s216 + $0x10] sm:$0xff]
        %v258 = vld [vmem:[%s216 + $0x18] sm:$0xff]
        %v259 = vld [vmem:[%s216 + $0x20] sm:$0xff]
        %v260 = vld [vmem:[%s216 + $0x28] sm:$0xff]
        %v261 = vld [vmem:[%s216 + $0x30] sm:$0xff]
        %v262 = vld [vmem:[%s216 + $0x38] sm:$0xff]
        %v263 = vld [vmem:[%s216 + $0x40] sm:$0xff]
        %v264 = vld [vmem:[%s216 + $0x48] sm:$0xff]
        %v265 = vld [vmem:[%s216 + $0x50] sm:$0xff]
        %v266 = vld [vmem:[%s216 + $0x58] sm:$0xff]
        %v267 = vld [vmem:[%s216 + $0x60] sm:$0xff]
        %v268 = vld [vmem:[%s216 + $0x68] sm:$0xff]
        %v269 = vld [vmem:[%s216 + $0x70] sm:$0xff]
        %v270 = vld [vmem:[%s216 + $0x78] sm:$0xff]
        %v271 = vpack.c.bf16 %v256, %v255
        %v272 = vpack.c.bf16 %v258, %v257
        %v273 = vpack.c.bf16 %v260, %v259
        %v274 = vpack.c.bf16 %v262, %v261
        %v275 = vpack.c.bf16 %v264, %v263
        %v276 = vpack.c.bf16 %v266, %v265
        %v277 = vpack.c.bf16 %v268, %v267
        %v278 = vpack.c.bf16 %v270, %v269
        %v279 = vld [vmem:[#allocation5] sm:$0xff]
        %v280 = vld [vmem:[#allocation5 + $0x8] sm:$0xf]
        %v281 = vld [vmem:[#allocation5 + $0xc] sm:$0xff]
        %v282 = vld [vmem:[#allocation5 + $0x14] sm:$0xf]
        %v283 = vld [vmem:[#allocation5 + $0x18] sm:$0xff]
        %v284 = vld [vmem:[#allocation5 + $0x20] sm:$0xf]
        %v285 = vld [vmem:[#allocation5 + $0x24] sm:$0xff]
        %v286 = vld [vmem:[#allocation5 + $0x2c] sm:$0xf]
        %v287 = vld [vmem:[#allocation5 + $0x30] sm:$0xff]
        %v288 = vld [vmem:[#allocation5 + $0x38] sm:$0xf]
        %v289 = vld [vmem:[#allocation5 + $0x3c] sm:$0xff]
        %v290 = vld [vmem:[#allocation5 + $0x44] sm:$0xf]
        %v291 = vld [vmem:[#allocation5 + $0x48] sm:$0xff]
        %v292 = vld [vmem:[#allocation5 + $0x50] sm:$0xf]
        %v293 = vld [vmem:[#allocation5 + $0x54] sm:$0xff]
        %v294 = vld [vmem:[#allocation5 + $0x5c] sm:$0xf]
        %v295 = vld [vmem:[#allocation5 + $0x60] sm:$0xff]
        %v296 = vld [vmem:[#allocation5 + $0x68] sm:$0xf]
        %v297 = vld [vmem:[#allocation5 + $0x6c] sm:$0xff]
        %v298 = vld [vmem:[#allocation5 + $0x74] sm:$0xf]
        %v299 = vld [vmem:[#allocation5 + $0x78] sm:$0xff]
        %v300 = vld [vmem:[#allocation5 + $0x80] sm:$0xf]
        %v301 = vld [vmem:[#allocation5 + $0x84] sm:$0xff]
        %v302 = vld [vmem:[#allocation5 + $0x8c] sm:$0xf]
        %v303 = vld [vmem:[#allocation5 + $0x90] sm:$0xff]
        %v304 = vld [vmem:[#allocation5 + $0x98] sm:$0xf]
        %v305 = vld [vmem:[#allocation5 + $0x9c] sm:$0xff]
        %v306 = vld [vmem:[#allocation5 + $0xa4] sm:$0xf]
        %v307 = vld [vmem:[#allocation5 + $0xa8] sm:$0xff]
        %v308 = vld [vmem:[#allocation5 + $0xb0] sm:$0xf]
        %v309 = vld [vmem:[#allocation5 + $0xb4] sm:$0xff]
        %v310 = vld [vmem:[#allocation5 + $0xbc] sm:$0xf]
        %v343 = vunpack.c.l.b16 %v279
        %v344 = vunpack.c.h.b16 %v279
        %v345 = vunpack.c.l.b16 %v280
        %v346 = vunpack.c.l.b16 %v281
        %v347 = vunpack.c.h.b16 %v281
        %v348 = vunpack.c.l.b16 %v282
        %v349 = vunpack.c.l.b16 %v283
        %v350 = vunpack.c.h.b16 %v283
        %v351 = vunpack.c.l.b16 %v284
        %v352 = vunpack.c.l.b16 %v285
        %v353 = vunpack.c.h.b16 %v285
        %v354 = vunpack.c.l.b16 %v286
        %v355 = vunpack.c.l.b16 %v287
        %v356 = vunpack.c.h.b16 %v287
        %v357 = vunpack.c.l.b16 %v288
        %v358 = vunpack.c.l.b16 %v289
        %v359 = vunpack.c.h.b16 %v289
        %v360 = vunpack.c.l.b16 %v290
        %v361 = vunpack.c.l.b16 %v291
        %v362 = vunpack.c.h.b16 %v291
        %v363 = vunpack.c.l.b16 %v292
        %v364 = vunpack.c.l.b16 %v293
        %v365 = vunpack.c.h.b16 %v293
        %v366 = vunpack.c.l.b16 %v294
        %v367 = vunpack.c.l.b16 %v295
        %v368 = vunpack.c.h.b16 %v295
        %v369 = vunpack.c.l.b16 %v296
        %v370 = vunpack.c.l.b16 %v297
        %v371 = vunpack.c.h.b16 %v297
        %v372 = vunpack.c.l.b16 %v298
        %v373 = vunpack.c.l.b16 %v299
        %v374 = vunpack.c.h.b16 %v299
        %v375 = vunpack.c.l.b16 %v300
        %v376 = vunpack.c.l.b16 %v301
        %v377 = vunpack.c.h.b16 %v301
        %v378 = vunpack.c.l.b16 %v302
        %v379 = vunpack.c.l.b16 %v303
        %v380 = vunpack.c.h.b16 %v303
        %v381 = vunpack.c.l.b16 %v304
        %v382 = vunpack.c.l.b16 %v305
        %v383 = vunpack.c.h.b16 %v305
        %v384 = vunpack.c.l.b16 %v306
        %v385 = vunpack.c.l.b16 %v307
        %v386 = vunpack.c.h.b16 %v307
        %v387 = vunpack.c.l.b16 %v308
        %v388 = vunpack.c.l.b16 %v309
        %v389 = vunpack.c.h.b16 %v309
        %v390 = vunpack.c.l.b16 %v310
        %v391 = vpack.c.b16 %v346, %v343
        %v392 = vpack.c.b16 %v347, %v344
        %v393 = vpack.c.b16 %v348, %v345
        %v394 = vpack.c.b16 %v352, %v349
        %v395 = vpack.c.b16 %v353, %v350
        %v396 = vpack.c.b16 %v354, %v351
        %v397 = vpack.c.b16 %v358, %v355
        %v398 = vpack.c.b16 %v359, %v356
        %v399 = vpack.c.b16 %v360, %v357
        %v400 = vpack.c.b16 %v364, %v361
        %v401 = vpack.c.b16 %v365, %v362
        %v402 = vpack.c.b16 %v366, %v363
        %v403 = vpack.c.b16 %v370, %v367
        %v404 = vpack.c.b16 %v371, %v368
        %v405 = vpack.c.b16 %v372, %v369
        %v406 = vpack.c.b16 %v376, %v373
        %v407 = vpack.c.b16 %v377, %v374
        %v408 = vpack.c.b16 %v378, %v375
        %v409 = vpack.c.b16 %v382, %v379
        %v410 = vpack.c.b16 %v383, %v380
        %v411 = vpack.c.b16 %v384, %v381
        %v412 = vpack.c.b16 %v388, %v385
        %v413 = vpack.c.b16 %v389, %v386
        %v414 = vpack.c.b16 %v390, %v387
        %439 = vmatpush.bf16.msra.mxu0 %v412
        %440 = vmatpush.bf16.msra.mxu0 %v409
        %441 = vmatpush.bf16.msra.mxu0 %v406
        %442 = vmatpush.bf16.msra.mxu0 %v403
        %443 = vmatpush.bf16.msra.mxu0 %v400
        %444 = vmatpush.bf16.msra.mxu0 %v397
        %445 = vmatpush.bf16.msra.mxu0 %v394
        %446 = vmatpush.bf16.msra.mxu0 %v391
        %447 = vmatmul.bf16.gmra.mxu0 %v271
        %v448 = vpop.f32.mrf.mxu0
        %v449 = vadd.f32 0.0, %v448
        %v450 = vpop.f32.mrf.mxu0
        %v451 = vadd.f32 0.0, %v450
        %452 = vmatmul.bf16.gmra.mxu0 %v272
        %v453 = vpop.f32.mrf.mxu0
        %v454 = vadd.f32 0.0, %v453
        %v455 = vpop.f32.mrf.mxu0
        %v456 = vadd.f32 0.0, %v455
        %457 = vmatmul.bf16.gmra.mxu0 %v273
        %v458 = vpop.f32.mrf.mxu0
        %v459 = vadd.f32 0.0, %v458
        %v460 = vpop.f32.mrf.mxu0
        %v461 = vadd.f32 0.0, %v460
        %462 = vmatmul.bf16.gmra.mxu0 %v274
        %v463 = vpop.f32.mrf.mxu0
        %v464 = vadd.f32 0.0, %v463
        %v465 = vpop.f32.mrf.mxu0
        %v466 = vadd.f32 0.0, %v465
        %467 = vmatmul.bf16.gmra.mxu0 %v275
        %v468 = vpop.f32.mrf.mxu0
        %v469 = vadd.f32 0.0, %v468
        %v470 = vpop.f32.mrf.mxu0
        %v471 = vadd.f32 0.0, %v470
        %472 = vmatmul.bf16.gmra.mxu0 %v276
        %v473 = vpop.f32.mrf.mxu0
        %v474 = vadd.f32 0.0, %v473
        %v475 = vpop.f32.mrf.mxu0
        %v476 = vadd.f32 0.0, %v475
        %477 = vmatmul.bf16.gmra.mxu0 %v277
        %v478 = vpop.f32.mrf.mxu0
        %v479 = vadd.f32 0.0, %v478
        %v480 = vpop.f32.mrf.mxu0
        %v481 = vadd.f32 0.0, %v480
        %482 = vmatmul.bf16.gmra.mxu0 %v278
        %v483 = vpop.f32.mrf.mxu0
        %v484 = vadd.f32 0.0, %v483
        %v485 = vpop.f32.mrf.mxu0
        %v486 = vadd.f32 0.0, %v485
        %487 = vdwg.mxu0
        %488 = vmatpush.bf16.msra.mxu0 %v413
        %489 = vmatpush.bf16.msra.mxu0 %v410
        %490 = vmatpush.bf16.msra.mxu0 %v407
        %491 = vmatpush.bf16.msra.mxu0 %v404
        %492 = vmatpush.bf16.msra.mxu0 %v401
        %493 = vmatpush.bf16.msra.mxu0 %v398
        %494 = vmatpush.bf16.msra.mxu0 %v395
        %495 = vmatpush.bf16.msra.mxu0 %v392
        %496 = vmatmul.bf16.gmra.mxu0 %v271
        %v497 = vpop.f32.mrf.mxu0
        %v498 = vadd.f32 0.0, %v497
        %v499 = vpop.f32.mrf.mxu0
        %v500 = vadd.f32 0.0, %v499
        %501 = vmatmul.bf16.gmra.mxu0 %v272
        %v502 = vpop.f32.mrf.mxu0
        %v503 = vadd.f32 0.0, %v502
        %v504 = vpop.f32.mrf.mxu0
        %v505 = vadd.f32 0.0, %v504
        %506 = vmatmul.bf16.gmra.mxu0 %v273
        %v507 = vpop.f32.mrf.mxu0
        %v508 = vadd.f32 0.0, %v507
        %v509 = vpop.f32.mrf.mxu0
        %v510 = vadd.f32 0.0, %v509
        %511 = vmatmul.bf16.gmra.mxu0 %v274
        %v512 = vpop.f32.mrf.mxu0
        %v513 = vadd.f32 0.0, %v512
        %v514 = vpop.f32.mrf.mxu0
        %v515 = vadd.f32 0.0, %v514
        %516 = vmatmul.bf16.gmra.mxu0 %v275
        %v517 = vpop.f32.mrf.mxu0
        %v518 = vadd.f32 0.0, %v517
        %v519 = vpop.f32.mrf.mxu0
        %v520 = vadd.f32 0.0, %v519
        %521 = vmatmul.bf16.gmra.mxu0 %v276
        %v522 = vpop.f32.mrf.mxu0
        %v523 = vadd.f32 0.0, %v522
        %v524 = vpop.f32.mrf.mxu0
        %v525 = vadd.f32 0.0, %v524
        %526 = vmatmul.bf16.gmra.mxu0 %v277
        %v527 = vpop.f32.mrf.mxu0
        %v528 = vadd.f32 0.0, %v527
        %v529 = vpop.f32.mrf.mxu0
        %v530 = vadd.f32 0.0, %v529
        %531 = vmatmul.bf16.gmra.mxu0 %v278
        %v532 = vpop.f32.mrf.mxu0
        %v533 = vadd.f32 0.0, %v532
        %v534 = vpop.f32.mrf.mxu0
        %v535 = vadd.f32 0.0, %v534
        %536 = vdwg.mxu0
        %537 = vmatpush.bf16.msra.mxu0 %v414
        %538 = vmatpush.bf16.msra.mxu0 %v411
        %539 = vmatpush.bf16.msra.mxu0 %v408
        %540 = vmatpush.bf16.msra.mxu0 %v405
        %541 = vmatpush.bf16.msra.mxu0 %v402
        %542 = vmatpush.bf16.msra.mxu0 %v399
        %543 = vmatpush.bf16.msra.mxu0 %v396
        %544 = vmatpush.bf16.msra.mxu0 %v393
        %545 = vmatmul.bf16.gmra.mxu0 %v271
        %v546 = vpop.f32.mrf.mxu0
        %v547 = vadd.f32 0.0, %v546
        %v548 = vpop.f32.mrf.mxu0
        %v549 = vadd.f32 0.0, %v548
        %550 = vmatmul.bf16.gmra.mxu0 %v272
        %v551 = vpop.f32.mrf.mxu0
        %v552 = vadd.f32 0.0, %v551
        %v553 = vpop.f32.mrf.mxu0
        %v554 = vadd.f32 0.0, %v553
        %555 = vmatmul.bf16.gmra.mxu0 %v273
        %v556 = vpop.f32.mrf.mxu0
        %v557 = vadd.f32 0.0, %v556
        %v558 = vpop.f32.mrf.mxu0
        %v559 = vadd.f32 0.0, %v558
        %560 = vmatmul.bf16.gmra.mxu0 %v274
        %v561 = vpop.f32.mrf.mxu0
        %v562 = vadd.f32 0.0, %v561
        %v563 = vpop.f32.mrf.mxu0
        %v564 = vadd.f32 0.0, %v563
        %565 = vmatmul.bf16.gmra.mxu0 %v275
        %v566 = vpop.f32.mrf.mxu0
        %v567 = vadd.f32 0.0, %v566
        %v568 = vpop.f32.mrf.mxu0
        %v569 = vadd.f32 0.0, %v568
        %570 = vmatmul.bf16.gmra.mxu0 %v276
        %v571 = vpop.f32.mrf.mxu0
        %v572 = vadd.f32 0.0, %v571
        %v573 = vpop.f32.mrf.mxu0
        %v574 = vadd.f32 0.0, %v573
        %575 = vmatmul.bf16.gmra.mxu0 %v277
        %v576 = vpop.f32.mrf.mxu0
        %v577 = vadd.f32 0.0, %v576
        %v578 = vpop.f32.mrf.mxu0
        %v579 = vadd.f32 0.0, %v578
        %580 = vmatmul.bf16.gmra.mxu0 %v278
        %v581 = vpop.f32.mrf.mxu0
        %v582 = vadd.f32 0.0, %v581
        %v583 = vpop.f32.mrf.mxu0
        %v584 = vadd.f32 0.0, %v583
        %585 = vdwg.mxu0
        %v586 = vpack.c.bf16 %v449, %v449
        %v587 = vpack.c.bf16 %v451, %v451
        %v588 = vpack.c.bf16 %v454, %v454
        %v589 = vpack.c.bf16 %v456, %v456
        %v590 = vpack.c.bf16 %v459, %v459
        %v591 = vpack.c.bf16 %v461, %v461
        %v592 = vpack.c.bf16 %v464, %v464
        %v593 = vpack.c.bf16 %v466, %v466
        %v594 = vpack.c.bf16 %v469, %v469
        %v595 = vpack.c.bf16 %v471, %v471
        %v596 = vpack.c.bf16 %v474, %v474
        %v597 = vpack.c.bf16 %v476, %v476
        %v598 = vpack.c.bf16 %v479, %v479
        %v599 = vpack.c.bf16 %v481, %v481
        %v600 = vpack.c.bf16 %v484, %v484
        %v601 = vpack.c.bf16 %v486, %v486
        %v602 = vpack.c.bf16 %v498, %v498
        %v603 = vpack.c.bf16 %v500, %v500
        %v604 = vpack.c.bf16 %v503, %v503
        %v605 = vpack.c.bf16 %v505, %v505
        %v606 = vpack.c.bf16 %v508, %v508
        %v607 = vpack.c.bf16 %v510, %v510
        %v608 = vpack.c.bf16 %v513, %v513
        %v609 = vpack.c.bf16 %v515, %v515
        %v610 = vpack.c.bf16 %v518, %v518
        %v611 = vpack.c.bf16 %v520, %v520
        %v612 = vpack.c.bf16 %v523, %v523
        %v613 = vpack.c.bf16 %v525, %v525
        %v614 = vpack.c.bf16 %v528, %v528
        %v615 = vpack.c.bf16 %v530, %v530
        %v616 = vpack.c.bf16 %v533, %v533
        %v617 = vpack.c.bf16 %v535, %v535
        %v618 = vpack.c.bf16 %v547, %v547
        %v619 = vpack.c.bf16 %v549, %v549
        %v620 = vpack.c.bf16 %v552, %v552
        %v621 = vpack.c.bf16 %v554, %v554
        %v622 = vpack.c.bf16 %v557, %v557
        %v623 = vpack.c.bf16 %v559, %v559
        %v624 = vpack.c.bf16 %v562, %v562
        %v625 = vpack.c.bf16 %v564, %v564
        %v626 = vpack.c.bf16 %v567, %v567
        %v627 = vpack.c.bf16 %v569, %v569
        %v628 = vpack.c.bf16 %v572, %v572
        %v629 = vpack.c.bf16 %v574, %v574
        %v630 = vpack.c.bf16 %v577, %v577
        %v631 = vpack.c.bf16 %v579, %v579
        %v632 = vpack.c.bf16 %v582, %v582
        %v633 = vpack.c.bf16 %v584, %v584
        %v634 = vlaneseq
        %v635 = vshrl.u32 %v634, 7
        %v636 = vadd.s32 %v635, 8
        %v637 = vlaneseq
        %v638 = vand.u32 %v637, 127
        %vm639 = vcmp.le.s32.totalorder %v638, %v635
        %vm640 = vcmp.le.s32.totalorder %v638, %v636
        %v643 = vunpack.c.l.b16 %v586
        %v644 = vunpack.c.l.b16 %v587
        %v645 = vpack.c.b16 %v644, %v643
        %v648 = vunpack.c.l.b16 %v602
        %v649 = vunpack.c.l.b16 %v603
        %v650 = vpack.c.b16 %v649, %v648
        %vm651 = vcmask 261120
        %v653 = vsel %vm651, %v645, 0
        %v656 = vsel %vm651, %v650, 0
        %658 = vmatpush.bf16.xpose.msra.mxu0 0
        %659 = vmatpush.bf16.xpose.msra.mxu0 0
        %660 = vmatpush.bf16.xpose.msra.mxu0 0
        %661 = vmatpush.bf16.xpose.msra.mxu0 0
        %662 = vmatpush.bf16.xpose.msra.mxu0 0
        %663 = vmatpush.bf16.xpose.msra.mxu0 0
        %664 = vmatpush.bf16.xpose.msra.mxu0 0
        %665 = vmatpush.bf16.xpose.msra.mxu0 %v656
        %666 = vmatmul.bf16.gmra.mxu0 %v653
        %v667 = vpop.f32.mrf.mxu0
        %v668 = vadd.f32 0.0, %v667
        %v669 = vpop.f32.mrf.mxu0
        %v670 = vadd.f32 0.0, %v669
        %671 = vdwg.mxu0
        %v672 = vsel %vm639, %v668, -1e+30
        %v673 = vsel %vm640, %v670, -1e+30
        %vm674 = vcmask 130048
        %v675 = vsel %vm674, %v672, -inf
        %676 = vmax.xlane.f32.xlu0 %v675
        %v677 = vpop.xlane.xlu0 %676
        %v678 = vsel %vm674, %v673, -inf
        %679 = vmax.xlane.f32.xlu0 %v678
        %v680 = vpop.xlane.xlu0 %679
        %v681 = vsub.f32 %v672, %v677
        %v682 = vsub.f32 %v673, %v680
        %v683 = vmul.f32 %v681, 1.442695
        %v684 = vpow.pop %v683
        %v685 = vmul.f32 %v682, 1.442695
        %v686 = vpow.pop %v685
        %v687 = vsel %vm674, %v684, 0.0
        %688 = vadd.xlane.f32.xlu0 %v687
        %v689 = vpop.xlane.xlu0 %688
        %v690 = vsel %vm674, %v686, 0.0
        %691 = vadd.xlane.f32.xlu0 %v690
        %v692 = vpop.xlane.xlu0 %691
        %v693 = vrcp.pop %v689
        %v694 = vrcp.pop %v692
        %v695 = vpack.c.bf16 %v686, %v684
        %v698 = vunpack.c.l.b16 %v618
        %v699 = vunpack.c.l.b16 %v619
        %v700 = vpack.c.b16 %v699, %v698
        %v703 = vsel %vm674, %v695, 0
        %705 = vmatpush.bf16.msra.mxu0 0
        %706 = vmatpush.bf16.msra.mxu0 0
        %707 = vmatpush.bf16.msra.mxu0 0
        %708 = vmatpush.bf16.msra.mxu0 0
        %709 = vmatpush.bf16.msra.mxu0 0
        %710 = vmatpush.bf16.msra.mxu0 0
        %711 = vmatpush.bf16.msra.mxu0 0
        %712 = vmatpush.bf16.msra.mxu0 %v700
        %713 = vmatmul.bf16.gmra.mxu0 %v703
        %v714 = vpop.f32.mrf.mxu0
        %v715 = vadd.f32 0.0, %v714
        %v716 = vpop.f32.mrf.mxu0
        %v717 = vadd.f32 0.0, %v716
        %718 = vdwg.mxu0
        %v719 = vmul.f32 %v715, %v693
        %v720 = vmul.f32 %v717, %v694
        %v721 = vpack.c.bf16 %v719, %v719
        %v722 = vpack.c.bf16 %v720, %v720
        %723 = vrot.lane.b32.xlu0 %v645, 96
        %v724 = vpop.permute.xlu0 %723
        %725 = vrot.lane.b32.xlu0 %v650, 96
        %v726 = vpop.permute.xlu0 %725
        %v728 = vsel %vm651, %v724, 0
        %v731 = vsel %vm651, %v726, 0
        %733 = vmatpush.bf16.xpose.msra.mxu0 0
        %734 = vmatpush.bf16.xpose.msra.mxu0 0
        %735 = vmatpush.bf16.xpose.msra.mxu0 0
        %736 = vmatpush.bf16.xpose.msra.mxu0 0
        %737 = vmatpush.bf16.xpose.msra.mxu0 0
        %738 = vmatpush.bf16.xpose.msra.mxu0 0
        %739 = vmatpush.bf16.xpose.msra.mxu0 0
        %740 = vmatpush.bf16.xpose.msra.mxu0 %v731
        %741 = vmatmul.bf16.gmra.mxu0 %v728
        %v742 = vpop.f32.mrf.mxu0
        %v743 = vadd.f32 0.0, %v742
        %v744 = vpop.f32.mrf.mxu0
        %v745 = vadd.f32 0.0, %v744
        %746 = vdwg.mxu0
        %v747 = vsel %vm639, %v743, -1e+30
        %v748 = vsel %vm640, %v745, -1e+30
        %v749 = vsel %vm674, %v747, -inf
        %750 = vmax.xlane.f32.xlu0 %v749
        %v751 = vpop.xlane.xlu0 %750
        %v752 = vsel %vm674, %v748, -inf
        %753 = vmax.xlane.f32.xlu0 %v752
        %v754 = vpop.xlane.xlu0 %753
        %v755 = vsub.f32 %v747, %v751
        %v756 = vsub.f32 %v748, %v754
        %v757 = vmul.f32 %v755, 1.442695
        %v758 = vpow.pop %v757
        %v759 = vmul.f32 %v756, 1.442695
        %v760 = vpow.pop %v759
        %v761 = vsel %vm674, %v758, 0.0
        %762 = vadd.xlane.f32.xlu0 %v761
        %v763 = vpop.xlane.xlu0 %762
        %v764 = vsel %vm674, %v760, 0.0
        %765 = vadd.xlane.f32.xlu0 %v764
        %v766 = vpop.xlane.xlu0 %765
        %v767 = vrcp.pop %v763
        %v768 = vrcp.pop %v766
        %v769 = vpack.c.bf16 %v760, %v758
        %770 = vrot.lane.b32.xlu0 %v700, 96
        %v771 = vpop.permute.xlu0 %770
        %v774 = vsel %vm674, %v769, 0
        %776 = vmatpush.bf16.msra.mxu0 0
        %777 = vmatpush.bf16.msra.mxu0 0
        %778 = vmatpush.bf16.msra.mxu0 0
        %779 = vmatpush.bf16.msra.mxu0 0
        %780 = vmatpush.bf16.msra.mxu0 0
        %781 = vmatpush.bf16.msra.mxu0 0
        %782 = vmatpush.bf16.msra.mxu0 0
        %783 = vmatpush.bf16.msra.mxu0 %v771
        %784 = vmatmul.bf16.gmra.mxu0 %v774
        %v785 = vpop.f32.mrf.mxu0
        %v786 = vadd.f32 0.0, %v785
        %v787 = vpop.f32.mrf.mxu0
        %v788 = vadd.f32 0.0, %v787
        %789 = vdwg.mxu0
        %v790 = vmul.f32 %v786, %v767
        %v791 = vmul.f32 %v788, %v768
        %v792 = vpack.c.bf16 %v790, %v790
        %v793 = vpack.c.bf16 %v791, %v791
        %794 = vrot.lane.b32.xlu0 %v645, 64
        %v795 = vpop.permute.xlu0 %794
        %796 = vrot.lane.b32.xlu0 %v650, 64
        %v797 = vpop.permute.xlu0 %796
        %v799 = vsel %vm651, %v795, 0
        %v802 = vsel %vm651, %v797, 0
        %804 = vmatpush.bf16.xpose.msra.mxu0 0
        %805 = vmatpush.bf16.xpose.msra.mxu0 0
        %806 = vmatpush.bf16.xpose.msra.mxu0 0
        %807 = vmatpush.bf16.xpose.msra.mxu0 0
        %808 = vmatpush.bf16.xpose.msra.mxu0 0
        %809 = vmatpush.bf16.xpose.msra.mxu0 0
        %810 = vmatpush.bf16.xpose.msra.mxu0 0
        %811 = vmatpush.bf16.xpose.msra.mxu0 %v802
        %812 = vmatmul.bf16.gmra.mxu0 %v799
        %v813 = vpop.f32.mrf.mxu0
        %v814 = vadd.f32 0.0, %v813
        %v815 = vpop.f32.mrf.mxu0
        %v816 = vadd.f32 0.0, %v815
        %817 = vdwg.mxu0
        %v818 = vsel %vm639, %v814, -1e+30
        %v819 = vsel %vm640, %v816, -1e+30
        %v820 = vsel %vm674, %v818, -inf
        %821 = vmax.xlane.f32.xlu0 %v820
        %v822 = vpop.xlane.xlu0 %821
        %v823 = vsel %vm674, %v819, -inf
        %824 = vmax.xlane.f32.xlu0 %v823
        %v825 = vpop.xlane.xlu0 %824
        %v826 = vsub.f32 %v818, %v822
        %v827 = vsub.f32 %v819, %v825
        %v828 = vmul.f32 %v826, 1.442695
        %v829 = vpow.pop %v828
        %v830 = vmul.f32 %v827, 1.442695
        %v831 = vpow.pop %v830
        %v832 = vsel %vm674, %v829, 0.0
        %833 = vadd.xlane.f32.xlu0 %v832
        %v834 = vpop.xlane.xlu0 %833
        %v835 = vsel %vm674, %v831, 0.0
        %836 = vadd.xlane.f32.xlu0 %v835
        %v837 = vpop.xlane.xlu0 %836
        %v838 = vrcp.pop %v834
        %v839 = vrcp.pop %v837
        %v840 = vpack.c.bf16 %v831, %v829
        %841 = vrot.lane.b32.xlu0 %v700, 64
        %v842 = vpop.permute.xlu0 %841
        %v845 = vsel %vm674, %v840, 0
        %847 = vmatpush.bf16.msra.mxu0 0
        %848 = vmatpush.bf16.msra.mxu0 0
        %849 = vmatpush.bf16.msra.mxu0 0
        %850 = vmatpush.bf16.msra.mxu0 0
        %851 = vmatpush.bf16.msra.mxu0 0
        %852 = vmatpush.bf16.msra.mxu0 0
        %853 = vmatpush.bf16.msra.mxu0 0
        %854 = vmatpush.bf16.msra.mxu0 %v842
        %855 = vmatmul.bf16.gmra.mxu0 %v845
        %v856 = vpop.f32.mrf.mxu0
        %v857 = vadd.f32 0.0, %v856
        %v858 = vpop.f32.mrf.mxu0
        %v859 = vadd.f32 0.0, %v858
        %860 = vdwg.mxu0
        %v861 = vmul.f32 %v857, %v838
        %v862 = vmul.f32 %v859, %v839
        %v863 = vpack.c.bf16 %v861, %v861
        %v864 = vpack.c.bf16 %v862, %v862
        %865 = vrot.lane.b32.xlu0 %v645, 32
        %v866 = vpop.permute.xlu0 %865
        %867 = vrot.lane.b32.xlu0 %v650, 32
        %v868 = vpop.permute.xlu0 %867
        %v870 = vsel %vm651, %v866, 0
        %v873 = vsel %vm651, %v868, 0
        %875 = vmatpush.bf16.xpose.msra.mxu0 0
        %876 = vmatpush.bf16.xpose.msra.mxu0 0
        %877 = vmatpush.bf16.xpose.msra.mxu0 0
        %878 = vmatpush.bf16.xpose.msra.mxu0 0
        %879 = vmatpush.bf16.xpose.msra.mxu0 0
        %880 = vmatpush.bf16.xpose.msra.mxu0 0
        %881 = vmatpush.bf16.xpose.msra.mxu0 0
        %882 = vmatpush.bf16.xpose.msra.mxu0 %v873
        %883 = vmatmul.bf16.gmra.mxu0 %v870
        %v884 = vpop.f32.mrf.mxu0
        %v885 = vadd.f32 0.0, %v884
        %v886 = vpop.f32.mrf.mxu0
        %v887 = vadd.f32 0.0, %v886
        %888 = vdwg.mxu0
        %v889 = vsel %vm639, %v885, -1e+30
        %v890 = vsel %vm640, %v887, -1e+30
        %v891 = vsel %vm674, %v889, -inf
        %892 = vmax.xlane.f32.xlu0 %v891
        %v893 = vpop.xlane.xlu0 %892
        %v894 = vsel %vm674, %v890, -inf
        %895 = vmax.xlane.f32.xlu0 %v894
        %v896 = vpop.xlane.xlu0 %895
        %v897 = vsub.f32 %v889, %v893
        %v898 = vsub.f32 %v890, %v896
        %v899 = vmul.f32 %v897, 1.442695
        %v900 = vpow.pop %v899
        %v901 = vmul.f32 %v898, 1.442695
        %v902 = vpow.pop %v901
        %v903 = vsel %vm674, %v900, 0.0
        %904 = vadd.xlane.f32.xlu0 %v903
        %v905 = vpop.xlane.xlu0 %904
        %v906 = vsel %vm674, %v902, 0.0
        %907 = vadd.xlane.f32.xlu0 %v906
        %v908 = vpop.xlane.xlu0 %907
        %v909 = vrcp.pop %v905
        %v910 = vrcp.pop %v908
        %v911 = vpack.c.bf16 %v902, %v900
        %912 = vrot.lane.b32.xlu0 %v700, 32
        %v913 = vpop.permute.xlu0 %912
        %v916 = vsel %vm674, %v911, 0
        %918 = vmatpush.bf16.msra.mxu0 0
        %919 = vmatpush.bf16.msra.mxu0 0
        %920 = vmatpush.bf16.msra.mxu0 0
        %921 = vmatpush.bf16.msra.mxu0 0
        %922 = vmatpush.bf16.msra.mxu0 0
        %923 = vmatpush.bf16.msra.mxu0 0
        %924 = vmatpush.bf16.msra.mxu0 0
        %925 = vmatpush.bf16.msra.mxu0 %v913
        %926 = vmatmul.bf16.gmra.mxu0 %v916
        %v927 = vpop.f32.mrf.mxu0
        %v928 = vadd.f32 0.0, %v927
        %v929 = vpop.f32.mrf.mxu0
        %v930 = vadd.f32 0.0, %v929
        %931 = vdwg.mxu0
        %v932 = vmul.f32 %v928, %v909
        %v933 = vmul.f32 %v930, %v910
        %v934 = vpack.c.bf16 %v932, %v932
        %v935 = vpack.c.bf16 %v933, %v933
        %v938 = vunpack.c.l.b16 %v721
        %v939 = vunpack.c.l.b16 %v722
        %v940 = vpack.c.b16 %v939, %v938
        %v943 = vunpack.c.l.b16 %v792
        %v944 = vunpack.c.l.b16 %v793
        %v945 = vpack.c.b16 %v944, %v943
        %946 = vrot.lane.b32.xlu0 %v945, 32
        %v947 = vpop.permute.xlu0 %946
        %v950 = vunpack.c.l.b16 %v863
        %v951 = vunpack.c.l.b16 %v864
        %v952 = vpack.c.b16 %v951, %v950
        %953 = vrot.lane.b32.xlu0 %v952, 64
        %v954 = vpop.permute.xlu0 %953
        %v957 = vunpack.c.l.b16 %v934
        %v958 = vunpack.c.l.b16 %v935
        %v959 = vpack.c.b16 %v958, %v957
        %960 = vrot.lane.b32.xlu0 %v959, 96
        %v961 = vpop.permute.xlu0 %960
        %v964 = vsel %vm651, %v940, %v947
        %vm965 = vcmask 523264
        %v967 = vsel %vm965, %v964, %v954
        %vm968 = vcmask 785408
        %v970 = vsel %vm968, %v967, %v961
        %v974 = vunpack.c.l.b16 %v588
        %v975 = vunpack.c.l.b16 %v589
        %v976 = vpack.c.b16 %v975, %v974
        %v979 = vunpack.c.l.b16 %v604
        %v980 = vunpack.c.l.b16 %v605
        %v981 = vpack.c.b16 %v980, %v979
        %v983 = vsel %vm651, %v976, 0
        %v986 = vsel %vm651, %v981, 0
        %988 = vmatpush.bf16.xpose.msra.mxu0 0
        %989 = vmatpush.bf16.xpose.msra.mxu0 0
        %990 = vmatpush.bf16.xpose.msra.mxu0 0
        %991 = vmatpush.bf16.xpose.msra.mxu0 0
        %992 = vmatpush.bf16.xpose.msra.mxu0 0
        %993 = vmatpush.bf16.xpose.msra.mxu0 0
        %994 = vmatpush.bf16.xpose.msra.mxu0 0
        %995 = vmatpush.bf16.xpose.msra.mxu0 %v986
        %996 = vmatmul.bf16.gmra.mxu0 %v983
        %v997 = vpop.f32.mrf.mxu0
        %v998 = vadd.f32 0.0, %v997
        %v999 = vpop.f32.mrf.mxu0
        %v1000 = vadd.f32 0.0, %v999
        %1001 = vdwg.mxu0
        %v1002 = vsel %vm639, %v998, -1e+30
        %v1003 = vsel %vm640, %v1000, -1e+30
        %v1004 = vsel %vm674, %v1002, -inf
        %1005 = vmax.xlane.f32.xlu0 %v1004
        %v1006 = vpop.xlane.xlu0 %1005
        %v1007 = vsel %vm674, %v1003, -inf
        %1008 = vmax.xlane.f32.xlu0 %v1007
        %v1009 = vpop.xlane.xlu0 %1008
        %v1010 = vsub.f32 %v1002, %v1006
        %v1011 = vsub.f32 %v1003, %v1009
        %v1012 = vmul.f32 %v1010, 1.442695
        %v1013 = vpow.pop %v1012
        %v1014 = vmul.f32 %v1011, 1.442695
        %v1015 = vpow.pop %v1014
        %v1016 = vsel %vm674, %v1013, 0.0
        %1017 = vadd.xlane.f32.xlu0 %v1016
        %v1018 = vpop.xlane.xlu0 %1017
        %v1019 = vsel %vm674, %v1015, 0.0
        %1020 = vadd.xlane.f32.xlu0 %v1019
        %v1021 = vpop.xlane.xlu0 %1020
        %v1022 = vrcp.pop %v1018
        %v1023 = vrcp.pop %v1021
        %v1024 = vpack.c.bf16 %v1015, %v1013
        %v1027 = vunpack.c.l.b16 %v620
        %v1028 = vunpack.c.l.b16 %v621
        %v1029 = vpack.c.b16 %v1028, %v1027
        %v1032 = vsel %vm674, %v1024, 0
        %1034 = vmatpush.bf16.msra.mxu0 0
        %1035 = vmatpush.bf16.msra.mxu0 0
        %1036 = vmatpush.bf16.msra.mxu0 0
        %1037 = vmatpush.bf16.msra.mxu0 0
        %1038 = vmatpush.bf16.msra.mxu0 0
        %1039 = vmatpush.bf16.msra.mxu0 0
        %1040 = vmatpush.bf16.msra.mxu0 0
        %1041 = vmatpush.bf16.msra.mxu0 %v1029
        %1042 = vmatmul.bf16.gmra.mxu0 %v1032
        %v1043 = vpop.f32.mrf.mxu0
        %v1044 = vadd.f32 0.0, %v1043
        %v1045 = vpop.f32.mrf.mxu0
        %v1046 = vadd.f32 0.0, %v1045
        %1047 = vdwg.mxu0
        %v1048 = vmul.f32 %v1044, %v1022
        %v1049 = vmul.f32 %v1046, %v1023
        %v1050 = vpack.c.bf16 %v1048, %v1048
        %v1051 = vpack.c.bf16 %v1049, %v1049
        %1052 = vrot.lane.b32.xlu0 %v976, 96
        %v1053 = vpop.permute.xlu0 %1052
        %1054 = vrot.lane.b32.xlu0 %v981, 96
        %v1055 = vpop.permute.xlu0 %1054
        %v1057 = vsel %vm651, %v1053, 0
        %v1060 = vsel %vm651, %v1055, 0
        %1062 = vmatpush.bf16.xpose.msra.mxu0 0
        %1063 = vmatpush.bf16.xpose.msra.mxu0 0
        %1064 = vmatpush.bf16.xpose.msra.mxu0 0
        %1065 = vmatpush.bf16.xpose.msra.mxu0 0
        %1066 = vmatpush.bf16.xpose.msra.mxu0 0
        %1067 = vmatpush.bf16.xpose.msra.mxu0 0
        %1068 = vmatpush.bf16.xpose.msra.mxu0 0
        %1069 = vmatpush.bf16.xpose.msra.mxu0 %v1060
        %1070 = vmatmul.bf16.gmra.mxu0 %v1057
        %v1071 = vpop.f32.mrf.mxu0
        %v1072 = vadd.f32 0.0, %v1071
        %v1073 = vpop.f32.mrf.mxu0
        %v1074 = vadd.f32 0.0, %v1073
        %1075 = vdwg.mxu0
        %v1076 = vsel %vm639, %v1072, -1e+30
        %v1077 = vsel %vm640, %v1074, -1e+30
        %v1078 = vsel %vm674, %v1076, -inf
        %1079 = vmax.xlane.f32.xlu0 %v1078
        %v1080 = vpop.xlane.xlu0 %1079
        %v1081 = vsel %vm674, %v1077, -inf
        %1082 = vmax.xlane.f32.xlu0 %v1081
        %v1083 = vpop.xlane.xlu0 %1082
        %v1084 = vsub.f32 %v1076, %v1080
        %v1085 = vsub.f32 %v1077, %v1083
        %v1086 = vmul.f32 %v1084, 1.442695
        %v1087 = vpow.pop %v1086
        %v1088 = vmul.f32 %v1085, 1.442695
        %v1089 = vpow.pop %v1088
        %v1090 = vsel %vm674, %v1087, 0.0
        %1091 = vadd.xlane.f32.xlu0 %v1090
        %v1092 = vpop.xlane.xlu0 %1091
        %v1093 = vsel %vm674, %v1089, 0.0
        %1094 = vadd.xlane.f32.xlu0 %v1093
        %v1095 = vpop.xlane.xlu0 %1094
        %v1096 = vrcp.pop %v1092
        %v1097 = vrcp.pop %v1095
        %v1098 = vpack.c.bf16 %v1089, %v1087
        %1099 = vrot.lane.b32.xlu0 %v1029, 96
        %v1100 = vpop.permute.xlu0 %1099
        %v1103 = vsel %vm674, %v1098, 0
        %1105 = vmatpush.bf16.msra.mxu0 0
        %1106 = vmatpush.bf16.msra.mxu0 0
        %1107 = vmatpush.bf16.msra.mxu0 0
        %1108 = vmatpush.bf16.msra.mxu0 0
        %1109 = vmatpush.bf16.msra.mxu0 0
        %1110 = vmatpush.bf16.msra.mxu0 0
        %1111 = vmatpush.bf16.msra.mxu0 0
        %1112 = vmatpush.bf16.msra.mxu0 %v1100
        %1113 = vmatmul.bf16.gmra.mxu0 %v1103
        %v1114 = vpop.f32.mrf.mxu0
        %v1115 = vadd.f32 0.0, %v1114
        %v1116 = vpop.f32.mrf.mxu0
        %v1117 = vadd.f32 0.0, %v1116
        %1118 = vdwg.mxu0
        %v1119 = vmul.f32 %v1115, %v1096
        %v1120 = vmul.f32 %v1117, %v1097
        %v1121 = vpack.c.bf16 %v1119, %v1119
        %v1122 = vpack.c.bf16 %v1120, %v1120
        %1123 = vrot.lane.b32.xlu0 %v976, 64
        %v1124 = vpop.permute.xlu0 %1123
        %1125 = vrot.lane.b32.xlu0 %v981, 64
        %v1126 = vpop.permute.xlu0 %1125
        %v1128 = vsel %vm651, %v1124, 0
        %v1131 = vsel %vm651, %v1126, 0
        %1133 = vmatpush.bf16.xpose.msra.mxu0 0
        %1134 = vmatpush.bf16.xpose.msra.mxu0 0
        %1135 = vmatpush.bf16.xpose.msra.mxu0 0
        %1136 = vmatpush.bf16.xpose.msra.mxu0 0
        %1137 = vmatpush.bf16.xpose.msra.mxu0 0
        %1138 = vmatpush.bf16.xpose.msra.mxu0 0
        %1139 = vmatpush.bf16.xpose.msra.mxu0 0
        %1140 = vmatpush.bf16.xpose.msra.mxu0 %v1131
        %1141 = vmatmul.bf16.gmra.mxu0 %v1128
        %v1142 = vpop.f32.mrf.mxu0
        %v1143 = vadd.f32 0.0, %v1142
        %v1144 = vpop.f32.mrf.mxu0
        %v1145 = vadd.f32 0.0, %v1144
        %1146 = vdwg.mxu0
        %v1147 = vsel %vm639, %v1143, -1e+30
        %v1148 = vsel %vm640, %v1145, -1e+30
        %v1149 = vsel %vm674, %v1147, -inf
        %1150 = vmax.xlane.f32.xlu0 %v1149
        %v1151 = vpop.xlane.xlu0 %1150
        %v1152 = vsel %vm674, %v1148, -inf
        %1153 = vmax.xlane.f32.xlu0 %v1152
        %v1154 = vpop.xlane.xlu0 %1153
        %v1155 = vsub.f32 %v1147, %v1151
        %v1156 = vsub.f32 %v1148, %v1154
        %v1157 = vmul.f32 %v1155, 1.442695
        %v1158 = vpow.pop %v1157
        %v1159 = vmul.f32 %v1156, 1.442695
        %v1160 = vpow.pop %v1159
        %v1161 = vsel %vm674, %v1158, 0.0
        %1162 = vadd.xlane.f32.xlu0 %v1161
        %v1163 = vpop.xlane.xlu0 %1162
        %v1164 = vsel %vm674, %v1160, 0.0
        %1165 = vadd.xlane.f32.xlu0 %v1164
        %v1166 = vpop.xlane.xlu0 %1165
        %v1167 = vrcp.pop %v1163
        %v1168 = vrcp.pop %v1166
        %v1169 = vpack.c.bf16 %v1160, %v1158
        %1170 = vrot.lane.b32.xlu0 %v1029, 64
        %v1171 = vpop.permute.xlu0 %1170
        %v1174 = vsel %vm674, %v1169, 0
        %1176 = vmatpush.bf16.msra.mxu0 0
        %1177 = vmatpush.bf16.msra.mxu0 0
        %1178 = vmatpush.bf16.msra.mxu0 0
        %1179 = vmatpush.bf16.msra.mxu0 0
        %1180 = vmatpush.bf16.msra.mxu0 0
        %1181 = vmatpush.bf16.msra.mxu0 0
        %1182 = vmatpush.bf16.msra.mxu0 0
        %1183 = vmatpush.bf16.msra.mxu0 %v1171
        %1184 = vmatmul.bf16.gmra.mxu0 %v1174
        %v1185 = vpop.f32.mrf.mxu0
        %v1186 = vadd.f32 0.0, %v1185
        %v1187 = vpop.f32.mrf.mxu0
        %v1188 = vadd.f32 0.0, %v1187
        %1189 = vdwg.mxu0
        %v1190 = vmul.f32 %v1186, %v1167
        %v1191 = vmul.f32 %v1188, %v1168
        %v1192 = vpack.c.bf16 %v1190, %v1190
        %v1193 = vpack.c.bf16 %v1191, %v1191
        %1194 = vrot.lane.b32.xlu0 %v976, 32
        %v1195 = vpop.permute.xlu0 %1194
        %1196 = vrot.lane.b32.xlu0 %v981, 32
        %v1197 = vpop.permute.xlu0 %1196
        %v1199 = vsel %vm651, %v1195, 0
        %v1202 = vsel %vm651, %v1197, 0
        %1204 = vmatpush.bf16.xpose.msra.mxu0 0
        %1205 = vmatpush.bf16.xpose.msra.mxu0 0
        %1206 = vmatpush.bf16.xpose.msra.mxu0 0
        %1207 = vmatpush.bf16.xpose.msra.mxu0 0
        %1208 = vmatpush.bf16.xpose.msra.mxu0 0
        %1209 = vmatpush.bf16.xpose.msra.mxu0 0
        %1210 = vmatpush.bf16.xpose.msra.mxu0 0
        %1211 = vmatpush.bf16.xpose.msra.mxu0 %v1202
        %1212 = vmatmul.bf16.gmra.mxu0 %v1199
        %v1213 = vpop.f32.mrf.mxu0
        %v1214 = vadd.f32 0.0, %v1213
        %v1215 = vpop.f32.mrf.mxu0
        %v1216 = vadd.f32 0.0, %v1215
        %1217 = vdwg.mxu0
        %v1218 = vsel %vm639, %v1214, -1e+30
        %v1219 = vsel %vm640, %v1216, -1e+30
        %v1220 = vsel %vm674, %v1218, -inf
        %1221 = vmax.xlane.f32.xlu0 %v1220
        %v1222 = vpop.xlane.xlu0 %1221
        %v1223 = vsel %vm674, %v1219, -inf
        %1224 = vmax.xlane.f32.xlu0 %v1223
        %v1225 = vpop.xlane.xlu0 %1224
        %v1226 = vsub.f32 %v1218, %v1222
        %v1227 = vsub.f32 %v1219, %v1225
        %v1228 = vmul.f32 %v1226, 1.442695
        %v1229 = vpow.pop %v1228
        %v1230 = vmul.f32 %v1227, 1.442695
        %v1231 = vpow.pop %v1230
        %v1232 = vsel %vm674, %v1229, 0.0
        %1233 = vadd.xlane.f32.xlu0 %v1232
        %v1234 = vpop.xlane.xlu0 %1233
        %v1235 = vsel %vm674, %v1231, 0.0
        %1236 = vadd.xlane.f32.xlu0 %v1235
        %v1237 = vpop.xlane.xlu0 %1236
        %v1238 = vrcp.pop %v1234
        %v1239 = vrcp.pop %v1237
        %v1240 = vpack.c.bf16 %v1231, %v1229
        %1241 = vrot.lane.b32.xlu0 %v1029, 32
        %v1242 = vpop.permute.xlu0 %1241
        %v1245 = vsel %vm674, %v1240, 0
        %1247 = vmatpush.bf16.msra.mxu0 0
        %1248 = vmatpush.bf16.msra.mxu0 0
        %1249 = vmatpush.bf16.msra.mxu0 0
        %1250 = vmatpush.bf16.msra.mxu0 0
        %1251 = vmatpush.bf16.msra.mxu0 0
        %1252 = vmatpush.bf16.msra.mxu0 0
        %1253 = vmatpush.bf16.msra.mxu0 0
        %1254 = vmatpush.bf16.msra.mxu0 %v1242
        %1255 = vmatmul.bf16.gmra.mxu0 %v1245
        %v1256 = vpop.f32.mrf.mxu0
        %v1257 = vadd.f32 0.0, %v1256
        %v1258 = vpop.f32.mrf.mxu0
        %v1259 = vadd.f32 0.0, %v1258
        %1260 = vdwg.mxu0
        %v1261 = vmul.f32 %v1257, %v1238
        %v1262 = vmul.f32 %v1259, %v1239
        %v1263 = vpack.c.bf16 %v1261, %v1261
        %v1264 = vpack.c.bf16 %v1262, %v1262
        %v1267 = vunpack.c.l.b16 %v1050
        %v1268 = vunpack.c.l.b16 %v1051
        %v1269 = vpack.c.b16 %v1268, %v1267
        %v1272 = vunpack.c.l.b16 %v1121
        %v1273 = vunpack.c.l.b16 %v1122
        %v1274 = vpack.c.b16 %v1273, %v1272
        %1275 = vrot.lane.b32.xlu0 %v1274, 32
        %v1276 = vpop.permute.xlu0 %1275
        %v1279 = vunpack.c.l.b16 %v1192
        %v1280 = vunpack.c.l.b16 %v1193
        %v1281 = vpack.c.b16 %v1280, %v1279
        %1282 = vrot.lane.b32.xlu0 %v1281, 64
        %v1283 = vpop.permute.xlu0 %1282
        %v1286 = vunpack.c.l.b16 %v1263
        %v1287 = vunpack.c.l.b16 %v1264
        %v1288 = vpack.c.b16 %v1287, %v1286
        %1289 = vrot.lane.b32.xlu0 %v1288, 96
        %v1290 = vpop.permute.xlu0 %1289
        %v1293 = vsel %vm651, %v1269, %v1276
        %v1295 = vsel %vm965, %v1293, %v1283
        %v1297 = vsel %vm968, %v1295, %v1290
        %v1301 = vunpack.c.l.b16 %v590
        %v1302 = vunpack.c.l.b16 %v591
        %v1303 = vpack.c.b16 %v1302, %v1301
        %v1306 = vunpack.c.l.b16 %v606
        %v1307 = vunpack.c.l.b16 %v607
        %v1308 = vpack.c.b16 %v1307, %v1306
        %v1310 = vsel %vm651, %v1303, 0
        %v1313 = vsel %vm651, %v1308, 0
        %1315 = vmatpush.bf16.xpose.msra.mxu0 0
        %1316 = vmatpush.bf16.xpose.msra.mxu0 0
        %1317 = vmatpush.bf16.xpose.msra.mxu0 0
        %1318 = vmatpush.bf16.xpose.msra.mxu0 0
        %1319 = vmatpush.bf16.xpose.msra.mxu0 0
        %1320 = vmatpush.bf16.xpose.msra.mxu0 0
        %1321 = vmatpush.bf16.xpose.msra.mxu0 0
        %1322 = vmatpush.bf16.xpose.msra.mxu0 %v1313
        %1323 = vmatmul.bf16.gmra.mxu0 %v1310
        %v1324 = vpop.f32.mrf.mxu0
        %v1325 = vadd.f32 0.0, %v1324
        %v1326 = vpop.f32.mrf.mxu0
        %v1327 = vadd.f32 0.0, %v1326
        %1328 = vdwg.mxu0
        %v1329 = vsel %vm639, %v1325, -1e+30
        %v1330 = vsel %vm640, %v1327, -1e+30
        %v1331 = vsel %vm674, %v1329, -inf
        %1332 = vmax.xlane.f32.xlu0 %v1331
        %v1333 = vpop.xlane.xlu0 %1332
        %v1334 = vsel %vm674, %v1330, -inf
        %1335 = vmax.xlane.f32.xlu0 %v1334
        %v1336 = vpop.xlane.xlu0 %1335
        %v1337 = vsub.f32 %v1329, %v1333
        %v1338 = vsub.f32 %v1330, %v1336
        %v1339 = vmul.f32 %v1337, 1.442695
        %v1340 = vpow.pop %v1339
        %v1341 = vmul.f32 %v1338, 1.442695
        %v1342 = vpow.pop %v1341
        %v1343 = vsel %vm674, %v1340, 0.0
        %1344 = vadd.xlane.f32.xlu0 %v1343
        %v1345 = vpop.xlane.xlu0 %1344
        %v1346 = vsel %vm674, %v1342, 0.0
        %1347 = vadd.xlane.f32.xlu0 %v1346
        %v1348 = vpop.xlane.xlu0 %1347
        %v1349 = vrcp.pop %v1345
        %v1350 = vrcp.pop %v1348
        %v1351 = vpack.c.bf16 %v1342, %v1340
        %v1354 = vunpack.c.l.b16 %v622
        %v1355 = vunpack.c.l.b16 %v623
        %v1356 = vpack.c.b16 %v1355, %v1354
        %v1359 = vsel %vm674, %v1351, 0
        %1361 = vmatpush.bf16.msra.mxu0 0
        %1362 = vmatpush.bf16.msra.mxu0 0
        %1363 = vmatpush.bf16.msra.mxu0 0
        %1364 = vmatpush.bf16.msra.mxu0 0
        %1365 = vmatpush.bf16.msra.mxu0 0
        %1366 = vmatpush.bf16.msra.mxu0 0
        %1367 = vmatpush.bf16.msra.mxu0 0
        %1368 = vmatpush.bf16.msra.mxu0 %v1356
        %1369 = vmatmul.bf16.gmra.mxu0 %v1359
        %v1370 = vpop.f32.mrf.mxu0
        %v1371 = vadd.f32 0.0, %v1370
        %v1372 = vpop.f32.mrf.mxu0
        %v1373 = vadd.f32 0.0, %v1372
        %1374 = vdwg.mxu0
        %v1375 = vmul.f32 %v1371, %v1349
        %v1376 = vmul.f32 %v1373, %v1350
        %v1377 = vpack.c.bf16 %v1375, %v1375
        %v1378 = vpack.c.bf16 %v1376, %v1376
        %1379 = vrot.lane.b32.xlu0 %v1303, 96
        %v1380 = vpop.permute.xlu0 %1379
        %1381 = vrot.lane.b32.xlu0 %v1308, 96
        %v1382 = vpop.permute.xlu0 %1381
        %v1384 = vsel %vm651, %v1380, 0
        %v1387 = vsel %vm651, %v1382, 0
        %1389 = vmatpush.bf16.xpose.msra.mxu0 0
        %1390 = vmatpush.bf16.xpose.msra.mxu0 0
        %1391 = vmatpush.bf16.xpose.msra.mxu0 0
        %1392 = vmatpush.bf16.xpose.msra.mxu0 0
        %1393 = vmatpush.bf16.xpose.msra.mxu0 0
        %1394 = vmatpush.bf16.xpose.msra.mxu0 0
        %1395 = vmatpush.bf16.xpose.msra.mxu0 0
        %1396 = vmatpush.bf16.xpose.msra.mxu0 %v1387
        %1397 = vmatmul.bf16.gmra.mxu0 %v1384
        %v1398 = vpop.f32.mrf.mxu0
        %v1399 = vadd.f32 0.0, %v1398
        %v1400 = vpop.f32.mrf.mxu0
        %v1401 = vadd.f32 0.0, %v1400
        %1402 = vdwg.mxu0
        %v1403 = vsel %vm639, %v1399, -1e+30
        %v1404 = vsel %vm640, %v1401, -1e+30
        %v1405 = vsel %vm674, %v1403, -inf
        %1406 = vmax.xlane.f32.xlu0 %v1405
        %v1407 = vpop.xlane.xlu0 %1406
        %v1408 = vsel %vm674, %v1404, -inf
        %1409 = vmax.xlane.f32.xlu0 %v1408
        %v1410 = vpop.xlane.xlu0 %1409
        %v1411 = vsub.f32 %v1403, %v1407
        %v1412 = vsub.f32 %v1404, %v1410
        %v1413 = vmul.f32 %v1411, 1.442695
        %v1414 = vpow.pop %v1413
        %v1415 = vmul.f32 %v1412, 1.442695
        %v1416 = vpow.pop %v1415
        %v1417 = vsel %vm674, %v1414, 0.0
        %1418 = vadd.xlane.f32.xlu0 %v1417
        %v1419 = vpop.xlane.xlu0 %1418
        %v1420 = vsel %vm674, %v1416, 0.0
        %1421 = vadd.xlane.f32.xlu0 %v1420
        %v1422 = vpop.xlane.xlu0 %1421
        %v1423 = vrcp.pop %v1419
        %v1424 = vrcp.pop %v1422
        %v1425 = vpack.c.bf16 %v1416, %v1414
        %1426 = vrot.lane.b32.xlu0 %v1356, 96
        %v1427 = vpop.permute.xlu0 %1426
        %v1430 = vsel %vm674, %v1425, 0
        %1432 = vmatpush.bf16.msra.mxu0 0
        %1433 = vmatpush.bf16.msra.mxu0 0
        %1434 = vmatpush.bf16.msra.mxu0 0
        %1435 = vmatpush.bf16.msra.mxu0 0
        %1436 = vmatpush.bf16.msra.mxu0 0
        %1437 = vmatpush.bf16.msra.mxu0 0
        %1438 = vmatpush.bf16.msra.mxu0 0
        %1439 = vmatpush.bf16.msra.mxu0 %v1427
        %1440 = vmatmul.bf16.gmra.mxu0 %v1430
        %v1441 = vpop.f32.mrf.mxu0
        %v1442 = vadd.f32 0.0, %v1441
        %v1443 = vpop.f32.mrf.mxu0
        %v1444 = vadd.f32 0.0, %v1443
        %1445 = vdwg.mxu0
        %v1446 = vmul.f32 %v1442, %v1423
        %v1447 = vmul.f32 %v1444, %v1424
        %v1448 = vpack.c.bf16 %v1446, %v1446
        %v1449 = vpack.c.bf16 %v1447, %v1447
        %1450 = vrot.lane.b32.xlu0 %v1303, 64
        %v1451 = vpop.permute.xlu0 %1450
        %1452 = vrot.lane.b32.xlu0 %v1308, 64
        %v1453 = vpop.permute.xlu0 %1452
        %v1455 = vsel %vm651, %v1451, 0
        %v1458 = vsel %vm651, %v1453, 0
        %1460 = vmatpush.bf16.xpose.msra.mxu0 0
        %1461 = vmatpush.bf16.xpose.msra.mxu0 0
        %1462 = vmatpush.bf16.xpose.msra.mxu0 0
        %1463 = vmatpush.bf16.xpose.msra.mxu0 0
        %1464 = vmatpush.bf16.xpose.msra.mxu0 0
        %1465 = vmatpush.bf16.xpose.msra.mxu0 0
        %1466 = vmatpush.bf16.xpose.msra.mxu0 0
        %1467 = vmatpush.bf16.xpose.msra.mxu0 %v1458
        %1468 = vmatmul.bf16.gmra.mxu0 %v1455
        %v1469 = vpop.f32.mrf.mxu0
        %v1470 = vadd.f32 0.0, %v1469
        %v1471 = vpop.f32.mrf.mxu0
        %v1472 = vadd.f32 0.0, %v1471
        %1473 = vdwg.mxu0
        %v1474 = vsel %vm639, %v1470, -1e+30
        %v1475 = vsel %vm640, %v1472, -1e+30
        %v1476 = vsel %vm674, %v1474, -inf
        %1477 = vmax.xlane.f32.xlu0 %v1476
        %v1478 = vpop.xlane.xlu0 %1477
        %v1479 = vsel %vm674, %v1475, -inf
        %1480 = vmax.xlane.f32.xlu0 %v1479
        %v1481 = vpop.xlane.xlu0 %1480
        %v1482 = vsub.f32 %v1474, %v1478
        %v1483 = vsub.f32 %v1475, %v1481
        %v1484 = vmul.f32 %v1482, 1.442695
        %v1485 = vpow.pop %v1484
        %v1486 = vmul.f32 %v1483, 1.442695
        %v1487 = vpow.pop %v1486
        %v1488 = vsel %vm674, %v1485, 0.0
        %1489 = vadd.xlane.f32.xlu0 %v1488
        %v1490 = vpop.xlane.xlu0 %1489
        %v1491 = vsel %vm674, %v1487, 0.0
        %1492 = vadd.xlane.f32.xlu0 %v1491
        %v1493 = vpop.xlane.xlu0 %1492
        %v1494 = vrcp.pop %v1490
        %v1495 = vrcp.pop %v1493
        %v1496 = vpack.c.bf16 %v1487, %v1485
        %1497 = vrot.lane.b32.xlu0 %v1356, 64
        %v1498 = vpop.permute.xlu0 %1497
        %v1501 = vsel %vm674, %v1496, 0
        %1503 = vmatpush.bf16.msra.mxu0 0
        %1504 = vmatpush.bf16.msra.mxu0 0
        %1505 = vmatpush.bf16.msra.mxu0 0
        %1506 = vmatpush.bf16.msra.mxu0 0
        %1507 = vmatpush.bf16.msra.mxu0 0
        %1508 = vmatpush.bf16.msra.mxu0 0
        %1509 = vmatpush.bf16.msra.mxu0 0
        %1510 = vmatpush.bf16.msra.mxu0 %v1498
        %1511 = vmatmul.bf16.gmra.mxu0 %v1501
        %v1512 = vpop.f32.mrf.mxu0
        %v1513 = vadd.f32 0.0, %v1512
        %v1514 = vpop.f32.mrf.mxu0
        %v1515 = vadd.f32 0.0, %v1514
        %1516 = vdwg.mxu0
        %v1517 = vmul.f32 %v1513, %v1494
        %v1518 = vmul.f32 %v1515, %v1495
        %v1519 = vpack.c.bf16 %v1517, %v1517
        %v1520 = vpack.c.bf16 %v1518, %v1518
        %1521 = vrot.lane.b32.xlu0 %v1303, 32
        %v1522 = vpop.permute.xlu0 %1521
        %1523 = vrot.lane.b32.xlu0 %v1308, 32
        %v1524 = vpop.permute.xlu0 %1523
        %v1526 = vsel %vm651, %v1522, 0
        %v1529 = vsel %vm651, %v1524, 0
        %1531 = vmatpush.bf16.xpose.msra.mxu0 0
        %1532 = vmatpush.bf16.xpose.msra.mxu0 0
        %1533 = vmatpush.bf16.xpose.msra.mxu0 0
        %1534 = vmatpush.bf16.xpose.msra.mxu0 0
        %1535 = vmatpush.bf16.xpose.msra.mxu0 0
        %1536 = vmatpush.bf16.xpose.msra.mxu0 0
        %1537 = vmatpush.bf16.xpose.msra.mxu0 0
        %1538 = vmatpush.bf16.xpose.msra.mxu0 %v1529
        %1539 = vmatmul.bf16.gmra.mxu0 %v1526
        %v1540 = vpop.f32.mrf.mxu0
        %v1541 = vadd.f32 0.0, %v1540
        %v1542 = vpop.f32.mrf.mxu0
        %v1543 = vadd.f32 0.0, %v1542
        %1544 = vdwg.mxu0
        %v1545 = vsel %vm639, %v1541, -1e+30
        %v1546 = vsel %vm640, %v1543, -1e+30
        %v1547 = vsel %vm674, %v1545, -inf
        %1548 = vmax.xlane.f32.xlu0 %v1547
        %v1549 = vpop.xlane.xlu0 %1548
        %v1550 = vsel %vm674, %v1546, -inf
        %1551 = vmax.xlane.f32.xlu0 %v1550
        %v1552 = vpop.xlane.xlu0 %1551
        %v1553 = vsub.f32 %v1545, %v1549
        %v1554 = vsub.f32 %v1546, %v1552
        %v1555 = vmul.f32 %v1553, 1.442695
        %v1556 = vpow.pop %v1555
        %v1557 = vmul.f32 %v1554, 1.442695
        %v1558 = vpow.pop %v1557
        %v1559 = vsel %vm674, %v1556, 0.0
        %1560 = vadd.xlane.f32.xlu0 %v1559
        %v1561 = vpop.xlane.xlu0 %1560
        %v1562 = vsel %vm674, %v1558, 0.0
        %1563 = vadd.xlane.f32.xlu0 %v1562
        %v1564 = vpop.xlane.xlu0 %1563
        %v1565 = vrcp.pop %v1561
        %v1566 = vrcp.pop %v1564
        %v1567 = vpack.c.bf16 %v1558, %v1556
        %1568 = vrot.lane.b32.xlu0 %v1356, 32
        %v1569 = vpop.permute.xlu0 %1568
        %v1572 = vsel %vm674, %v1567, 0
        %1574 = vmatpush.bf16.msra.mxu0 0
        %1575 = vmatpush.bf16.msra.mxu0 0
        %1576 = vmatpush.bf16.msra.mxu0 0
        %1577 = vmatpush.bf16.msra.mxu0 0
        %1578 = vmatpush.bf16.msra.mxu0 0
        %1579 = vmatpush.bf16.msra.mxu0 0
        %1580 = vmatpush.bf16.msra.mxu0 0
        %1581 = vmatpush.bf16.msra.mxu0 %v1569
        %1582 = vmatmul.bf16.gmra.mxu0 %v1572
        %v1583 = vpop.f32.mrf.mxu0
        %v1584 = vadd.f32 0.0, %v1583
        %v1585 = vpop.f32.mrf.mxu0
        %v1586 = vadd.f32 0.0, %v1585
        %1587 = vdwg.mxu0
        %v1588 = vmul.f32 %v1584, %v1565
        %v1589 = vmul.f32 %v1586, %v1566
        %v1590 = vpack.c.bf16 %v1588, %v1588
        %v1591 = vpack.c.bf16 %v1589, %v1589
        %v1594 = vunpack.c.l.b16 %v1377
        %v1595 = vunpack.c.l.b16 %v1378
        %v1596 = vpack.c.b16 %v1595, %v1594
        %v1599 = vunpack.c.l.b16 %v1448
        %v1600 = vunpack.c.l.b16 %v1449
        %v1601 = vpack.c.b16 %v1600, %v1599
        %1602 = vrot.lane.b32.xlu0 %v1601, 32
        %v1603 = vpop.permute.xlu0 %1602
        %v1606 = vunpack.c.l.b16 %v1519
        %v1607 = vunpack.c.l.b16 %v1520
        %v1608 = vpack.c.b16 %v1607, %v1606
        %1609 = vrot.lane.b32.xlu0 %v1608, 64
        %v1610 = vpop.permute.xlu0 %1609
        %v1613 = vunpack.c.l.b16 %v1590
        %v1614 = vunpack.c.l.b16 %v1591
        %v1615 = vpack.c.b16 %v1614, %v1613
        %1616 = vrot.lane.b32.xlu0 %v1615, 96
        %v1617 = vpop.permute.xlu0 %1616
        %v1620 = vsel %vm651, %v1596, %v1603
        %v1622 = vsel %vm965, %v1620, %v1610
        %v1624 = vsel %vm968, %v1622, %v1617
        %v1628 = vunpack.c.l.b16 %v592
        %v1629 = vunpack.c.l.b16 %v593
        %v1630 = vpack.c.b16 %v1629, %v1628
        %v1633 = vunpack.c.l.b16 %v608
        %v1634 = vunpack.c.l.b16 %v609
        %v1635 = vpack.c.b16 %v1634, %v1633
        %v1637 = vsel %vm651, %v1630, 0
        %v1640 = vsel %vm651, %v1635, 0
        %1642 = vmatpush.bf16.xpose.msra.mxu0 0
        %1643 = vmatpush.bf16.xpose.msra.mxu0 0
        %1644 = vmatpush.bf16.xpose.msra.mxu0 0
        %1645 = vmatpush.bf16.xpose.msra.mxu0 0
        %1646 = vmatpush.bf16.xpose.msra.mxu0 0
        %1647 = vmatpush.bf16.xpose.msra.mxu0 0
        %1648 = vmatpush.bf16.xpose.msra.mxu0 0
        %1649 = vmatpush.bf16.xpose.msra.mxu0 %v1640
        %1650 = vmatmul.bf16.gmra.mxu0 %v1637
        %v1651 = vpop.f32.mrf.mxu0
        %v1652 = vadd.f32 0.0, %v1651
        %v1653 = vpop.f32.mrf.mxu0
        %v1654 = vadd.f32 0.0, %v1653
        %1655 = vdwg.mxu0
        %v1656 = vsel %vm639, %v1652, -1e+30
        %v1657 = vsel %vm640, %v1654, -1e+30
        %v1658 = vsel %vm674, %v1656, -inf
        %1659 = vmax.xlane.f32.xlu0 %v1658
        %v1660 = vpop.xlane.xlu0 %1659
        %v1661 = vsel %vm674, %v1657, -inf
        %1662 = vmax.xlane.f32.xlu0 %v1661
        %v1663 = vpop.xlane.xlu0 %1662
        %v1664 = vsub.f32 %v1656, %v1660
        %v1665 = vsub.f32 %v1657, %v1663
        %v1666 = vmul.f32 %v1664, 1.442695
        %v1667 = vpow.pop %v1666
        %v1668 = vmul.f32 %v1665, 1.442695
        %v1669 = vpow.pop %v1668
        %v1670 = vsel %vm674, %v1667, 0.0
        %1671 = vadd.xlane.f32.xlu0 %v1670
        %v1672 = vpop.xlane.xlu0 %1671
        %v1673 = vsel %vm674, %v1669, 0.0
        %1674 = vadd.xlane.f32.xlu0 %v1673
        %v1675 = vpop.xlane.xlu0 %1674
        %v1676 = vrcp.pop %v1672
        %v1677 = vrcp.pop %v1675
        %v1678 = vpack.c.bf16 %v1669, %v1667
        %v1681 = vunpack.c.l.b16 %v624
        %v1682 = vunpack.c.l.b16 %v625
        %v1683 = vpack.c.b16 %v1682, %v1681
        %v1686 = vsel %vm674, %v1678, 0
        %1688 = vmatpush.bf16.msra.mxu0 0
        %1689 = vmatpush.bf16.msra.mxu0 0
        %1690 = vmatpush.bf16.msra.mxu0 0
        %1691 = vmatpush.bf16.msra.mxu0 0
        %1692 = vmatpush.bf16.msra.mxu0 0
        %1693 = vmatpush.bf16.msra.mxu0 0
        %1694 = vmatpush.bf16.msra.mxu0 0
        %1695 = vmatpush.bf16.msra.mxu0 %v1683
        %1696 = vmatmul.bf16.gmra.mxu0 %v1686
        %v1697 = vpop.f32.mrf.mxu0
        %v1698 = vadd.f32 0.0, %v1697
        %v1699 = vpop.f32.mrf.mxu0
        %v1700 = vadd.f32 0.0, %v1699
        %1701 = vdwg.mxu0
        %v1702 = vmul.f32 %v1698, %v1676
        %v1703 = vmul.f32 %v1700, %v1677
        %v1704 = vpack.c.bf16 %v1702, %v1702
        %v1705 = vpack.c.bf16 %v1703, %v1703
        %1706 = vrot.lane.b32.xlu0 %v1630, 96
        %v1707 = vpop.permute.xlu0 %1706
        %1708 = vrot.lane.b32.xlu0 %v1635, 96
        %v1709 = vpop.permute.xlu0 %1708
        %v1711 = vsel %vm651, %v1707, 0
        %v1714 = vsel %vm651, %v1709, 0
        %1716 = vmatpush.bf16.xpose.msra.mxu0 0
        %1717 = vmatpush.bf16.xpose.msra.mxu0 0
        %1718 = vmatpush.bf16.xpose.msra.mxu0 0
        %1719 = vmatpush.bf16.xpose.msra.mxu0 0
        %1720 = vmatpush.bf16.xpose.msra.mxu0 0
        %1721 = vmatpush.bf16.xpose.msra.mxu0 0
        %1722 = vmatpush.bf16.xpose.msra.mxu0 0
        %1723 = vmatpush.bf16.xpose.msra.mxu0 %v1714
        %1724 = vmatmul.bf16.gmra.mxu0 %v1711
        %v1725 = vpop.f32.mrf.mxu0
        %v1726 = vadd.f32 0.0, %v1725
        %v1727 = vpop.f32.mrf.mxu0
        %v1728 = vadd.f32 0.0, %v1727
        %1729 = vdwg.mxu0
        %v1730 = vsel %vm639, %v1726, -1e+30
        %v1731 = vsel %vm640, %v1728, -1e+30
        %v1732 = vsel %vm674, %v1730, -inf
        %1733 = vmax.xlane.f32.xlu0 %v1732
        %v1734 = vpop.xlane.xlu0 %1733
        %v1735 = vsel %vm674, %v1731, -inf
        %1736 = vmax.xlane.f32.xlu0 %v1735
        %v1737 = vpop.xlane.xlu0 %1736
        %v1738 = vsub.f32 %v1730, %v1734
        %v1739 = vsub.f32 %v1731, %v1737
        %v1740 = vmul.f32 %v1738, 1.442695
        %v1741 = vpow.pop %v1740
        %v1742 = vmul.f32 %v1739, 1.442695
        %v1743 = vpow.pop %v1742
        %v1744 = vsel %vm674, %v1741, 0.0
        %1745 = vadd.xlane.f32.xlu0 %v1744
        %v1746 = vpop.xlane.xlu0 %1745
        %v1747 = vsel %vm674, %v1743, 0.0
        %1748 = vadd.xlane.f32.xlu0 %v1747
        %v1749 = vpop.xlane.xlu0 %1748
        %v1750 = vrcp.pop %v1746
        %v1751 = vrcp.pop %v1749
        %v1752 = vpack.c.bf16 %v1743, %v1741
        %1753 = vrot.lane.b32.xlu0 %v1683, 96
        %v1754 = vpop.permute.xlu0 %1753
        %v1757 = vsel %vm674, %v1752, 0
        %1759 = vmatpush.bf16.msra.mxu0 0
        %1760 = vmatpush.bf16.msra.mxu0 0
        %1761 = vmatpush.bf16.msra.mxu0 0
        %1762 = vmatpush.bf16.msra.mxu0 0
        %1763 = vmatpush.bf16.msra.mxu0 0
        %1764 = vmatpush.bf16.msra.mxu0 0
        %1765 = vmatpush.bf16.msra.mxu0 0
        %1766 = vmatpush.bf16.msra.mxu0 %v1754
        %1767 = vmatmul.bf16.gmra.mxu0 %v1757
        %v1768 = vpop.f32.mrf.mxu0
        %v1769 = vadd.f32 0.0, %v1768
        %v1770 = vpop.f32.mrf.mxu0
        %v1771 = vadd.f32 0.0, %v1770
        %1772 = vdwg.mxu0
        %v1773 = vmul.f32 %v1769, %v1750
        %v1774 = vmul.f32 %v1771, %v1751
        %v1775 = vpack.c.bf16 %v1773, %v1773
        %v1776 = vpack.c.bf16 %v1774, %v1774
        %1777 = vrot.lane.b32.xlu0 %v1630, 64
        %v1778 = vpop.permute.xlu0 %1777
        %1779 = vrot.lane.b32.xlu0 %v1635, 64
        %v1780 = vpop.permute.xlu0 %1779
        %v1782 = vsel %vm651, %v1778, 0
        %v1785 = vsel %vm651, %v1780, 0
        %1787 = vmatpush.bf16.xpose.msra.mxu0 0
        %1788 = vmatpush.bf16.xpose.msra.mxu0 0
        %1789 = vmatpush.bf16.xpose.msra.mxu0 0
        %1790 = vmatpush.bf16.xpose.msra.mxu0 0
        %1791 = vmatpush.bf16.xpose.msra.mxu0 0
        %1792 = vmatpush.bf16.xpose.msra.mxu0 0
        %1793 = vmatpush.bf16.xpose.msra.mxu0 0
        %1794 = vmatpush.bf16.xpose.msra.mxu0 %v1785
        %1795 = vmatmul.bf16.gmra.mxu0 %v1782
        %v1796 = vpop.f32.mrf.mxu0
        %v1797 = vadd.f32 0.0, %v1796
        %v1798 = vpop.f32.mrf.mxu0
        %v1799 = vadd.f32 0.0, %v1798
        %1800 = vdwg.mxu0
        %v1801 = vsel %vm639, %v1797, -1e+30
        %v1802 = vsel %vm640, %v1799, -1e+30
        %v1803 = vsel %vm674, %v1801, -inf
        %1804 = vmax.xlane.f32.xlu0 %v1803
        %v1805 = vpop.xlane.xlu0 %1804
        %v1806 = vsel %vm674, %v1802, -inf
        %1807 = vmax.xlane.f32.xlu0 %v1806
        %v1808 = vpop.xlane.xlu0 %1807
        %v1809 = vsub.f32 %v1801, %v1805
        %v1810 = vsub.f32 %v1802, %v1808
        %v1811 = vmul.f32 %v1809, 1.442695
        %v1812 = vpow.pop %v1811
        %v1813 = vmul.f32 %v1810, 1.442695
        %v1814 = vpow.pop %v1813
        %v1815 = vsel %vm674, %v1812, 0.0
        %1816 = vadd.xlane.f32.xlu0 %v1815
        %v1817 = vpop.xlane.xlu0 %1816
        %v1818 = vsel %vm674, %v1814, 0.0
        %1819 = vadd.xlane.f32.xlu0 %v1818
        %v1820 = vpop.xlane.xlu0 %1819
        %v1821 = vrcp.pop %v1817
        %v1822 = vrcp.pop %v1820
        %v1823 = vpack.c.bf16 %v1814, %v1812
        %1824 = vrot.lane.b32.xlu0 %v1683, 64
        %v1825 = vpop.permute.xlu0 %1824
        %v1828 = vsel %vm674, %v1823, 0
        %1830 = vmatpush.bf16.msra.mxu0 0
        %1831 = vmatpush.bf16.msra.mxu0 0
        %1832 = vmatpush.bf16.msra.mxu0 0
        %1833 = vmatpush.bf16.msra.mxu0 0
        %1834 = vmatpush.bf16.msra.mxu0 0
        %1835 = vmatpush.bf16.msra.mxu0 0
        %1836 = vmatpush.bf16.msra.mxu0 0
        %1837 = vmatpush.bf16.msra.mxu0 %v1825
        %1838 = vmatmul.bf16.gmra.mxu0 %v1828
        %v1839 = vpop.f32.mrf.mxu0
        %v1840 = vadd.f32 0.0, %v1839
        %v1841 = vpop.f32.mrf.mxu0
        %v1842 = vadd.f32 0.0, %v1841
        %1843 = vdwg.mxu0
        %v1844 = vmul.f32 %v1840, %v1821
        %v1845 = vmul.f32 %v1842, %v1822
        %v1846 = vpack.c.bf16 %v1844, %v1844
        %v1847 = vpack.c.bf16 %v1845, %v1845
        %1848 = vrot.lane.b32.xlu0 %v1630, 32
        %v1849 = vpop.permute.xlu0 %1848
        %1850 = vrot.lane.b32.xlu0 %v1635, 32
        %v1851 = vpop.permute.xlu0 %1850
        %v1853 = vsel %vm651, %v1849, 0
        %v1856 = vsel %vm651, %v1851, 0
        %1858 = vmatpush.bf16.xpose.msra.mxu0 0
        %1859 = vmatpush.bf16.xpose.msra.mxu0 0
        %1860 = vmatpush.bf16.xpose.msra.mxu0 0
        %1861 = vmatpush.bf16.xpose.msra.mxu0 0
        %1862 = vmatpush.bf16.xpose.msra.mxu0 0
        %1863 = vmatpush.bf16.xpose.msra.mxu0 0
        %1864 = vmatpush.bf16.xpose.msra.mxu0 0
        %1865 = vmatpush.bf16.xpose.msra.mxu0 %v1856
        %1866 = vmatmul.bf16.gmra.mxu0 %v1853
        %v1867 = vpop.f32.mrf.mxu0
        %v1868 = vadd.f32 0.0, %v1867
        %v1869 = vpop.f32.mrf.mxu0
        %v1870 = vadd.f32 0.0, %v1869
        %1871 = vdwg.mxu0
        %v1872 = vsel %vm639, %v1868, -1e+30
        %v1873 = vsel %vm640, %v1870, -1e+30
        %v1874 = vsel %vm674, %v1872, -inf
        %1875 = vmax.xlane.f32.xlu0 %v1874
        %v1876 = vpop.xlane.xlu0 %1875
        %v1877 = vsel %vm674, %v1873, -inf
        %1878 = vmax.xlane.f32.xlu0 %v1877
        %v1879 = vpop.xlane.xlu0 %1878
        %v1880 = vsub.f32 %v1872, %v1876
        %v1881 = vsub.f32 %v1873, %v1879
        %v1882 = vmul.f32 %v1880, 1.442695
        %v1883 = vpow.pop %v1882
        %v1884 = vmul.f32 %v1881, 1.442695
        %v1885 = vpow.pop %v1884
        %v1886 = vsel %vm674, %v1883, 0.0
        %1887 = vadd.xlane.f32.xlu0 %v1886
        %v1888 = vpop.xlane.xlu0 %1887
        %v1889 = vsel %vm674, %v1885, 0.0
        %1890 = vadd.xlane.f32.xlu0 %v1889
        %v1891 = vpop.xlane.xlu0 %1890
        %v1892 = vrcp.pop %v1888
        %v1893 = vrcp.pop %v1891
        %v1894 = vpack.c.bf16 %v1885, %v1883
        %1895 = vrot.lane.b32.xlu0 %v1683, 32
        %v1896 = vpop.permute.xlu0 %1895
        %v1899 = vsel %vm674, %v1894, 0
        %1901 = vmatpush.bf16.msra.mxu0 0
        %1902 = vmatpush.bf16.msra.mxu0 0
        %1903 = vmatpush.bf16.msra.mxu0 0
        %1904 = vmatpush.bf16.msra.mxu0 0
        %1905 = vmatpush.bf16.msra.mxu0 0
        %1906 = vmatpush.bf16.msra.mxu0 0
        %1907 = vmatpush.bf16.msra.mxu0 0
        %1908 = vmatpush.bf16.msra.mxu0 %v1896
        %1909 = vmatmul.bf16.gmra.mxu0 %v1899
        %v1910 = vpop.f32.mrf.mxu0
        %v1911 = vadd.f32 0.0, %v1910
        %v1912 = vpop.f32.mrf.mxu0
        %v1913 = vadd.f32 0.0, %v1912
        %1914 = vdwg.mxu0
        %v1915 = vmul.f32 %v1911, %v1892
        %v1916 = vmul.f32 %v1913, %v1893
        %v1917 = vpack.c.bf16 %v1915, %v1915
        %v1918 = vpack.c.bf16 %v1916, %v1916
        %v1921 = vunpack.c.l.b16 %v1704
        %v1922 = vunpack.c.l.b16 %v1705
        %v1923 = vpack.c.b16 %v1922, %v1921
        %v1926 = vunpack.c.l.b16 %v1775
        %v1927 = vunpack.c.l.b16 %v1776
        %v1928 = vpack.c.b16 %v1927, %v1926
        %1929 = vrot.lane.b32.xlu0 %v1928, 32
        %v1930 = vpop.permute.xlu0 %1929
        %v1933 = vunpack.c.l.b16 %v1846
        %v1934 = vunpack.c.l.b16 %v1847
        %v1935 = vpack.c.b16 %v1934, %v1933
        %1936 = vrot.lane.b32.xlu0 %v1935, 64
        %v1937 = vpop.permute.xlu0 %1936
        %v1940 = vunpack.c.l.b16 %v1917
        %v1941 = vunpack.c.l.b16 %v1918
        %v1942 = vpack.c.b16 %v1941, %v1940
        %1943 = vrot.lane.b32.xlu0 %v1942, 96
        %v1944 = vpop.permute.xlu0 %1943
        %v1947 = vsel %vm651, %v1923, %v1930
        %v1949 = vsel %vm965, %v1947, %v1937
        %v1951 = vsel %vm968, %v1949, %v1944
        %v1955 = vunpack.c.l.b16 %v594
        %v1956 = vunpack.c.l.b16 %v595
        %v1957 = vpack.c.b16 %v1956, %v1955
        %v1960 = vunpack.c.l.b16 %v610
        %v1961 = vunpack.c.l.b16 %v611
        %v1962 = vpack.c.b16 %v1961, %v1960
        %v1964 = vsel %vm651, %v1957, 0
        %v1967 = vsel %vm651, %v1962, 0
        %1969 = vmatpush.bf16.xpose.msra.mxu0 0
        %1970 = vmatpush.bf16.xpose.msra.mxu0 0
        %1971 = vmatpush.bf16.xpose.msra.mxu0 0
        %1972 = vmatpush.bf16.xpose.msra.mxu0 0
        %1973 = vmatpush.bf16.xpose.msra.mxu0 0
        %1974 = vmatpush.bf16.xpose.msra.mxu0 0
        %1975 = vmatpush.bf16.xpose.msra.mxu0 0
        %1976 = vmatpush.bf16.xpose.msra.mxu0 %v1967
        %1977 = vmatmul.bf16.gmra.mxu0 %v1964
        %v1978 = vpop.f32.mrf.mxu0
        %v1979 = vadd.f32 0.0, %v1978
        %v1980 = vpop.f32.mrf.mxu0
        %v1981 = vadd.f32 0.0, %v1980
        %1982 = vdwg.mxu0
        %v1983 = vsel %vm639, %v1979, -1e+30
        %v1984 = vsel %vm640, %v1981, -1e+30
        %v1985 = vsel %vm674, %v1983, -inf
        %1986 = vmax.xlane.f32.xlu0 %v1985
        %v1987 = vpop.xlane.xlu0 %1986
        %v1988 = vsel %vm674, %v1984, -inf
        %1989 = vmax.xlane.f32.xlu0 %v1988
        %v1990 = vpop.xlane.xlu0 %1989
        %v1991 = vsub.f32 %v1983, %v1987
        %v1992 = vsub.f32 %v1984, %v1990
        %v1993 = vmul.f32 %v1991, 1.442695
        %v1994 = vpow.pop %v1993
        %v1995 = vmul.f32 %v1992, 1.442695
        %v1996 = vpow.pop %v1995
        %v1997 = vsel %vm674, %v1994, 0.0
        %1998 = vadd.xlane.f32.xlu0 %v1997
        %v1999 = vpop.xlane.xlu0 %1998
        %v2000 = vsel %vm674, %v1996, 0.0
        %2001 = vadd.xlane.f32.xlu0 %v2000
        %v2002 = vpop.xlane.xlu0 %2001
        %v2003 = vrcp.pop %v1999
        %v2004 = vrcp.pop %v2002
        %v2005 = vpack.c.bf16 %v1996, %v1994
        %v2008 = vunpack.c.l.b16 %v626
        %v2009 = vunpack.c.l.b16 %v627
        %v2010 = vpack.c.b16 %v2009, %v2008
        %v2013 = vsel %vm674, %v2005, 0
        %2015 = vmatpush.bf16.msra.mxu0 0
        %2016 = vmatpush.bf16.msra.mxu0 0
        %2017 = vmatpush.bf16.msra.mxu0 0
        %2018 = vmatpush.bf16.msra.mxu0 0
        %2019 = vmatpush.bf16.msra.mxu0 0
        %2020 = vmatpush.bf16.msra.mxu0 0
        %2021 = vmatpush.bf16.msra.mxu0 0
        %2022 = vmatpush.bf16.msra.mxu0 %v2010
        %2023 = vmatmul.bf16.gmra.mxu0 %v2013
        %v2024 = vpop.f32.mrf.mxu0
        %v2025 = vadd.f32 0.0, %v2024
        %v2026 = vpop.f32.mrf.mxu0
        %v2027 = vadd.f32 0.0, %v2026
        %2028 = vdwg.mxu0
        %v2029 = vmul.f32 %v2025, %v2003
        %v2030 = vmul.f32 %v2027, %v2004
        %v2031 = vpack.c.bf16 %v2029, %v2029
        %v2032 = vpack.c.bf16 %v2030, %v2030
        %2033 = vrot.lane.b32.xlu0 %v1957, 96
        %v2034 = vpop.permute.xlu0 %2033
        %2035 = vrot.lane.b32.xlu0 %v1962, 96
        %v2036 = vpop.permute.xlu0 %2035
        %v2038 = vsel %vm651, %v2034, 0
        %v2041 = vsel %vm651, %v2036, 0
        %2043 = vmatpush.bf16.xpose.msra.mxu0 0
        %2044 = vmatpush.bf16.xpose.msra.mxu0 0
        %2045 = vmatpush.bf16.xpose.msra.mxu0 0
        %2046 = vmatpush.bf16.xpose.msra.mxu0 0
        %2047 = vmatpush.bf16.xpose.msra.mxu0 0
        %2048 = vmatpush.bf16.xpose.msra.mxu0 0
        %2049 = vmatpush.bf16.xpose.msra.mxu0 0
        %2050 = vmatpush.bf16.xpose.msra.mxu0 %v2041
        %2051 = vmatmul.bf16.gmra.mxu0 %v2038
        %v2052 = vpop.f32.mrf.mxu0
        %v2053 = vadd.f32 0.0, %v2052
        %v2054 = vpop.f32.mrf.mxu0
        %v2055 = vadd.f32 0.0, %v2054
        %2056 = vdwg.mxu0
        %v2057 = vsel %vm639, %v2053, -1e+30
        %v2058 = vsel %vm640, %v2055, -1e+30
        %v2059 = vsel %vm674, %v2057, -inf
        %2060 = vmax.xlane.f32.xlu0 %v2059
        %v2061 = vpop.xlane.xlu0 %2060
        %v2062 = vsel %vm674, %v2058, -inf
        %2063 = vmax.xlane.f32.xlu0 %v2062
        %v2064 = vpop.xlane.xlu0 %2063
        %v2065 = vsub.f32 %v2057, %v2061
        %v2066 = vsub.f32 %v2058, %v2064
        %v2067 = vmul.f32 %v2065, 1.442695
        %v2068 = vpow.pop %v2067
        %v2069 = vmul.f32 %v2066, 1.442695
        %v2070 = vpow.pop %v2069
        %v2071 = vsel %vm674, %v2068, 0.0
        %2072 = vadd.xlane.f32.xlu0 %v2071
        %v2073 = vpop.xlane.xlu0 %2072
        %v2074 = vsel %vm674, %v2070, 0.0
        %2075 = vadd.xlane.f32.xlu0 %v2074
        %v2076 = vpop.xlane.xlu0 %2075
        %v2077 = vrcp.pop %v2073
        %v2078 = vrcp.pop %v2076
        %v2079 = vpack.c.bf16 %v2070, %v2068
        %2080 = vrot.lane.b32.xlu0 %v2010, 96
        %v2081 = vpop.permute.xlu0 %2080
        %v2084 = vsel %vm674, %v2079, 0
        %2086 = vmatpush.bf16.msra.mxu0 0
        %2087 = vmatpush.bf16.msra.mxu0 0
        %2088 = vmatpush.bf16.msra.mxu0 0
        %2089 = vmatpush.bf16.msra.mxu0 0
        %2090 = vmatpush.bf16.msra.mxu0 0
        %2091 = vmatpush.bf16.msra.mxu0 0
        %2092 = vmatpush.bf16.msra.mxu0 0
        %2093 = vmatpush.bf16.msra.mxu0 %v2081
        %2094 = vmatmul.bf16.gmra.mxu0 %v2084
        %v2095 = vpop.f32.mrf.mxu0
        %v2096 = vadd.f32 0.0, %v2095
        %v2097 = vpop.f32.mrf.mxu0
        %v2098 = vadd.f32 0.0, %v2097
        %2099 = vdwg.mxu0
        %v2100 = vmul.f32 %v2096, %v2077
        %v2101 = vmul.f32 %v2098, %v2078
        %v2102 = vpack.c.bf16 %v2100, %v2100
        %v2103 = vpack.c.bf16 %v2101, %v2101
        %2104 = vrot.lane.b32.xlu0 %v1957, 64
        %v2105 = vpop.permute.xlu0 %2104
        %2106 = vrot.lane.b32.xlu0 %v1962, 64
        %v2107 = vpop.permute.xlu0 %2106
        %v2109 = vsel %vm651, %v2105, 0
        %v2112 = vsel %vm651, %v2107, 0
        %2114 = vmatpush.bf16.xpose.msra.mxu0 0
        %2115 = vmatpush.bf16.xpose.msra.mxu0 0
        %2116 = vmatpush.bf16.xpose.msra.mxu0 0
        %2117 = vmatpush.bf16.xpose.msra.mxu0 0
        %2118 = vmatpush.bf16.xpose.msra.mxu0 0
        %2119 = vmatpush.bf16.xpose.msra.mxu0 0
        %2120 = vmatpush.bf16.xpose.msra.mxu0 0
        %2121 = vmatpush.bf16.xpose.msra.mxu0 %v2112
        %2122 = vmatmul.bf16.gmra.mxu0 %v2109
        %v2123 = vpop.f32.mrf.mxu0
        %v2124 = vadd.f32 0.0, %v2123
        %v2125 = vpop.f32.mrf.mxu0
        %v2126 = vadd.f32 0.0, %v2125
        %2127 = vdwg.mxu0
        %v2128 = vsel %vm639, %v2124, -1e+30
        %v2129 = vsel %vm640, %v2126, -1e+30
        %v2130 = vsel %vm674, %v2128, -inf
        %2131 = vmax.xlane.f32.xlu0 %v2130
        %v2132 = vpop.xlane.xlu0 %2131
        %v2133 = vsel %vm674, %v2129, -inf
        %2134 = vmax.xlane.f32.xlu0 %v2133
        %v2135 = vpop.xlane.xlu0 %2134
        %v2136 = vsub.f32 %v2128, %v2132
        %v2137 = vsub.f32 %v2129, %v2135
        %v2138 = vmul.f32 %v2136, 1.442695
        %v2139 = vpow.pop %v2138
        %v2140 = vmul.f32 %v2137, 1.442695
        %v2141 = vpow.pop %v2140
        %v2142 = vsel %vm674, %v2139, 0.0
        %2143 = vadd.xlane.f32.xlu0 %v2142
        %v2144 = vpop.xlane.xlu0 %2143
        %v2145 = vsel %vm674, %v2141, 0.0
        %2146 = vadd.xlane.f32.xlu0 %v2145
        %v2147 = vpop.xlane.xlu0 %2146
        %v2148 = vrcp.pop %v2144
        %v2149 = vrcp.pop %v2147
        %v2150 = vpack.c.bf16 %v2141, %v2139
        %2151 = vrot.lane.b32.xlu0 %v2010, 64
        %v2152 = vpop.permute.xlu0 %2151
        %v2155 = vsel %vm674, %v2150, 0
        %2157 = vmatpush.bf16.msra.mxu0 0
        %2158 = vmatpush.bf16.msra.mxu0 0
        %2159 = vmatpush.bf16.msra.mxu0 0
        %2160 = vmatpush.bf16.msra.mxu0 0
        %2161 = vmatpush.bf16.msra.mxu0 0
        %2162 = vmatpush.bf16.msra.mxu0 0
        %2163 = vmatpush.bf16.msra.mxu0 0
        %2164 = vmatpush.bf16.msra.mxu0 %v2152
        %2165 = vmatmul.bf16.gmra.mxu0 %v2155
        %v2166 = vpop.f32.mrf.mxu0
        %v2167 = vadd.f32 0.0, %v2166
        %v2168 = vpop.f32.mrf.mxu0
        %v2169 = vadd.f32 0.0, %v2168
        %2170 = vdwg.mxu0
        %v2171 = vmul.f32 %v2167, %v2148
        %v2172 = vmul.f32 %v2169, %v2149
        %v2173 = vpack.c.bf16 %v2171, %v2171
        %v2174 = vpack.c.bf16 %v2172, %v2172
        %2175 = vrot.lane.b32.xlu0 %v1957, 32
        %v2176 = vpop.permute.xlu0 %2175
        %2177 = vrot.lane.b32.xlu0 %v1962, 32
        %v2178 = vpop.permute.xlu0 %2177
        %v2180 = vsel %vm651, %v2176, 0
        %v2183 = vsel %vm651, %v2178, 0
        %2185 = vmatpush.bf16.xpose.msra.mxu0 0
        %2186 = vmatpush.bf16.xpose.msra.mxu0 0
        %2187 = vmatpush.bf16.xpose.msra.mxu0 0
        %2188 = vmatpush.bf16.xpose.msra.mxu0 0
        %2189 = vmatpush.bf16.xpose.msra.mxu0 0
        %2190 = vmatpush.bf16.xpose.msra.mxu0 0
        %2191 = vmatpush.bf16.xpose.msra.mxu0 0
        %2192 = vmatpush.bf16.xpose.msra.mxu0 %v2183
        %2193 = vmatmul.bf16.gmra.mxu0 %v2180
        %v2194 = vpop.f32.mrf.mxu0
        %v2195 = vadd.f32 0.0, %v2194
        %v2196 = vpop.f32.mrf.mxu0
        %v2197 = vadd.f32 0.0, %v2196
        %2198 = vdwg.mxu0
        %v2199 = vsel %vm639, %v2195, -1e+30
        %v2200 = vsel %vm640, %v2197, -1e+30
        %v2201 = vsel %vm674, %v2199, -inf
        %2202 = vmax.xlane.f32.xlu0 %v2201
        %v2203 = vpop.xlane.xlu0 %2202
        %v2204 = vsel %vm674, %v2200, -inf
        %2205 = vmax.xlane.f32.xlu0 %v2204
        %v2206 = vpop.xlane.xlu0 %2205
        %v2207 = vsub.f32 %v2199, %v2203
        %v2208 = vsub.f32 %v2200, %v2206
        %v2209 = vmul.f32 %v2207, 1.442695
        %v2210 = vpow.pop %v2209
        %v2211 = vmul.f32 %v2208, 1.442695
        %v2212 = vpow.pop %v2211
        %v2213 = vsel %vm674, %v2210, 0.0
        %2214 = vadd.xlane.f32.xlu0 %v2213
        %v2215 = vpop.xlane.xlu0 %2214
        %v2216 = vsel %vm674, %v2212, 0.0
        %2217 = vadd.xlane.f32.xlu0 %v2216
        %v2218 = vpop.xlane.xlu0 %2217
        %v2219 = vrcp.pop %v2215
        %v2220 = vrcp.pop %v2218
        %v2221 = vpack.c.bf16 %v2212, %v2210
        %2222 = vrot.lane.b32.xlu0 %v2010, 32
        %v2223 = vpop.permute.xlu0 %2222
        %v2226 = vsel %vm674, %v2221, 0
        %2228 = vmatpush.bf16.msra.mxu0 0
        %2229 = vmatpush.bf16.msra.mxu0 0
        %2230 = vmatpush.bf16.msra.mxu0 0
        %2231 = vmatpush.bf16.msra.mxu0 0
        %2232 = vmatpush.bf16.msra.mxu0 0
        %2233 = vmatpush.bf16.msra.mxu0 0
        %2234 = vmatpush.bf16.msra.mxu0 0
        %2235 = vmatpush.bf16.msra.mxu0 %v2223
        %2236 = vmatmul.bf16.gmra.mxu0 %v2226
        %v2237 = vpop.f32.mrf.mxu0
        %v2238 = vadd.f32 0.0, %v2237
        %v2239 = vpop.f32.mrf.mxu0
        %v2240 = vadd.f32 0.0, %v2239
        %2241 = vdwg.mxu0
        %v2242 = vmul.f32 %v2238, %v2219
        %v2243 = vmul.f32 %v2240, %v2220
        %v2244 = vpack.c.bf16 %v2242, %v2242
        %v2245 = vpack.c.bf16 %v2243, %v2243
        %v2248 = vunpack.c.l.b16 %v2031
        %v2249 = vunpack.c.l.b16 %v2032
        %v2250 = vpack.c.b16 %v2249, %v2248
        %v2253 = vunpack.c.l.b16 %v2102
        %v2254 = vunpack.c.l.b16 %v2103
        %v2255 = vpack.c.b16 %v2254, %v2253
        %2256 = vrot.lane.b32.xlu0 %v2255, 32
        %v2257 = vpop.permute.xlu0 %2256
        %v2260 = vunpack.c.l.b16 %v2173
        %v2261 = vunpack.c.l.b16 %v2174
        %v2262 = vpack.c.b16 %v2261, %v2260
        %2263 = vrot.lane.b32.xlu0 %v2262, 64
        %v2264 = vpop.permute.xlu0 %2263
        %v2267 = vunpack.c.l.b16 %v2244
        %v2268 = vunpack.c.l.b16 %v2245
        %v2269 = vpack.c.b16 %v2268, %v2267
        %2270 = vrot.lane.b32.xlu0 %v2269, 96
        %v2271 = vpop.permute.xlu0 %2270
        %v2274 = vsel %vm651, %v2250, %v2257
        %v2276 = vsel %vm965, %v2274, %v2264
        %v2278 = vsel %vm968, %v2276, %v2271
        %v2282 = vunpack.c.l.b16 %v596
        %v2283 = vunpack.c.l.b16 %v597
        %v2284 = vpack.c.b16 %v2283, %v2282
        %v2287 = vunpack.c.l.b16 %v612
        %v2288 = vunpack.c.l.b16 %v613
        %v2289 = vpack.c.b16 %v2288, %v2287
        %v2291 = vsel %vm651, %v2284, 0
        %v2294 = vsel %vm651, %v2289, 0
        %2296 = vmatpush.bf16.xpose.msra.mxu0 0
        %2297 = vmatpush.bf16.xpose.msra.mxu0 0
        %2298 = vmatpush.bf16.xpose.msra.mxu0 0
        %2299 = vmatpush.bf16.xpose.msra.mxu0 0
        %2300 = vmatpush.bf16.xpose.msra.mxu0 0
        %2301 = vmatpush.bf16.xpose.msra.mxu0 0
        %2302 = vmatpush.bf16.xpose.msra.mxu0 0
        %2303 = vmatpush.bf16.xpose.msra.mxu0 %v2294
        %2304 = vmatmul.bf16.gmra.mxu0 %v2291
        %v2305 = vpop.f32.mrf.mxu0
        %v2306 = vadd.f32 0.0, %v2305
        %v2307 = vpop.f32.mrf.mxu0
        %v2308 = vadd.f32 0.0, %v2307
        %2309 = vdwg.mxu0
        %v2310 = vsel %vm639, %v2306, -1e+30
        %v2311 = vsel %vm640, %v2308, -1e+30
        %v2312 = vsel %vm674, %v2310, -inf
        %2313 = vmax.xlane.f32.xlu0 %v2312
        %v2314 = vpop.xlane.xlu0 %2313
        %v2315 = vsel %vm674, %v2311, -inf
        %2316 = vmax.xlane.f32.xlu0 %v2315
        %v2317 = vpop.xlane.xlu0 %2316
        %v2318 = vsub.f32 %v2310, %v2314
        %v2319 = vsub.f32 %v2311, %v2317
        %v2320 = vmul.f32 %v2318, 1.442695
        %v2321 = vpow.pop %v2320
        %v2322 = vmul.f32 %v2319, 1.442695
        %v2323 = vpow.pop %v2322
        %v2324 = vsel %vm674, %v2321, 0.0
        %2325 = vadd.xlane.f32.xlu0 %v2324
        %v2326 = vpop.xlane.xlu0 %2325
        %v2327 = vsel %vm674, %v2323, 0.0
        %2328 = vadd.xlane.f32.xlu0 %v2327
        %v2329 = vpop.xlane.xlu0 %2328
        %v2330 = vrcp.pop %v2326
        %v2331 = vrcp.pop %v2329
        %v2332 = vpack.c.bf16 %v2323, %v2321
        %v2335 = vunpack.c.l.b16 %v628
        %v2336 = vunpack.c.l.b16 %v629
        %v2337 = vpack.c.b16 %v2336, %v2335
        %v2340 = vsel %vm674, %v2332, 0
        %2342 = vmatpush.bf16.msra.mxu0 0
        %2343 = vmatpush.bf16.msra.mxu0 0
        %2344 = vmatpush.bf16.msra.mxu0 0
        %2345 = vmatpush.bf16.msra.mxu0 0
        %2346 = vmatpush.bf16.msra.mxu0 0
        %2347 = vmatpush.bf16.msra.mxu0 0
        %2348 = vmatpush.bf16.msra.mxu0 0
        %2349 = vmatpush.bf16.msra.mxu0 %v2337
        %2350 = vmatmul.bf16.gmra.mxu0 %v2340
        %v2351 = vpop.f32.mrf.mxu0
        %v2352 = vadd.f32 0.0, %v2351
        %v2353 = vpop.f32.mrf.mxu0
        %v2354 = vadd.f32 0.0, %v2353
        %2355 = vdwg.mxu0
        %v2356 = vmul.f32 %v2352, %v2330
        %v2357 = vmul.f32 %v2354, %v2331
        %v2358 = vpack.c.bf16 %v2356, %v2356
        %v2359 = vpack.c.bf16 %v2357, %v2357
        %2360 = vrot.lane.b32.xlu0 %v2284, 96
        %v2361 = vpop.permute.xlu0 %2360
        %2362 = vrot.lane.b32.xlu0 %v2289, 96
        %v2363 = vpop.permute.xlu0 %2362
        %v2365 = vsel %vm651, %v2361, 0
        %v2368 = vsel %vm651, %v2363, 0
        %2370 = vmatpush.bf16.xpose.msra.mxu0 0
        %2371 = vmatpush.bf16.xpose.msra.mxu0 0
        %2372 = vmatpush.bf16.xpose.msra.mxu0 0
        %2373 = vmatpush.bf16.xpose.msra.mxu0 0
        %2374 = vmatpush.bf16.xpose.msra.mxu0 0
        %2375 = vmatpush.bf16.xpose.msra.mxu0 0
        %2376 = vmatpush.bf16.xpose.msra.mxu0 0
        %2377 = vmatpush.bf16.xpose.msra.mxu0 %v2368
        %2378 = vmatmul.bf16.gmra.mxu0 %v2365
        %v2379 = vpop.f32.mrf.mxu0
        %v2380 = vadd.f32 0.0, %v2379
        %v2381 = vpop.f32.mrf.mxu0
        %v2382 = vadd.f32 0.0, %v2381
        %2383 = vdwg.mxu0
        %v2384 = vsel %vm639, %v2380, -1e+30
        %v2385 = vsel %vm640, %v2382, -1e+30
        %v2386 = vsel %vm674, %v2384, -inf
        %2387 = vmax.xlane.f32.xlu0 %v2386
        %v2388 = vpop.xlane.xlu0 %2387
        %v2389 = vsel %vm674, %v2385, -inf
        %2390 = vmax.xlane.f32.xlu0 %v2389
        %v2391 = vpop.xlane.xlu0 %2390
        %v2392 = vsub.f32 %v2384, %v2388
        %v2393 = vsub.f32 %v2385, %v2391
        %v2394 = vmul.f32 %v2392, 1.442695
        %v2395 = vpow.pop %v2394
        %v2396 = vmul.f32 %v2393, 1.442695
        %v2397 = vpow.pop %v2396
        %v2398 = vsel %vm674, %v2395, 0.0
        %2399 = vadd.xlane.f32.xlu0 %v2398
        %v2400 = vpop.xlane.xlu0 %2399
        %v2401 = vsel %vm674, %v2397, 0.0
        %2402 = vadd.xlane.f32.xlu0 %v2401
        %v2403 = vpop.xlane.xlu0 %2402
        %v2404 = vrcp.pop %v2400
        %v2405 = vrcp.pop %v2403
        %v2406 = vpack.c.bf16 %v2397, %v2395
        %2407 = vrot.lane.b32.xlu0 %v2337, 96
        %v2408 = vpop.permute.xlu0 %2407
        %v2411 = vsel %vm674, %v2406, 0
        %2413 = vmatpush.bf16.msra.mxu0 0
        %2414 = vmatpush.bf16.msra.mxu0 0
        %2415 = vmatpush.bf16.msra.mxu0 0
        %2416 = vmatpush.bf16.msra.mxu0 0
        %2417 = vmatpush.bf16.msra.mxu0 0
        %2418 = vmatpush.bf16.msra.mxu0 0
        %2419 = vmatpush.bf16.msra.mxu0 0
        %2420 = vmatpush.bf16.msra.mxu0 %v2408
        %2421 = vmatmul.bf16.gmra.mxu0 %v2411
        %v2422 = vpop.f32.mrf.mxu0
        %v2423 = vadd.f32 0.0, %v2422
        %v2424 = vpop.f32.mrf.mxu0
        %v2425 = vadd.f32 0.0, %v2424
        %2426 = vdwg.mxu0
        %v2427 = vmul.f32 %v2423, %v2404
        %v2428 = vmul.f32 %v2425, %v2405
        %v2429 = vpack.c.bf16 %v2427, %v2427
        %v2430 = vpack.c.bf16 %v2428, %v2428
        %2431 = vrot.lane.b32.xlu0 %v2284, 64
        %v2432 = vpop.permute.xlu0 %2431
        %2433 = vrot.lane.b32.xlu0 %v2289, 64
        %v2434 = vpop.permute.xlu0 %2433
        %v2436 = vsel %vm651, %v2432, 0
        %v2439 = vsel %vm651, %v2434, 0
        %2441 = vmatpush.bf16.xpose.msra.mxu0 0
        %2442 = vmatpush.bf16.xpose.msra.mxu0 0
        %2443 = vmatpush.bf16.xpose.msra.mxu0 0
        %2444 = vmatpush.bf16.xpose.msra.mxu0 0
        %2445 = vmatpush.bf16.xpose.msra.mxu0 0
        %2446 = vmatpush.bf16.xpose.msra.mxu0 0
        %2447 = vmatpush.bf16.xpose.msra.mxu0 0
        %2448 = vmatpush.bf16.xpose.msra.mxu0 %v2439
        %2449 = vmatmul.bf16.gmra.mxu0 %v2436
        %v2450 = vpop.f32.mrf.mxu0
        %v2451 = vadd.f32 0.0, %v2450
        %v2452 = vpop.f32.mrf.mxu0
        %v2453 = vadd.f32 0.0, %v2452
        %2454 = vdwg.mxu0
        %v2455 = vsel %vm639, %v2451, -1e+30
        %v2456 = vsel %vm640, %v2453, -1e+30
        %v2457 = vsel %vm674, %v2455, -inf
        %2458 = vmax.xlane.f32.xlu0 %v2457
        %v2459 = vpop.xlane.xlu0 %2458
        %v2460 = vsel %vm674, %v2456, -inf
        %2461 = vmax.xlane.f32.xlu0 %v2460
        %v2462 = vpop.xlane.xlu0 %2461
        %v2463 = vsub.f32 %v2455, %v2459
        %v2464 = vsub.f32 %v2456, %v2462
        %v2465 = vmul.f32 %v2463, 1.442695
        %v2466 = vpow.pop %v2465
        %v2467 = vmul.f32 %v2464, 1.442695
        %v2468 = vpow.pop %v2467
        %v2469 = vsel %vm674, %v2466, 0.0
        %2470 = vadd.xlane.f32.xlu0 %v2469
        %v2471 = vpop.xlane.xlu0 %2470
        %v2472 = vsel %vm674, %v2468, 0.0
        %2473 = vadd.xlane.f32.xlu0 %v2472
        %v2474 = vpop.xlane.xlu0 %2473
        %v2475 = vrcp.pop %v2471
        %v2476 = vrcp.pop %v2474
        %v2477 = vpack.c.bf16 %v2468, %v2466
        %2478 = vrot.lane.b32.xlu0 %v2337, 64
        %v2479 = vpop.permute.xlu0 %2478
        %v2482 = vsel %vm674, %v2477, 0
        %2484 = vmatpush.bf16.msra.mxu0 0
        %2485 = vmatpush.bf16.msra.mxu0 0
        %2486 = vmatpush.bf16.msra.mxu0 0
        %2487 = vmatpush.bf16.msra.mxu0 0
        %2488 = vmatpush.bf16.msra.mxu0 0
        %2489 = vmatpush.bf16.msra.mxu0 0
        %2490 = vmatpush.bf16.msra.mxu0 0
        %2491 = vmatpush.bf16.msra.mxu0 %v2479
        %2492 = vmatmul.bf16.gmra.mxu0 %v2482
        %v2493 = vpop.f32.mrf.mxu0
        %v2494 = vadd.f32 0.0, %v2493
        %v2495 = vpop.f32.mrf.mxu0
        %v2496 = vadd.f32 0.0, %v2495
        %2497 = vdwg.mxu0
        %v2498 = vmul.f32 %v2494, %v2475
        %v2499 = vmul.f32 %v2496, %v2476
        %v2500 = vpack.c.bf16 %v2498, %v2498
        %v2501 = vpack.c.bf16 %v2499, %v2499
        %2502 = vrot.lane.b32.xlu0 %v2284, 32
        %v2503 = vpop.permute.xlu0 %2502
        %2504 = vrot.lane.b32.xlu0 %v2289, 32
        %v2505 = vpop.permute.xlu0 %2504
        %v2507 = vsel %vm651, %v2503, 0
        %v2510 = vsel %vm651, %v2505, 0
        %2512 = vmatpush.bf16.xpose.msra.mxu0 0
        %2513 = vmatpush.bf16.xpose.msra.mxu0 0
        %2514 = vmatpush.bf16.xpose.msra.mxu0 0
        %2515 = vmatpush.bf16.xpose.msra.mxu0 0
        %2516 = vmatpush.bf16.xpose.msra.mxu0 0
        %2517 = vmatpush.bf16.xpose.msra.mxu0 0
        %2518 = vmatpush.bf16.xpose.msra.mxu0 0
        %2519 = vmatpush.bf16.xpose.msra.mxu0 %v2510
        %2520 = vmatmul.bf16.gmra.mxu0 %v2507
        %v2521 = vpop.f32.mrf.mxu0
        %v2522 = vadd.f32 0.0, %v2521
        %v2523 = vpop.f32.mrf.mxu0
        %v2524 = vadd.f32 0.0, %v2523
        %2525 = vdwg.mxu0
        %v2526 = vsel %vm639, %v2522, -1e+30
        %v2527 = vsel %vm640, %v2524, -1e+30
        %v2528 = vsel %vm674, %v2526, -inf
        %2529 = vmax.xlane.f32.xlu0 %v2528
        %v2530 = vpop.xlane.xlu0 %2529
        %v2531 = vsel %vm674, %v2527, -inf
        %2532 = vmax.xlane.f32.xlu0 %v2531
        %v2533 = vpop.xlane.xlu0 %2532
        %v2534 = vsub.f32 %v2526, %v2530
        %v2535 = vsub.f32 %v2527, %v2533
        %v2536 = vmul.f32 %v2534, 1.442695
        %v2537 = vpow.pop %v2536
        %v2538 = vmul.f32 %v2535, 1.442695
        %v2539 = vpow.pop %v2538
        %v2540 = vsel %vm674, %v2537, 0.0
        %2541 = vadd.xlane.f32.xlu0 %v2540
        %v2542 = vpop.xlane.xlu0 %2541
        %v2543 = vsel %vm674, %v2539, 0.0
        %2544 = vadd.xlane.f32.xlu0 %v2543
        %v2545 = vpop.xlane.xlu0 %2544
        %v2546 = vrcp.pop %v2542
        %v2547 = vrcp.pop %v2545
        %v2548 = vpack.c.bf16 %v2539, %v2537
        %2549 = vrot.lane.b32.xlu0 %v2337, 32
        %v2550 = vpop.permute.xlu0 %2549
        %v2553 = vsel %vm674, %v2548, 0
        %2555 = vmatpush.bf16.msra.mxu0 0
        %2556 = vmatpush.bf16.msra.mxu0 0
        %2557 = vmatpush.bf16.msra.mxu0 0
        %2558 = vmatpush.bf16.msra.mxu0 0
        %2559 = vmatpush.bf16.msra.mxu0 0
        %2560 = vmatpush.bf16.msra.mxu0 0
        %2561 = vmatpush.bf16.msra.mxu0 0
        %2562 = vmatpush.bf16.msra.mxu0 %v2550
        %2563 = vmatmul.bf16.gmra.mxu0 %v2553
        %v2564 = vpop.f32.mrf.mxu0
        %v2565 = vadd.f32 0.0, %v2564
        %v2566 = vpop.f32.mrf.mxu0
        %v2567 = vadd.f32 0.0, %v2566
        %2568 = vdwg.mxu0
        %v2569 = vmul.f32 %v2565, %v2546
        %v2570 = vmul.f32 %v2567, %v2547
        %v2571 = vpack.c.bf16 %v2569, %v2569
        %v2572 = vpack.c.bf16 %v2570, %v2570
        %v2575 = vunpack.c.l.b16 %v2358
        %v2576 = vunpack.c.l.b16 %v2359
        %v2577 = vpack.c.b16 %v2576, %v2575
        %v2580 = vunpack.c.l.b16 %v2429
        %v2581 = vunpack.c.l.b16 %v2430
        %v2582 = vpack.c.b16 %v2581, %v2580
        %2583 = vrot.lane.b32.xlu0 %v2582, 32
        %v2584 = vpop.permute.xlu0 %2583
        %v2587 = vunpack.c.l.b16 %v2500
        %v2588 = vunpack.c.l.b16 %v2501
        %v2589 = vpack.c.b16 %v2588, %v2587
        %2590 = vrot.lane.b32.xlu0 %v2589, 64
        %v2591 = vpop.permute.xlu0 %2590
        %v2594 = vunpack.c.l.b16 %v2571
        %v2595 = vunpack.c.l.b16 %v2572
        %v2596 = vpack.c.b16 %v2595, %v2594
        %2597 = vrot.lane.b32.xlu0 %v2596, 96
        %v2598 = vpop.permute.xlu0 %2597
        %v2601 = vsel %vm651, %v2577, %v2584
        %v2603 = vsel %vm965, %v2601, %v2591
        %v2605 = vsel %vm968, %v2603, %v2598
        %v2609 = vunpack.c.l.b16 %v598
        %v2610 = vunpack.c.l.b16 %v599
        %v2611 = vpack.c.b16 %v2610, %v2609
        %v2614 = vunpack.c.l.b16 %v614
        %v2615 = vunpack.c.l.b16 %v615
        %v2616 = vpack.c.b16 %v2615, %v2614
        %v2618 = vsel %vm651, %v2611, 0
        %v2621 = vsel %vm651, %v2616, 0
        %2623 = vmatpush.bf16.xpose.msra.mxu0 0
        %2624 = vmatpush.bf16.xpose.msra.mxu0 0
        %2625 = vmatpush.bf16.xpose.msra.mxu0 0
        %2626 = vmatpush.bf16.xpose.msra.mxu0 0
        %2627 = vmatpush.bf16.xpose.msra.mxu0 0
        %2628 = vmatpush.bf16.xpose.msra.mxu0 0
        %2629 = vmatpush.bf16.xpose.msra.mxu0 0
        %2630 = vmatpush.bf16.xpose.msra.mxu0 %v2621
        %2631 = vmatmul.bf16.gmra.mxu0 %v2618
        %v2632 = vpop.f32.mrf.mxu0
        %v2633 = vadd.f32 0.0, %v2632
        %v2634 = vpop.f32.mrf.mxu0
        %v2635 = vadd.f32 0.0, %v2634
        %2636 = vdwg.mxu0
        %v2637 = vsel %vm639, %v2633, -1e+30
        %v2638 = vsel %vm640, %v2635, -1e+30
        %v2639 = vsel %vm674, %v2637, -inf
        %2640 = vmax.xlane.f32.xlu0 %v2639
        %v2641 = vpop.xlane.xlu0 %2640
        %v2642 = vsel %vm674, %v2638, -inf
        %2643 = vmax.xlane.f32.xlu0 %v2642
        %v2644 = vpop.xlane.xlu0 %2643
        %v2645 = vsub.f32 %v2637, %v2641
        %v2646 = vsub.f32 %v2638, %v2644
        %v2647 = vmul.f32 %v2645, 1.442695
        %v2648 = vpow.pop %v2647
        %v2649 = vmul.f32 %v2646, 1.442695
        %v2650 = vpow.pop %v2649
        %v2651 = vsel %vm674, %v2648, 0.0
        %2652 = vadd.xlane.f32.xlu0 %v2651
        %v2653 = vpop.xlane.xlu0 %2652
        %v2654 = vsel %vm674, %v2650, 0.0
        %2655 = vadd.xlane.f32.xlu0 %v2654
        %v2656 = vpop.xlane.xlu0 %2655
        %v2657 = vrcp.pop %v2653
        %v2658 = vrcp.pop %v2656
        %v2659 = vpack.c.bf16 %v2650, %v2648
        %v2662 = vunpack.c.l.b16 %v630
        %v2663 = vunpack.c.l.b16 %v631
        %v2664 = vpack.c.b16 %v2663, %v2662
        %v2667 = vsel %vm674, %v2659, 0
        %2669 = vmatpush.bf16.msra.mxu0 0
        %2670 = vmatpush.bf16.msra.mxu0 0
        %2671 = vmatpush.bf16.msra.mxu0 0
        %2672 = vmatpush.bf16.msra.mxu0 0
        %2673 = vmatpush.bf16.msra.mxu0 0
        %2674 = vmatpush.bf16.msra.mxu0 0
        %2675 = vmatpush.bf16.msra.mxu0 0
        %2676 = vmatpush.bf16.msra.mxu0 %v2664
        %2677 = vmatmul.bf16.gmra.mxu0 %v2667
        %v2678 = vpop.f32.mrf.mxu0
        %v2679 = vadd.f32 0.0, %v2678
        %v2680 = vpop.f32.mrf.mxu0
        %v2681 = vadd.f32 0.0, %v2680
        %2682 = vdwg.mxu0
        %v2683 = vmul.f32 %v2679, %v2657
        %v2684 = vmul.f32 %v2681, %v2658
        %v2685 = vpack.c.bf16 %v2683, %v2683
        %v2686 = vpack.c.bf16 %v2684, %v2684
        %2687 = vrot.lane.b32.xlu0 %v2611, 96
        %v2688 = vpop.permute.xlu0 %2687
        %2689 = vrot.lane.b32.xlu0 %v2616, 96
        %v2690 = vpop.permute.xlu0 %2689
        %v2692 = vsel %vm651, %v2688, 0
        %v2695 = vsel %vm651, %v2690, 0
        %2697 = vmatpush.bf16.xpose.msra.mxu0 0
        %2698 = vmatpush.bf16.xpose.msra.mxu0 0
        %2699 = vmatpush.bf16.xpose.msra.mxu0 0
        %2700 = vmatpush.bf16.xpose.msra.mxu0 0
        %2701 = vmatpush.bf16.xpose.msra.mxu0 0
        %2702 = vmatpush.bf16.xpose.msra.mxu0 0
        %2703 = vmatpush.bf16.xpose.msra.mxu0 0
        %2704 = vmatpush.bf16.xpose.msra.mxu0 %v2695
        %2705 = vmatmul.bf16.gmra.mxu0 %v2692
        %v2706 = vpop.f32.mrf.mxu0
        %v2707 = vadd.f32 0.0, %v2706
        %v2708 = vpop.f32.mrf.mxu0
        %v2709 = vadd.f32 0.0, %v2708
        %2710 = vdwg.mxu0
        %v2711 = vsel %vm639, %v2707, -1e+30
        %v2712 = vsel %vm640, %v2709, -1e+30
        %v2713 = vsel %vm674, %v2711, -inf
        %2714 = vmax.xlane.f32.xlu0 %v2713
        %v2715 = vpop.xlane.xlu0 %2714
        %v2716 = vsel %vm674, %v2712, -inf
        %2717 = vmax.xlane.f32.xlu0 %v2716
        %v2718 = vpop.xlane.xlu0 %2717
        %v2719 = vsub.f32 %v2711, %v2715
        %v2720 = vsub.f32 %v2712, %v2718
        %v2721 = vmul.f32 %v2719, 1.442695
        %v2722 = vpow.pop %v2721
        %v2723 = vmul.f32 %v2720, 1.442695
        %v2724 = vpow.pop %v2723
        %v2725 = vsel %vm674, %v2722, 0.0
        %2726 = vadd.xlane.f32.xlu0 %v2725
        %v2727 = vpop.xlane.xlu0 %2726
        %v2728 = vsel %vm674, %v2724, 0.0
        %2729 = vadd.xlane.f32.xlu0 %v2728
        %v2730 = vpop.xlane.xlu0 %2729
        %v2731 = vrcp.pop %v2727
        %v2732 = vrcp.pop %v2730
        %v2733 = vpack.c.bf16 %v2724, %v2722
        %2734 = vrot.lane.b32.xlu0 %v2664, 96
        %v2735 = vpop.permute.xlu0 %2734
        %v2738 = vsel %vm674, %v2733, 0
        %2740 = vmatpush.bf16.msra.mxu0 0
        %2741 = vmatpush.bf16.msra.mxu0 0
        %2742 = vmatpush.bf16.msra.mxu0 0
        %2743 = vmatpush.bf16.msra.mxu0 0
        %2744 = vmatpush.bf16.msra.mxu0 0
        %2745 = vmatpush.bf16.msra.mxu0 0
        %2746 = vmatpush.bf16.msra.mxu0 0
        %2747 = vmatpush.bf16.msra.mxu0 %v2735
        %2748 = vmatmul.bf16.gmra.mxu0 %v2738
        %v2749 = vpop.f32.mrf.mxu0
        %v2750 = vadd.f32 0.0, %v2749
        %v2751 = vpop.f32.mrf.mxu0
        %v2752 = vadd.f32 0.0, %v2751
        %2753 = vdwg.mxu0
        %v2754 = vmul.f32 %v2750, %v2731
        %v2755 = vmul.f32 %v2752, %v2732
        %v2756 = vpack.c.bf16 %v2754, %v2754
        %v2757 = vpack.c.bf16 %v2755, %v2755
        %2758 = vrot.lane.b32.xlu0 %v2611, 64
        %v2759 = vpop.permute.xlu0 %2758
        %2760 = vrot.lane.b32.xlu0 %v2616, 64
        %v2761 = vpop.permute.xlu0 %2760
        %v2763 = vsel %vm651, %v2759, 0
        %v2766 = vsel %vm651, %v2761, 0
        %2768 = vmatpush.bf16.xpose.msra.mxu0 0
        %2769 = vmatpush.bf16.xpose.msra.mxu0 0
        %2770 = vmatpush.bf16.xpose.msra.mxu0 0
        %2771 = vmatpush.bf16.xpose.msra.mxu0 0
        %2772 = vmatpush.bf16.xpose.msra.mxu0 0
        %2773 = vmatpush.bf16.xpose.msra.mxu0 0
        %2774 = vmatpush.bf16.xpose.msra.mxu0 0
        %2775 = vmatpush.bf16.xpose.msra.mxu0 %v2766
        %2776 = vmatmul.bf16.gmra.mxu0 %v2763
        %v2777 = vpop.f32.mrf.mxu0
        %v2778 = vadd.f32 0.0, %v2777
        %v2779 = vpop.f32.mrf.mxu0
        %v2780 = vadd.f32 0.0, %v2779
        %2781 = vdwg.mxu0
        %v2782 = vsel %vm639, %v2778, -1e+30
        %v2783 = vsel %vm640, %v2780, -1e+30
        %v2784 = vsel %vm674, %v2782, -inf
        %2785 = vmax.xlane.f32.xlu0 %v2784
        %v2786 = vpop.xlane.xlu0 %2785
        %v2787 = vsel %vm674, %v2783, -inf
        %2788 = vmax.xlane.f32.xlu0 %v2787
        %v2789 = vpop.xlane.xlu0 %2788
        %v2790 = vsub.f32 %v2782, %v2786
        %v2791 = vsub.f32 %v2783, %v2789
        %v2792 = vmul.f32 %v2790, 1.442695
        %v2793 = vpow.pop %v2792
        %v2794 = vmul.f32 %v2791, 1.442695
        %v2795 = vpow.pop %v2794
        %v2796 = vsel %vm674, %v2793, 0.0
        %2797 = vadd.xlane.f32.xlu0 %v2796
        %v2798 = vpop.xlane.xlu0 %2797
        %v2799 = vsel %vm674, %v2795, 0.0
        %2800 = vadd.xlane.f32.xlu0 %v2799
        %v2801 = vpop.xlane.xlu0 %2800
        %v2802 = vrcp.pop %v2798
        %v2803 = vrcp.pop %v2801
        %v2804 = vpack.c.bf16 %v2795, %v2793
        %2805 = vrot.lane.b32.xlu0 %v2664, 64
        %v2806 = vpop.permute.xlu0 %2805
        %v2809 = vsel %vm674, %v2804, 0
        %2811 = vmatpush.bf16.msra.mxu0 0
        %2812 = vmatpush.bf16.msra.mxu0 0
        %2813 = vmatpush.bf16.msra.mxu0 0
        %2814 = vmatpush.bf16.msra.mxu0 0
        %2815 = vmatpush.bf16.msra.mxu0 0
        %2816 = vmatpush.bf16.msra.mxu0 0
        %2817 = vmatpush.bf16.msra.mxu0 0
        %2818 = vmatpush.bf16.msra.mxu0 %v2806
        %2819 = vmatmul.bf16.gmra.mxu0 %v2809
        %v2820 = vpop.f32.mrf.mxu0
        %v2821 = vadd.f32 0.0, %v2820
        %v2822 = vpop.f32.mrf.mxu0
        %v2823 = vadd.f32 0.0, %v2822
        %2824 = vdwg.mxu0
        %v2825 = vmul.f32 %v2821, %v2802
        %v2826 = vmul.f32 %v2823, %v2803
        %v2827 = vpack.c.bf16 %v2825, %v2825
        %v2828 = vpack.c.bf16 %v2826, %v2826
        %2829 = vrot.lane.b32.xlu0 %v2611, 32
        %v2830 = vpop.permute.xlu0 %2829
        %2831 = vrot.lane.b32.xlu0 %v2616, 32
        %v2832 = vpop.permute.xlu0 %2831
        %v2834 = vsel %vm651, %v2830, 0
        %v2837 = vsel %vm651, %v2832, 0
        %2839 = vmatpush.bf16.xpose.msra.mxu0 0
        %2840 = vmatpush.bf16.xpose.msra.mxu0 0
        %2841 = vmatpush.bf16.xpose.msra.mxu0 0
        %2842 = vmatpush.bf16.xpose.msra.mxu0 0
        %2843 = vmatpush.bf16.xpose.msra.mxu0 0
        %2844 = vmatpush.bf16.xpose.msra.mxu0 0
        %2845 = vmatpush.bf16.xpose.msra.mxu0 0
        %2846 = vmatpush.bf16.xpose.msra.mxu0 %v2837
        %2847 = vmatmul.bf16.gmra.mxu0 %v2834
        %v2848 = vpop.f32.mrf.mxu0
        %v2849 = vadd.f32 0.0, %v2848
        %v2850 = vpop.f32.mrf.mxu0
        %v2851 = vadd.f32 0.0, %v2850
        %2852 = vdwg.mxu0
        %v2853 = vsel %vm639, %v2849, -1e+30
        %v2854 = vsel %vm640, %v2851, -1e+30
        %v2855 = vsel %vm674, %v2853, -inf
        %2856 = vmax.xlane.f32.xlu0 %v2855
        %v2857 = vpop.xlane.xlu0 %2856
        %v2858 = vsel %vm674, %v2854, -inf
        %2859 = vmax.xlane.f32.xlu0 %v2858
        %v2860 = vpop.xlane.xlu0 %2859
        %v2861 = vsub.f32 %v2853, %v2857
        %v2862 = vsub.f32 %v2854, %v2860
        %v2863 = vmul.f32 %v2861, 1.442695
        %v2864 = vpow.pop %v2863
        %v2865 = vmul.f32 %v2862, 1.442695
        %v2866 = vpow.pop %v2865
        %v2867 = vsel %vm674, %v2864, 0.0
        %2868 = vadd.xlane.f32.xlu0 %v2867
        %v2869 = vpop.xlane.xlu0 %2868
        %v2870 = vsel %vm674, %v2866, 0.0
        %2871 = vadd.xlane.f32.xlu0 %v2870
        %v2872 = vpop.xlane.xlu0 %2871
        %v2873 = vrcp.pop %v2869
        %v2874 = vrcp.pop %v2872
        %v2875 = vpack.c.bf16 %v2866, %v2864
        %2876 = vrot.lane.b32.xlu0 %v2664, 32
        %v2877 = vpop.permute.xlu0 %2876
        %v2880 = vsel %vm674, %v2875, 0
        %2882 = vmatpush.bf16.msra.mxu0 0
        %2883 = vmatpush.bf16.msra.mxu0 0
        %2884 = vmatpush.bf16.msra.mxu0 0
        %2885 = vmatpush.bf16.msra.mxu0 0
        %2886 = vmatpush.bf16.msra.mxu0 0
        %2887 = vmatpush.bf16.msra.mxu0 0
        %2888 = vmatpush.bf16.msra.mxu0 0
        %2889 = vmatpush.bf16.msra.mxu0 %v2877
        %2890 = vmatmul.bf16.gmra.mxu0 %v2880
        %v2891 = vpop.f32.mrf.mxu0
        %v2892 = vadd.f32 0.0, %v2891
        %v2893 = vpop.f32.mrf.mxu0
        %v2894 = vadd.f32 0.0, %v2893
        %2895 = vdwg.mxu0
        %v2896 = vmul.f32 %v2892, %v2873
        %v2897 = vmul.f32 %v2894, %v2874
        %v2898 = vpack.c.bf16 %v2896, %v2896
        %v2899 = vpack.c.bf16 %v2897, %v2897
        %v2902 = vunpack.c.l.b16 %v2685
        %v2903 = vunpack.c.l.b16 %v2686
        %v2904 = vpack.c.b16 %v2903, %v2902
        %v2907 = vunpack.c.l.b16 %v2756
        %v2908 = vunpack.c.l.b16 %v2757
        %v2909 = vpack.c.b16 %v2908, %v2907
        %2910 = vrot.lane.b32.xlu0 %v2909, 32
        %v2911 = vpop.permute.xlu0 %2910
        %v2914 = vunpack.c.l.b16 %v2827
        %v2915 = vunpack.c.l.b16 %v2828
        %v2916 = vpack.c.b16 %v2915, %v2914
        %2917 = vrot.lane.b32.xlu0 %v2916, 64
        %v2918 = vpop.permute.xlu0 %2917
        %v2921 = vunpack.c.l.b16 %v2898
        %v2922 = vunpack.c.l.b16 %v2899
        %v2923 = vpack.c.b16 %v2922, %v2921
        %2924 = vrot.lane.b32.xlu0 %v2923, 96
        %v2925 = vpop.permute.xlu0 %2924
        %v2928 = vsel %vm651, %v2904, %v2911
        %v2930 = vsel %vm965, %v2928, %v2918
        %v2932 = vsel %vm968, %v2930, %v2925
        %v2936 = vunpack.c.l.b16 %v600
        %v2937 = vunpack.c.l.b16 %v601
        %v2938 = vpack.c.b16 %v2937, %v2936
        %v2941 = vunpack.c.l.b16 %v616
        %v2942 = vunpack.c.l.b16 %v617
        %v2943 = vpack.c.b16 %v2942, %v2941
        %v2945 = vsel %vm651, %v2938, 0
        %v2948 = vsel %vm651, %v2943, 0
        %2950 = vmatpush.bf16.xpose.msra.mxu0 0
        %2951 = vmatpush.bf16.xpose.msra.mxu0 0
        %2952 = vmatpush.bf16.xpose.msra.mxu0 0
        %2953 = vmatpush.bf16.xpose.msra.mxu0 0
        %2954 = vmatpush.bf16.xpose.msra.mxu0 0
        %2955 = vmatpush.bf16.xpose.msra.mxu0 0
        %2956 = vmatpush.bf16.xpose.msra.mxu0 0
        %2957 = vmatpush.bf16.xpose.msra.mxu0 %v2948
        %2958 = vmatmul.bf16.gmra.mxu0 %v2945
        %v2959 = vpop.f32.mrf.mxu0
        %v2960 = vadd.f32 0.0, %v2959
        %v2961 = vpop.f32.mrf.mxu0
        %v2962 = vadd.f32 0.0, %v2961
        %2963 = vdwg.mxu0
        %v2964 = vsel %vm639, %v2960, -1e+30
        %v2965 = vsel %vm640, %v2962, -1e+30
        %v2966 = vsel %vm674, %v2964, -inf
        %2967 = vmax.xlane.f32.xlu0 %v2966
        %v2968 = vpop.xlane.xlu0 %2967
        %v2969 = vsel %vm674, %v2965, -inf
        %2970 = vmax.xlane.f32.xlu0 %v2969
        %v2971 = vpop.xlane.xlu0 %2970
        %v2972 = vsub.f32 %v2964, %v2968
        %v2973 = vsub.f32 %v2965, %v2971
        %v2974 = vmul.f32 %v2972, 1.442695
        %v2975 = vpow.pop %v2974
        %v2976 = vmul.f32 %v2973, 1.442695
        %v2977 = vpow.pop %v2976
        %v2978 = vsel %vm674, %v2975, 0.0
        %2979 = vadd.xlane.f32.xlu0 %v2978
        %v2980 = vpop.xlane.xlu0 %2979
        %v2981 = vsel %vm674, %v2977, 0.0
        %2982 = vadd.xlane.f32.xlu0 %v2981
        %v2983 = vpop.xlane.xlu0 %2982
        %v2984 = vrcp.pop %v2980
        %v2985 = vrcp.pop %v2983
        %v2986 = vpack.c.bf16 %v2977, %v2975
        %v2989 = vunpack.c.l.b16 %v632
        %v2990 = vunpack.c.l.b16 %v633
        %v2991 = vpack.c.b16 %v2990, %v2989
        %v2994 = vsel %vm674, %v2986, 0
        %2996 = vmatpush.bf16.msra.mxu0 0
        %2997 = vmatpush.bf16.msra.mxu0 0
        %2998 = vmatpush.bf16.msra.mxu0 0
        %2999 = vmatpush.bf16.msra.mxu0 0
        %3000 = vmatpush.bf16.msra.mxu0 0
        %3001 = vmatpush.bf16.msra.mxu0 0
        %3002 = vmatpush.bf16.msra.mxu0 0
        %3003 = vmatpush.bf16.msra.mxu0 %v2991
        %3004 = vmatmul.bf16.gmra.mxu0 %v2994
        %v3005 = vpop.f32.mrf.mxu0
        %v3006 = vadd.f32 0.0, %v3005
        %v3007 = vpop.f32.mrf.mxu0
        %v3008 = vadd.f32 0.0, %v3007
        %3009 = vdwg.mxu0
        %v3010 = vmul.f32 %v3006, %v2984
        %v3011 = vmul.f32 %v3008, %v2985
        %v3012 = vpack.c.bf16 %v3010, %v3010
        %v3013 = vpack.c.bf16 %v3011, %v3011
        %3014 = vrot.lane.b32.xlu0 %v2938, 96
        %v3015 = vpop.permute.xlu0 %3014
        %3016 = vrot.lane.b32.xlu0 %v2943, 96
        %v3017 = vpop.permute.xlu0 %3016
        %v3019 = vsel %vm651, %v3015, 0
        %v3022 = vsel %vm651, %v3017, 0
        %3024 = vmatpush.bf16.xpose.msra.mxu0 0
        %3025 = vmatpush.bf16.xpose.msra.mxu0 0
        %3026 = vmatpush.bf16.xpose.msra.mxu0 0
        %3027 = vmatpush.bf16.xpose.msra.mxu0 0
        %3028 = vmatpush.bf16.xpose.msra.mxu0 0
        %3029 = vmatpush.bf16.xpose.msra.mxu0 0
        %3030 = vmatpush.bf16.xpose.msra.mxu0 0
        %3031 = vmatpush.bf16.xpose.msra.mxu0 %v3022
        %3032 = vmatmul.bf16.gmra.mxu0 %v3019
        %v3033 = vpop.f32.mrf.mxu0
        %v3034 = vadd.f32 0.0, %v3033
        %v3035 = vpop.f32.mrf.mxu0
        %v3036 = vadd.f32 0.0, %v3035
        %3037 = vdwg.mxu0
        %v3038 = vsel %vm639, %v3034, -1e+30
        %v3039 = vsel %vm640, %v3036, -1e+30
        %v3040 = vsel %vm674, %v3038, -inf
        %3041 = vmax.xlane.f32.xlu0 %v3040
        %v3042 = vpop.xlane.xlu0 %3041
        %v3043 = vsel %vm674, %v3039, -inf
        %3044 = vmax.xlane.f32.xlu0 %v3043
        %v3045 = vpop.xlane.xlu0 %3044
        %v3046 = vsub.f32 %v3038, %v3042
        %v3047 = vsub.f32 %v3039, %v3045
        %v3048 = vmul.f32 %v3046, 1.442695
        %v3049 = vpow.pop %v3048
        %v3050 = vmul.f32 %v3047, 1.442695
        %v3051 = vpow.pop %v3050
        %v3052 = vsel %vm674, %v3049, 0.0
        %3053 = vadd.xlane.f32.xlu0 %v3052
        %v3054 = vpop.xlane.xlu0 %3053
        %v3055 = vsel %vm674, %v3051, 0.0
        %3056 = vadd.xlane.f32.xlu0 %v3055
        %v3057 = vpop.xlane.xlu0 %3056
        %v3058 = vrcp.pop %v3054
        %v3059 = vrcp.pop %v3057
        %v3060 = vpack.c.bf16 %v3051, %v3049
        %3061 = vrot.lane.b32.xlu0 %v2991, 96
        %v3062 = vpop.permute.xlu0 %3061
        %v3065 = vsel %vm674, %v3060, 0
        %3067 = vmatpush.bf16.msra.mxu0 0
        %3068 = vmatpush.bf16.msra.mxu0 0
        %3069 = vmatpush.bf16.msra.mxu0 0
        %3070 = vmatpush.bf16.msra.mxu0 0
        %3071 = vmatpush.bf16.msra.mxu0 0
        %3072 = vmatpush.bf16.msra.mxu0 0
        %3073 = vmatpush.bf16.msra.mxu0 0
        %3074 = vmatpush.bf16.msra.mxu0 %v3062
        %3075 = vmatmul.bf16.gmra.mxu0 %v3065
        %v3076 = vpop.f32.mrf.mxu0
        %v3077 = vadd.f32 0.0, %v3076
        %v3078 = vpop.f32.mrf.mxu0
        %v3079 = vadd.f32 0.0, %v3078
        %3080 = vdwg.mxu0
        %v3081 = vmul.f32 %v3077, %v3058
        %v3082 = vmul.f32 %v3079, %v3059
        %v3083 = vpack.c.bf16 %v3081, %v3081
        %v3084 = vpack.c.bf16 %v3082, %v3082
        %3085 = vrot.lane.b32.xlu0 %v2938, 64
        %v3086 = vpop.permute.xlu0 %3085
        %3087 = vrot.lane.b32.xlu0 %v2943, 64
        %v3088 = vpop.permute.xlu0 %3087
        %v3090 = vsel %vm651, %v3086, 0
        %v3093 = vsel %vm651, %v3088, 0
        %3095 = vmatpush.bf16.xpose.msra.mxu0 0
        %3096 = vmatpush.bf16.xpose.msra.mxu0 0
        %3097 = vmatpush.bf16.xpose.msra.mxu0 0
        %3098 = vmatpush.bf16.xpose.msra.mxu0 0
        %3099 = vmatpush.bf16.xpose.msra.mxu0 0
        %3100 = vmatpush.bf16.xpose.msra.mxu0 0
        %3101 = vmatpush.bf16.xpose.msra.mxu0 0
        %3102 = vmatpush.bf16.xpose.msra.mxu0 %v3093
        %3103 = vmatmul.bf16.gmra.mxu0 %v3090
        %v3104 = vpop.f32.mrf.mxu0
        %v3105 = vadd.f32 0.0, %v3104
        %v3106 = vpop.f32.mrf.mxu0
        %v3107 = vadd.f32 0.0, %v3106
        %3108 = vdwg.mxu0
        %v3109 = vsel %vm639, %v3105, -1e+30
        %v3110 = vsel %vm640, %v3107, -1e+30
        %v3111 = vsel %vm674, %v3109, -inf
        %3112 = vmax.xlane.f32.xlu0 %v3111
        %v3113 = vpop.xlane.xlu0 %3112
        %v3114 = vsel %vm674, %v3110, -inf
        %3115 = vmax.xlane.f32.xlu0 %v3114
        %v3116 = vpop.xlane.xlu0 %3115
        %v3117 = vsub.f32 %v3109, %v3113
        %v3118 = vsub.f32 %v3110, %v3116
        %v3119 = vmul.f32 %v3117, 1.442695
        %v3120 = vpow.pop %v3119
        %v3121 = vmul.f32 %v3118, 1.442695
        %v3122 = vpow.pop %v3121
        %v3123 = vsel %vm674, %v3120, 0.0
        %3124 = vadd.xlane.f32.xlu0 %v3123
        %v3125 = vpop.xlane.xlu0 %3124
        %v3126 = vsel %vm674, %v3122, 0.0
        %3127 = vadd.xlane.f32.xlu0 %v3126
        %v3128 = vpop.xlane.xlu0 %3127
        %v3129 = vrcp.pop %v3125
        %v3130 = vrcp.pop %v3128
        %v3131 = vpack.c.bf16 %v3122, %v3120
        %3132 = vrot.lane.b32.xlu0 %v2991, 64
        %v3133 = vpop.permute.xlu0 %3132
        %v3136 = vsel %vm674, %v3131, 0
        %3138 = vmatpush.bf16.msra.mxu0 0
        %3139 = vmatpush.bf16.msra.mxu0 0
        %3140 = vmatpush.bf16.msra.mxu0 0
        %3141 = vmatpush.bf16.msra.mxu0 0
        %3142 = vmatpush.bf16.msra.mxu0 0
        %3143 = vmatpush.bf16.msra.mxu0 0
        %3144 = vmatpush.bf16.msra.mxu0 0
        %3145 = vmatpush.bf16.msra.mxu0 %v3133
        %3146 = vmatmul.bf16.gmra.mxu0 %v3136
        %v3147 = vpop.f32.mrf.mxu0
        %v3148 = vadd.f32 0.0, %v3147
        %v3149 = vpop.f32.mrf.mxu0
        %v3150 = vadd.f32 0.0, %v3149
        %3151 = vdwg.mxu0
        %v3152 = vmul.f32 %v3148, %v3129
        %v3153 = vmul.f32 %v3150, %v3130
        %v3154 = vpack.c.bf16 %v3152, %v3152
        %v3155 = vpack.c.bf16 %v3153, %v3153
        %3156 = vrot.lane.b32.xlu0 %v2938, 32
        %v3157 = vpop.permute.xlu0 %3156
        %3158 = vrot.lane.b32.xlu0 %v2943, 32
        %v3159 = vpop.permute.xlu0 %3158
        %v3161 = vsel %vm651, %v3157, 0
        %v3164 = vsel %vm651, %v3159, 0
        %3166 = vmatpush.bf16.xpose.msra.mxu0 0
        %3167 = vmatpush.bf16.xpose.msra.mxu0 0
        %3168 = vmatpush.bf16.xpose.msra.mxu0 0
        %3169 = vmatpush.bf16.xpose.msra.mxu0 0
        %3170 = vmatpush.bf16.xpose.msra.mxu0 0
        %3171 = vmatpush.bf16.xpose.msra.mxu0 0
        %3172 = vmatpush.bf16.xpose.msra.mxu0 0
        %3173 = vmatpush.bf16.xpose.msra.mxu0 %v3164
        %3174 = vmatmul.bf16.gmra.mxu0 %v3161
        %v3175 = vpop.f32.mrf.mxu0
        %v3176 = vadd.f32 0.0, %v3175
        %v3177 = vpop.f32.mrf.mxu0
        %v3178 = vadd.f32 0.0, %v3177
        %3179 = vdwg.mxu0
        %v3180 = vsel %vm639, %v3176, -1e+30
        %v3181 = vsel %vm640, %v3178, -1e+30
        %v3182 = vsel %vm674, %v3180, -inf
        %3183 = vmax.xlane.f32.xlu0 %v3182
        %v3184 = vpop.xlane.xlu0 %3183
        %v3185 = vsel %vm674, %v3181, -inf
        %3186 = vmax.xlane.f32.xlu0 %v3185
        %v3187 = vpop.xlane.xlu0 %3186
        %v3188 = vsub.f32 %v3180, %v3184
        %v3189 = vsub.f32 %v3181, %v3187
        %v3190 = vmul.f32 %v3188, 1.442695
        %v3191 = vpow.pop %v3190
        %v3192 = vmul.f32 %v3189, 1.442695
        %v3193 = vpow.pop %v3192
        %v3194 = vsel %vm674, %v3191, 0.0
        %3195 = vadd.xlane.f32.xlu0 %v3194
        %v3196 = vpop.xlane.xlu0 %3195
        %v3197 = vsel %vm674, %v3193, 0.0
        %3198 = vadd.xlane.f32.xlu0 %v3197
        %v3199 = vpop.xlane.xlu0 %3198
        %v3200 = vrcp.pop %v3196
        %v3201 = vrcp.pop %v3199
        %v3202 = vpack.c.bf16 %v3193, %v3191
        %3203 = vrot.lane.b32.xlu0 %v2991, 32
        %v3204 = vpop.permute.xlu0 %3203
        %v3207 = vsel %vm674, %v3202, 0
        %3209 = vmatpush.bf16.msra.mxu0 0
        %3210 = vmatpush.bf16.msra.mxu0 0
        %3211 = vmatpush.bf16.msra.mxu0 0
        %3212 = vmatpush.bf16.msra.mxu0 0
        %3213 = vmatpush.bf16.msra.mxu0 0
        %3214 = vmatpush.bf16.msra.mxu0 0
        %3215 = vmatpush.bf16.msra.mxu0 0
        %3216 = vmatpush.bf16.msra.mxu0 %v3204
        %3217 = vmatmul.bf16.gmra.mxu0 %v3207
        %v3218 = vpop.f32.mrf.mxu0
        %v3219 = vadd.f32 0.0, %v3218
        %v3220 = vpop.f32.mrf.mxu0
        %v3221 = vadd.f32 0.0, %v3220
        %3222 = vdwg.mxu0
        %v3223 = vmul.f32 %v3219, %v3200
        %v3224 = vmul.f32 %v3221, %v3201
        %v3225 = vpack.c.bf16 %v3223, %v3223
        %v3226 = vpack.c.bf16 %v3224, %v3224
        %v3229 = vunpack.c.l.b16 %v3012
        %v3230 = vunpack.c.l.b16 %v3013
        %v3231 = vpack.c.b16 %v3230, %v3229
        %v3234 = vunpack.c.l.b16 %v3083
        %v3235 = vunpack.c.l.b16 %v3084
        %v3236 = vpack.c.b16 %v3235, %v3234
        %3237 = vrot.lane.b32.xlu0 %v3236, 32
        %v3238 = vpop.permute.xlu0 %3237
        %v3241 = vunpack.c.l.b16 %v3154
        %v3242 = vunpack.c.l.b16 %v3155
        %v3243 = vpack.c.b16 %v3242, %v3241
        %3244 = vrot.lane.b32.xlu0 %v3243, 64
        %v3245 = vpop.permute.xlu0 %3244
        %v3248 = vunpack.c.l.b16 %v3225
        %v3249 = vunpack.c.l.b16 %v3226
        %v3250 = vpack.c.b16 %v3249, %v3248
        %3251 = vrot.lane.b32.xlu0 %v3250, 96
        %v3252 = vpop.permute.xlu0 %3251
        %v3255 = vsel %vm651, %v3231, %v3238
        %v3257 = vsel %vm965, %v3255, %v3245
        %v3259 = vsel %vm968, %v3257, %v3252
        %v3261 = vld [vmem:[#allocation7] sm:$0xf]
        %v3262 = vld [vmem:[#allocation7 + $0x4] sm:$0xf]
        %v3263 = vld [vmem:[#allocation7 + $0x8] sm:$0xf]
        %v3264 = vld [vmem:[#allocation7 + $0xc] sm:$0xf]
        %v3265 = vld [vmem:[#allocation7 + $0x10] sm:$0xf]
        %v3266 = vld [vmem:[#allocation7 + $0x14] sm:$0xf]
        %v3267 = vld [vmem:[#allocation7 + $0x18] sm:$0xf]
        %v3268 = vld [vmem:[#allocation7 + $0x1c] sm:$0xf]
        %v3269 = vld [vmem:[#allocation7 + $0x20] sm:$0xf]
        %v3270 = vld [vmem:[#allocation7 + $0x24] sm:$0xf]
        %v3271 = vld [vmem:[#allocation7 + $0x28] sm:$0xf]
        %v3272 = vld [vmem:[#allocation7 + $0x2c] sm:$0xf]
        %v3273 = vld [vmem:[#allocation7 + $0x30] sm:$0xf]
        %v3274 = vld [vmem:[#allocation7 + $0x34] sm:$0xf]
        %v3275 = vld [vmem:[#allocation7 + $0x38] sm:$0xf]
        %v3276 = vld [vmem:[#allocation7 + $0x3c] sm:$0xf]
        %v3277 = vld [vmem:[%s3] sm:$0x1]
        %v3279 = vperm.slane %v3277, 0
        %v3297 = vunpack.c.l.b16 %v3261
        %v3298 = vunpack.c.l.b16 %v3262
        %v3299 = vunpack.c.l.b16 %v3263
        %v3300 = vunpack.c.l.b16 %v3264
        %v3301 = vunpack.c.l.b16 %v3265
        %v3302 = vunpack.c.l.b16 %v3266
        %v3303 = vunpack.c.l.b16 %v3267
        %v3304 = vunpack.c.l.b16 %v3268
        %v3305 = vunpack.c.l.b16 %v3269
        %v3306 = vunpack.c.l.b16 %v3270
        %v3307 = vunpack.c.l.b16 %v3271
        %v3308 = vunpack.c.l.b16 %v3272
        %v3309 = vunpack.c.l.b16 %v3273
        %v3310 = vunpack.c.l.b16 %v3274
        %v3311 = vunpack.c.l.b16 %v3275
        %v3312 = vunpack.c.l.b16 %v3276
        %v3313 = vpack.c.b16 %v3298, %v3297
        %v3314 = vpack.c.b16 %v3300, %v3299
        %v3315 = vpack.c.b16 %v3302, %v3301
        %v3316 = vpack.c.b16 %v3304, %v3303
        %v3317 = vpack.c.b16 %v3306, %v3305
        %v3318 = vpack.c.b16 %v3308, %v3307
        %v3319 = vpack.c.b16 %v3310, %v3309
        %v3320 = vpack.c.b16 %v3312, %v3311
        %3329 = vmatpush.bf16.msra.mxu0 %v3320
        %3330 = vmatpush.bf16.msra.mxu0 %v3319
        %3331 = vmatpush.bf16.msra.mxu0 %v3318
        %3332 = vmatpush.bf16.msra.mxu0 %v3317
        %3333 = vmatpush.bf16.msra.mxu0 %v3316
        %3334 = vmatpush.bf16.msra.mxu0 %v3315
        %3335 = vmatpush.bf16.msra.mxu0 %v3314
        %3336 = vmatpush.bf16.msra.mxu0 %v3313
        %3337 = vmatmul.bf16.gmra.mxu0 %v970
        %v3338 = vpop.f32.mrf.mxu0
        %v3339 = vadd.f32 %v3279, %v3338
        %v3340 = vpop.f32.mrf.mxu0
        %v3341 = vadd.f32 %v3279, %v3340
        %3342 = vmatmul.bf16.gmra.mxu0 %v1297
        %v3343 = vpop.f32.mrf.mxu0
        %v3344 = vadd.f32 %v3279, %v3343
        %v3345 = vpop.f32.mrf.mxu0
        %v3346 = vadd.f32 %v3279, %v3345
        %3347 = vmatmul.bf16.gmra.mxu0 %v1624
        %v3348 = vpop.f32.mrf.mxu0
        %v3349 = vadd.f32 %v3279, %v3348
        %v3350 = vpop.f32.mrf.mxu0
        %v3351 = vadd.f32 %v3279, %v3350
        %3352 = vmatmul.bf16.gmra.mxu0 %v1951
        %v3353 = vpop.f32.mrf.mxu0
        %v3354 = vadd.f32 %v3279, %v3353
        %v3355 = vpop.f32.mrf.mxu0
        %v3356 = vadd.f32 %v3279, %v3355
        %3357 = vmatmul.bf16.gmra.mxu0 %v2278
        %v3358 = vpop.f32.mrf.mxu0
        %v3359 = vadd.f32 %v3279, %v3358
        %v3360 = vpop.f32.mrf.mxu0
        %v3361 = vadd.f32 %v3279, %v3360
        %3362 = vmatmul.bf16.gmra.mxu0 %v2605
        %v3363 = vpop.f32.mrf.mxu0
        %v3364 = vadd.f32 %v3279, %v3363
        %v3365 = vpop.f32.mrf.mxu0
        %v3366 = vadd.f32 %v3279, %v3365
        %3367 = vmatmul.bf16.gmra.mxu0 %v2932
        %v3368 = vpop.f32.mrf.mxu0
        %v3369 = vadd.f32 %v3279, %v3368
        %v3370 = vpop.f32.mrf.mxu0
        %v3371 = vadd.f32 %v3279, %v3370
        %3372 = vmatmul.bf16.gmra.mxu0 %v3259
        %v3373 = vpop.f32.mrf.mxu0
        %v3374 = vadd.f32 %v3279, %v3373
        %v3375 = vpop.f32.mrf.mxu0
        %v3376 = vadd.f32 %v3279, %v3375
        %3377 = vdwg.mxu0
        %3378 = vst [vmem:[%s251] sm:$0xff] %v3339
        %3379 = vst [vmem:[%s251 + $0x8] sm:$0xff] %v3341
        %3380 = vst [vmem:[%s251 + $0x10] sm:$0xff] %v3344
        %3381 = vst [vmem:[%s251 + $0x18] sm:$0xff] %v3346
        %3382 = vst [vmem:[%s251 + $0x20] sm:$0xff] %v3349
        %3383 = vst [vmem:[%s251 + $0x28] sm:$0xff] %v3351
        %3384 = vst [vmem:[%s251 + $0x30] sm:$0xff] %v3354
        %3385 = vst [vmem:[%s251 + $0x38] sm:$0xff] %v3356
        %3386 = vst [vmem:[%s251 + $0x40] sm:$0xff] %v3359
        %3387 = vst [vmem:[%s251 + $0x48] sm:$0xff] %v3361
        %3388 = vst [vmem:[%s251 + $0x50] sm:$0xff] %v3364
        %3389 = vst [vmem:[%s251 + $0x58] sm:$0xff] %v3366
        %3390 = vst [vmem:[%s251 + $0x60] sm:$0xff] %v3369
        %3391 = vst [vmem:[%s251 + $0x68] sm:$0xff] %v3371
        %3392 = vst [vmem:[%s251 + $0x70] sm:$0xff] %v3374
        %3393 = vst [vmem:[%s251 + $0x78] sm:$0xff] %v3376
        %s3394 = sand.u32 %s119, 1
        %s3395 = scalar_lea.sflag [#allocation4], %s3394
        %s3396 = sand.u32 %s119, 1
        %s3397 = smul.addr %s3396, 128
        %s3398 = scalar_lea.vmem [#allocation8], %s3397
        // Predicated region
        $region49: #{tpu_custom_call.1} parent=35 // pred_check
          %p3399 = pneg %p129
        $region50: #{tpu_custom_call.1} parent=35 // pred_check_branch
          %3401 = sbr.rel (%p3399) target = $region52
        $region51: #{tpu_custom_call.1} parent=35 // pred_region
          %s3402 = smul.u32 8, %s22
          %3404 = vsyncadd %s3395, 0
          %s3405 = smul.addr %s3402, 2
          %s3406 = smul.addr %s3405, 8
          %s3407 = scalar_lea.hbm %s4, %s3406
          %s3408 = sshll.u32 %s3398, 4
          %s3409 = int_to_ptr.vmem [resolvable:$true] %s3408
          %s3410 = sshll.u32 %s3407, 4
          %s3411 = int_to_ptr.hbm [resolvable:$true] %s3410
          %3416 = dma.vmem_to_hbm [thread:$0]  %s3409, 2048, %s3411, %s3395, 128, 128, 8
        $region52: #{tpu_custom_call.1} parent=35 // pred_fallthru
          _
      $region36: #{tpu_custom_call.1} parent=5 // pred_fallthru
        _
      %p3417 = scmp.le.s32.totalorder 2, %s17
      // Predicated region
      $region53: #{tpu_custom_call.1} parent=5 // pred_check
        %p3418 = pneg %p3417
      $region54: #{tpu_custom_call.1} parent=5 // pred_check_branch
        %3420 = sbr.rel (%p3418) target = $region56
      $region55: #{tpu_custom_call.1} parent=5 // pred_region
        %s3421 = ssub.s32 %s17, 2
        // Predicated region
        $region57: #{tpu_custom_call.1} parent=55 // pred_check
          %p3422 = pneg %p135
        $region58: #{tpu_custom_call.1} parent=55 // pred_check_branch
          %3424 = sbr.rel (%p3422) target = $region60
        $region59: #{tpu_custom_call.1} parent=55 // pred_region
          %s3425 = sand.u32 %s120, 1
          %s3426 = scalar_lea.sflag [#allocation4], %s3425
          %s3427 = sand.u32 %s120, 1
          %s3428 = smul.addr %s3427, 128
          %s3429 = scalar_lea.vmem [#allocation8], %s3428
          %3431 = dma.done %s3426, 2048
        $region60: #{tpu_custom_call.1} parent=55 // pred_fallthru
          _
      $region56: #{tpu_custom_call.1} parent=5 // pred_fallthru
        _
    $region6: #{tpu_custom_call.1} parent=1 // loop_footer
      %s21 = sadd.s32 1, %s17
    $region7: #{tpu_custom_call.1} parent=1 // loop_footer_branch
      %16 = sbr.rel target = $region3
    $region8: #{tpu_custom_call.1} parent=1 // loop_exit
      _
    %3432 = vsyncpa [#allocation3], 1
    %s3433 = scalar_lea.sflag [#allocation3], 1
    %3434 = vsyncpa %s3433, 1
    %3435 = vsyncpa [#allocation6], 1
    %3436 = vsyncpa [#allocation4], 1
    %s3437 = scalar_lea.sflag [#allocation4], 1
    %3438 = vsyncpa %s3437, 1

</llo_original>
